<compile_context>
chip_gen: v6e
topology: v6e:2x2x1
jax: 0.10.0
libtpu: 0.0.40
codegen_flags: <defaults>
</compile_context>

<pallas_src>
from functools import partial

import jax
import jax.numpy as jnp
from jax.experimental import pallas as pl
from jax.experimental.pallas import tpu as pltpu


def _round_up(x, m):
    return (x + m - 1) // m * m


def _vmem_limit(block_bytes, scratch_bytes):
    """Scoped-VMEM request: double-buffered blocks + scratches, 2x headroom,
    floored at 16 MiB and capped well below a v7x TC's 64 MiB physical VMEM."""
    needed = 2 * block_bytes + scratch_bytes
    return int(min(max(2 * needed, 16 * 1024 * 1024), 48 * 1024 * 1024))


# --------------------- Conv2d + BN-statistics kernel ------------------------ #
def _conv_bn_stats_kernel(x_ref, w_ref, y_ref, stats_ref, xpad_ref, col_ref, *,
                          H, W, KH, KW, PH, PW, CIN, CIN_P, HO, WO, COUT,
                          K_TAPS, K_P):
    """One batch element per grid step.

    x_ref    : (1, H, W, CIN)         bf16  input image (NHWC)
    w_ref    : (K_P, COUT_MXU)        bf16  im2col-packed weights (K padded to 128)
    y_ref    : (1, COUT, HO*WO)       bf16  conv output, channel-major (lane = HO*WO)
    stats_ref: (1, 2, COUT_MXU)       f32   per-image [sum, sum of squares]
    xpad_ref : (H+2PH, W+2PW, CIN_P)  bf16  zero-padded input (VMEM scratch)
    col_ref  : (HO, WO, K_P)          bf16  im2col matrix (VMEM scratch)
    """
    Hp, Wp = H + 2 * PH, W + 2 * PW

    # Zero only the halo rows/cols and the padded channel tail.  Done every grid
    # step on purpose: with "parallel" semantics each TensorCore has its own
    # scratch copy, so gating on program_id would leave garbage on other cores.
    if PH > 0:
        xpad_ref[0:PH, :, :] = jnp.zeros((PH, Wp, CIN_P), xpad_ref.dtype)
        xpad_ref[PH + H:Hp, :, :] = jnp.zeros((PH, Wp, CIN_P), xpad_ref.dtype)
    if PW > 0:
        xpad_ref[PH:PH + H, 0:PW, :] = jnp.zeros((H, PW, CIN_P), xpad_ref.dtype)
        xpad_ref[PH:PH + H, PW + W:Wp, :] = jnp.zeros((H, PW, CIN_P),
                                                      xpad_ref.dtype)
    if CIN_P > CIN:
        xpad_ref[PH:PH + H, PW:PW + W, CIN:CIN_P] = jnp.zeros(
            (H, W, CIN_P - CIN), xpad_ref.dtype)
    xpad_ref[PH:PH + H, PW:PW + W, 0:CIN] = x_ref[0]

    # im2col: one bf16 slab store per filter tap (static unroll over small taps).
    for dh in range(KH):
        for dw in range(KW):
            j = dh * KW + dw
            col_ref[:, :, j * CIN_P:(j + 1) * CIN_P] = (
                xpad_ref[dh:dh + HO, dw:dw + WO, :])
    if K_P > K_TAPS:
        # The matching weight rows are zero, but 0 * garbage can still be NaN,
        # so the K padding must be real zeros (cheap: 56 lanes here).
        col_ref[:, :, K_TAPS:K_P] = jnp.zeros((HO, WO, K_P - K_TAPS),
                                              col_ref.dtype)

    # Single MXU contraction: bf16 operands, f32 accumulation.
    col2 = col_ref[...].reshape(HO * WO, K_P)            # free leading-dim merge
    acc = jnp.dot(col2, w_ref[...], preferred_element_type=jnp.float32)

    # Per-image channel sums for training-mode BatchNorm, from the f32
    # accumulator (no extra HBM pass over y).  Lane-dense (COUT_MXU) write.
    stats_ref[0, 0:1, :] = jnp.sum(acc, axis=0, keepdims=True)
    stats_ref[0, 1:2, :] = jnp.sum(acc * acc, axis=0, keepdims=True)

    # Channel-major bf16 HBM intermediate: keeps the lane dim (HO*WO) large and
    # drops the 16x channel padding for small COUT.  Transpose uses the idle XLU.
    acc_t = acc.T                                         # (COUT_MXU, HO*WO)
    y_ref[...] = acc_t[0:COUT, :].astype(y_ref.dtype).reshape(1, COUT, HO * WO)


def conv2d_bn_stats_pallas(x_nhwc_bf16, w_mat_bf16, *, H, W, KH, KW, PH, PW,
                           CIN, CIN_P, COUT, COUT_MXU, K_P):
    N = x_nhwc_bf16.shape[0]
    HO, WO = H + 2 * PH - KH + 1, W + 2 * PW - KW + 1
    K_TAPS = KH * KW * CIN_P

    kernel = partial(_conv_bn_stats_kernel, H=H, W=W, KH=KH, KW=KW, PH=PH,
                     PW=PW, CIN=CIN, CIN_P=CIN_P, HO=HO, WO=WO, COUT=COUT,
                     K_TAPS=K_TAPS, K_P=K_P)

    block_bytes = (H * W * CIN * 2 + K_P * COUT_MXU * 2
                   + COUT * HO * WO * 2 + 2 * COUT_MXU * 4)
    scratch_bytes = ((H + 2 * PH) * (W + 2 * PW) * CIN_P * 2
                     + HO * WO * K_P * 2)

    return pl.pallas_call(
        kernel,
        out_shape=(
            jax.ShapeDtypeStruct((N, COUT, HO * WO), jnp.bfloat16),
            jax.ShapeDtypeStruct((N, 2, COUT_MXU), jnp.float32),
        ),
        grid=(N,),
        in_specs=[
            pl.BlockSpec((1, H, W, CIN), lambda n: (n, 0, 0, 0)),
            pl.BlockSpec((K_P, COUT_MXU), lambda n: (0, 0)),
        ],
        out_specs=(
            pl.BlockSpec((1, COUT, HO * WO), lambda n: (n, 0, 0)),
            pl.BlockSpec((1, 2, COUT_MXU), lambda n: (n, 0, 0)),
        ),
        scratch_shapes=[
            pltpu.VMEM((H + 2 * PH, W + 2 * PW, CIN_P), jnp.bfloat16),
            pltpu.VMEM((HO, WO, K_P), jnp.bfloat16),
        ],
        compiler_params=pltpu.CompilerParams(
            dimension_semantics=("parallel",),
            vmem_limit_bytes=_vmem_limit(block_bytes, scratch_bytes)),
    )(x_nhwc_bf16, w_mat_bf16)


# ------------------------- Fused BN-affine + ReLU --------------------------- #
def _bn_relu_kernel(y_ref, s_ref, b_ref, o_ref):
    # v5e-safe: elementwise math in f32 (bf16 only on the HBM load).
    y = y_ref[...].astype(jnp.float32)
    o_ref[...] = jnp.maximum(y * s_ref[...] + b_ref[...], 0.0)


def bn_relu_pallas(y2d, scale_rows, bias_rows):
    """y2d: (N*COUT, HO*WO) bf16; scale/bias: (N*COUT, 1) f32; returns f32."""
    R, M = y2d.shape
    if R <= 512:
        TR = R
    else:
        TR = next((c for c in range(512, 7, -1) if R % c == 0 and c % 8 == 0), R)
    block_bytes = TR * M * (2 + 4) + 2 * TR * 4
    return pl.pallas_call(
        _bn_relu_kernel,
        out_shape=jax.ShapeDtypeStruct((R, M), jnp.float32),
        grid=(R // TR,),
        in_specs=[
            pl.BlockSpec((TR, M), lambda i: (i, 0)),
            pl.BlockSpec((TR, 1), lambda i: (i, 0)),
            pl.BlockSpec((TR, 1), lambda i: (i, 0)),
        ],
        out_specs=pl.BlockSpec((TR, M), lambda i: (i, 0)),
        compiler_params=pltpu.CompilerParams(
            dimension_semantics=("parallel",),
            vmem_limit_bytes=_vmem_limit(block_bytes, 0)),
    )(y2d, scale_rows, bias_rows)


# ------------------------------ BasicConv2d --------------------------------- #
def basic_conv2d_forward(x_nchw, weight_oihw, gamma, beta, *, eps=1e-3,
                         padding=(1, 1)):
    """Equivalent of BasicConv2d.forward(x) with training-mode BatchNorm2d."""
    N, CIN, H, W = x_nchw.shape
    COUT, _, KH, KW = weight_oihw.shape
    PH, PW = padding
    HO, WO = H + 2 * PH - KH + 1, W + 2 * PW - KW + 1

    CIN_P = _round_up(max(CIN, 8), 8)        # K-dim channels padded to >= 8
    COUT_MXU = _round_up(COUT, 128)          # MXU lane width (weights/acc only;
                                             #  the HBM intermediate stays COUT)
    K_TAPS = KH * KW * CIN_P
    K_P = _round_up(K_TAPS, 128)             # contraction dim padded to 128

    # NHWC bf16 input (halves input DMA bytes; MXU is bf16-native).
    x_nhwc = jnp.transpose(x_nchw, (0, 2, 3, 1)).astype(jnp.bfloat16)

    # (O, I, KH, KW) -> (K_P, COUT_MXU) bf16, im2col order k = (kh*KW+kw)*CIN_P+c.
    w = jnp.transpose(weight_oihw, (2, 3, 1, 0))                  # KH, KW, I, O
    w = jnp.pad(w, ((0, 0), (0, 0), (0, CIN_P - CIN), (0, COUT_MXU - COUT)))
    w = w.reshape(K_TAPS, COUT_MXU)
    w = jnp.pad(w, ((0, K_P - K_TAPS), (0, 0))).astype(jnp.bfloat16)

    y, stats = conv2d_bn_stats_pallas(
        x_nhwc, w, H=H, W=W, KH=KH, KW=KW, PH=PH, PW=PW,
        CIN=CIN, CIN_P=CIN_P, COUT=COUT, COUT_MXU=COUT_MXU, K_P=K_P)

    # Tiny per-channel combine in JAX (no re-read of y from HBM).
    # TODO(synk): E[x^2]-E[x]^2 can cancel for large activations; a shifted /
    #             Welford-style combine of the per-image sums would be safer.
    count = N * HO * WO
    tot = jnp.sum(stats, axis=0)                         # (2, COUT_MXU)
    mean = tot[0, :COUT] / count
    var = tot[1, :COUT] / count - mean * mean            # biased == training BN
    scale = gamma.astype(jnp.float32) / jnp.sqrt(var + eps)
    bias = beta.astype(jnp.float32) - mean * scale

    # Fused BN-affine + ReLU over the channel-major intermediate; the result is
    # already NCHW up to a free reshape (no slice, no transpose).
    R = N * COUT
    y2d = y.reshape(R, HO * WO)
    scale_rows = jnp.tile(scale, (N,)).reshape(R, 1)
    bias_rows = jnp.tile(bias, (N,)).reshape(R, 1)
    out2d = bn_relu_pallas(y2d, scale_rows, bias_rows)   # (R, HO*WO) f32
    return out2d.reshape(N, COUT, HO, WO)


# --------------------------------- main -------------------------------------- #
if __name__ == "__main__":
    key = jax.random.PRNGKey(0)
    k_x, k_w, k_g, k_b = jax.random.split(key, 4)

    N, C_in, H, W = 2, 4, 16, 16
    C_out, KH, KW = 8, 3, 3          # BasicConv2d(4, 8, kernel_size=3, padding=1)

    x = jax.random.normal(k_x, (N, C_in, H, W), dtype=jnp.float32)
    weight = 0.1 * jax.random.normal(k_w, (C_out, C_in, KH, KW), jnp.float32)
    gamma = 1.0 + 0.1 * jax.random.normal(k_g, (C_out,), jnp.float32)
    beta = 0.1 * jax.random.normal(k_b, (C_out,), jnp.float32)

    out = basic_conv2d_forward(x, weight, gamma, beta, eps=1e-3, padding=(1, 1))
    out = jax.block_until_ready(out)

    # Pure-JAX reference (training-mode BN) for a silent correctness check.
    y_ref = jax.lax.conv_general_dilated(
        x, weight, window_strides=(1, 1), padding=((1, 1), (1, 1)),
        dimension_numbers=("NCHW", "OIHW", "NCHW"),
        precision=jax.lax.Precision.HIGHEST)
    m = jnp.mean(y_ref, axis=(0, 2, 3), keepdims=True)
    v = jnp.mean(jnp.square(y_ref - m), axis=(0, 2, 3), keepdims=True)
    ref = jnp.maximum(
        (y_ref - m) / jnp.sqrt(v + 1e-3) * gamma.reshape(1, -1, 1, 1)
        + beta.reshape(1, -1, 1, 1), 0.0)
    assert out.shape == (N, C_out, H, W)
    # Tolerance loosened for bf16 matmul operands / bf16 intermediate.
    assert jnp.allclose(out, ref, atol=5e-2, rtol=5e-2)

    print("KERNEL_OK")
</pallas_src>

<mosaic_0001>
module attributes {stable_mosaic.version = 11 : i64} {
  func.func @_conv_bn_stats_kernel(%arg0: i32, %arg1: memref<1x16x16x4xbf16, #tpu.memory_space<vmem>>, %arg2: memref<128x128xbf16, #tpu.memory_space<vmem>>, %arg3: memref<1x8x256xbf16, #tpu.memory_space<vmem>>, %arg4: memref<1x2x128xf32, #tpu.memory_space<vmem>>, %arg5: memref<18x18x8xbf16, #tpu.memory_space<vmem>>, %arg6: memref<16x16x128xbf16, #tpu.memory_space<vmem>>) attributes {dimension_semantics = [#tpu.dimension_semantics<parallel>], iteration_bounds = array<i64: 2>, scalar_prefetch = 0 : i64, scratch_operands = 2 : i64, tpu.core_type = #tpu.core_type<tc>, window_params = [{transform_indices = @transform_0, window_bounds = array<i64: 1, 16, 16, 4>}, {pipeline_mode = #tpu.pipeline_mode<synchronous>, transform_indices = @transform_1, window_bounds = array<i64: 128, 128>}, {transform_indices = @transform_2, window_bounds = array<i64: 1, 8, 256>}, {transform_indices = @transform_3, window_bounds = array<i64: 1, 2, 128>}]} {
    %cst = arith.constant 0.000000e+00 : bf16
    %0 = vector.broadcast %cst : bf16 to vector<1x18x8xbf16>
    %c0 = arith.constant 0 : index
    %c0_0 = arith.constant 0 : index
    %c0_1 = arith.constant 0 : index
    %1 = vector.load %arg5[%c0, %c0_0, %c0_1] : memref<18x18x8xbf16, #tpu.memory_space<vmem>>, vector<1x18x8xbf16>
    tpu.vector_store %arg5[%c0, %c0_0, %c0_1], %0 {strides = array<i32>} : memref<18x18x8xbf16, #tpu.memory_space<vmem>>, vector<1x18x8xbf16>,
    %cst_2 = arith.constant 0.000000e+00 : bf16
    %2 = vector.broadcast %cst_2 : bf16 to vector<1x18x8xbf16>
    %c17 = arith.constant 17 : index
    %c0_3 = arith.constant 0 : index
    %c0_4 = arith.constant 0 : index
    %3 = vector.load %arg5[%c17, %c0_3, %c0_4] : memref<18x18x8xbf16, #tpu.memory_space<vmem>>, vector<1x18x8xbf16>
    tpu.vector_store %arg5[%c17, %c0_3, %c0_4], %2 {strides = array<i32>} : memref<18x18x8xbf16, #tpu.memory_space<vmem>>, vector<1x18x8xbf16>,
    %cst_5 = arith.constant 0.000000e+00 : bf16
    %4 = vector.broadcast %cst_5 : bf16 to vector<16x1x8xbf16>
    %c1 = arith.constant 1 : index
    %c0_6 = arith.constant 0 : index
    %c0_7 = arith.constant 0 : index
    %5 = vector.load %arg5[%c1, %c0_6, %c0_7] : memref<18x18x8xbf16, #tpu.memory_space<vmem>>, vector<16x1x8xbf16>
    tpu.vector_store %arg5[%c1, %c0_6, %c0_7], %4 {strides = array<i32>} : memref<18x18x8xbf16, #tpu.memory_space<vmem>>, vector<16x1x8xbf16>,
    %cst_8 = arith.constant 0.000000e+00 : bf16
    %6 = vector.broadcast %cst_8 : bf16 to vector<16x1x8xbf16>
    %c1_9 = arith.constant 1 : index
    %c17_10 = arith.constant 17 : index
    %c0_11 = arith.constant 0 : index
    %7 = vector.load %arg5[%c1_9, %c17_10, %c0_11] : memref<18x18x8xbf16, #tpu.memory_space<vmem>>, vector<16x1x8xbf16>
    tpu.vector_store %arg5[%c1_9, %c17_10, %c0_11], %6 {strides = array<i32>} : memref<18x18x8xbf16, #tpu.memory_space<vmem>>, vector<16x1x8xbf16>,
    %cst_12 = arith.constant 0.000000e+00 : bf16
    %8 = vector.broadcast %cst_12 : bf16 to vector<16x16x4xbf16>
    %c1_13 = arith.constant 1 : index
    %c1_14 = arith.constant 1 : index
    %c4 = arith.constant 4 : index
    %9 = vector.load %arg5[%c1_13, %c1_14, %c4] : memref<18x18x8xbf16, #tpu.memory_space<vmem>>, vector<16x16x4xbf16>
    tpu.vector_store %arg5[%c1_13, %c1_14, %c4], %8 {strides = array<i32>} : memref<18x18x8xbf16, #tpu.memory_space<vmem>>, vector<16x16x4xbf16>,
    %c0_15 = arith.constant 0 : index
    %c0_16 = arith.constant 0 : index
    %c0_17 = arith.constant 0 : index
    %c0_18 = arith.constant 0 : index
    %10 = vector.load %arg1[%c0_15, %c0_16, %c0_17, %c0_18] : memref<1x16x16x4xbf16, #tpu.memory_space<vmem>>, vector<1x16x16x4xbf16>
    %11 = vector.shape_cast %10 : vector<1x16x16x4xbf16> to vector<16x16x4xbf16>
    %c1_19 = arith.constant 1 : index
    %c1_20 = arith.constant 1 : index
    %c0_21 = arith.constant 0 : index
    %12 = vector.load %arg5[%c1_19, %c1_20, %c0_21] : memref<18x18x8xbf16, #tpu.memory_space<vmem>>, vector<16x16x4xbf16>
    tpu.vector_store %arg5[%c1_19, %c1_20, %c0_21], %11 {strides = array<i32>} : memref<18x18x8xbf16, #tpu.memory_space<vmem>>, vector<16x16x4xbf16>,
    %c0_22 = arith.constant 0 : index
    %c0_23 = arith.constant 0 : index
    %c0_24 = arith.constant 0 : index
    %13 = vector.load %arg5[%c0_22, %c0_23, %c0_24] : memref<18x18x8xbf16, #tpu.memory_space<vmem>>, vector<16x16x8xbf16>
    %c0_25 = arith.constant 0 : index
    %c0_26 = arith.constant 0 : index
    %c0_27 = arith.constant 0 : index
    %14 = vector.load %arg6[%c0_25, %c0_26, %c0_27] : memref<16x16x128xbf16, #tpu.memory_space<vmem>>, vector<16x16x8xbf16>
    tpu.vector_store %arg6[%c0_25, %c0_26, %c0_27], %13 {strides = array<i32>} : memref<16x16x128xbf16, #tpu.memory_space<vmem>>, vector<16x16x8xbf16>,
    %c0_28 = arith.constant 0 : index
    %c1_29 = arith.constant 1 : index
    %c0_30 = arith.constant 0 : index
    %15 = vector.load %arg5[%c0_28, %c1_29, %c0_30] : memref<18x18x8xbf16, #tpu.memory_space<vmem>>, vector<16x16x8xbf16>
    %c0_31 = arith.constant 0 : index
    %c0_32 = arith.constant 0 : index
    %c8 = arith.constant 8 : index
    %16 = vector.load %arg6[%c0_31, %c0_32, %c8] : memref<16x16x128xbf16, #tpu.memory_space<vmem>>, vector<16x16x8xbf16>
    tpu.vector_store %arg6[%c0_31, %c0_32, %c8], %15 {strides = array<i32>} : memref<16x16x128xbf16, #tpu.memory_space<vmem>>, vector<16x16x8xbf16>,
    %c0_33 = arith.constant 0 : index
    %c2 = arith.constant 2 : index
    %c0_34 = arith.constant 0 : index
    %17 = vector.load %arg5[%c0_33, %c2, %c0_34] : memref<18x18x8xbf16, #tpu.memory_space<vmem>>, vector<16x16x8xbf16>
    %c0_35 = arith.constant 0 : index
    %c0_36 = arith.constant 0 : index
    %c16 = arith.constant 16 : index
    %18 = vector.load %arg6[%c0_35, %c0_36, %c16] : memref<16x16x128xbf16, #tpu.memory_space<vmem>>, vector<16x16x8xbf16>
    tpu.vector_store %arg6[%c0_35, %c0_36, %c16], %17 {strides = array<i32>} : memref<16x16x128xbf16, #tpu.memory_space<vmem>>, vector<16x16x8xbf16>,
    %c1_37 = arith.constant 1 : index
    %c0_38 = arith.constant 0 : index
    %c0_39 = arith.constant 0 : index
    %19 = vector.load %arg5[%c1_37, %c0_38, %c0_39] : memref<18x18x8xbf16, #tpu.memory_space<vmem>>, vector<16x16x8xbf16>
    %c0_40 = arith.constant 0 : index
    %c0_41 = arith.constant 0 : index
    %c24 = arith.constant 24 : index
    %20 = vector.load %arg6[%c0_40, %c0_41, %c24] : memref<16x16x128xbf16, #tpu.memory_space<vmem>>, vector<16x16x8xbf16>
    tpu.vector_store %arg6[%c0_40, %c0_41, %c24], %19 {strides = array<i32>} : memref<16x16x128xbf16, #tpu.memory_space<vmem>>, vector<16x16x8xbf16>,
    %c1_42 = arith.constant 1 : index
    %c1_43 = arith.constant 1 : index
    %c0_44 = arith.constant 0 : index
    %21 = vector.load %arg5[%c1_42, %c1_43, %c0_44] : memref<18x18x8xbf16, #tpu.memory_space<vmem>>, vector<16x16x8xbf16>
    %c0_45 = arith.constant 0 : index
    %c0_46 = arith.constant 0 : index
    %c32 = arith.constant 32 : index
    %22 = vector.load %arg6[%c0_45, %c0_46, %c32] : memref<16x16x128xbf16, #tpu.memory_space<vmem>>, vector<16x16x8xbf16>
    tpu.vector_store %arg6[%c0_45, %c0_46, %c32], %21 {strides = array<i32>} : memref<16x16x128xbf16, #tpu.memory_space<vmem>>, vector<16x16x8xbf16>,
    %c1_47 = arith.constant 1 : index
    %c2_48 = arith.constant 2 : index
    %c0_49 = arith.constant 0 : index
    %23 = vector.load %arg5[%c1_47, %c2_48, %c0_49] : memref<18x18x8xbf16, #tpu.memory_space<vmem>>, vector<16x16x8xbf16>
    %c0_50 = arith.constant 0 : index
    %c0_51 = arith.constant 0 : index
    %c40 = arith.constant 40 : index
    %24 = vector.load %arg6[%c0_50, %c0_51, %c40] : memref<16x16x128xbf16, #tpu.memory_space<vmem>>, vector<16x16x8xbf16>
    tpu.vector_store %arg6[%c0_50, %c0_51, %c40], %23 {strides = array<i32>} : memref<16x16x128xbf16, #tpu.memory_space<vmem>>, vector<16x16x8xbf16>,
    %c2_52 = arith.constant 2 : index
    %c0_53 = arith.constant 0 : index
    %c0_54 = arith.constant 0 : index
    %25 = vector.load %arg5[%c2_52, %c0_53, %c0_54] : memref<18x18x8xbf16, #tpu.memory_space<vmem>>, vector<16x16x8xbf16>
    %c0_55 = arith.constant 0 : index
    %c0_56 = arith.constant 0 : index
    %c48 = arith.constant 48 : index
    %26 = vector.load %arg6[%c0_55, %c0_56, %c48] : memref<16x16x128xbf16, #tpu.memory_space<vmem>>, vector<16x16x8xbf16>
    tpu.vector_store %arg6[%c0_55, %c0_56, %c48], %25 {strides = array<i32>} : memref<16x16x128xbf16, #tpu.memory_space<vmem>>, vector<16x16x8xbf16>,
    %c2_57 = arith.constant 2 : index
    %c1_58 = arith.constant 1 : index
    %c0_59 = arith.constant 0 : index
    %27 = vector.load %arg5[%c2_57, %c1_58, %c0_59] : memref<18x18x8xbf16, #tpu.memory_space<vmem>>, vector<16x16x8xbf16>
    %c0_60 = arith.constant 0 : index
    %c0_61 = arith.constant 0 : index
    %c56 = arith.constant 56 : index
    %28 = vector.load %arg6[%c0_60, %c0_61, %c56] : memref<16x16x128xbf16, #tpu.memory_space<vmem>>, vector<16x16x8xbf16>
    tpu.vector_store %arg6[%c0_60, %c0_61, %c56], %27 {strides = array<i32>} : memref<16x16x128xbf16, #tpu.memory_space<vmem>>, vector<16x16x8xbf16>,
    %c2_62 = arith.constant 2 : index
    %c2_63 = arith.constant 2 : index
    %c0_64 = arith.constant 0 : index
    %29 = vector.load %arg5[%c2_62, %c2_63, %c0_64] : memref<18x18x8xbf16, #tpu.memory_space<vmem>>, vector<16x16x8xbf16>
    %c0_65 = arith.constant 0 : index
    %c0_66 = arith.constant 0 : index
    %c64 = arith.constant 64 : index
    %30 = vector.load %arg6[%c0_65, %c0_66, %c64] : memref<16x16x128xbf16, #tpu.memory_space<vmem>>, vector<16x16x8xbf16>
    tpu.vector_store %arg6[%c0_65, %c0_66, %c64], %29 {strides = array<i32>} : memref<16x16x128xbf16, #tpu.memory_space<vmem>>, vector<16x16x8xbf16>,
    %cst_67 = arith.constant 0.000000e+00 : bf16
    %31 = vector.broadcast %cst_67 : bf16 to vector<16x16x56xbf16>
    %c0_68 = arith.constant 0 : index
    %c0_69 = arith.constant 0 : index
    %c72 = arith.constant 72 : index
    %32 = vector.load %arg6[%c0_68, %c0_69, %c72] : memref<16x16x128xbf16, #tpu.memory_space<vmem>>, vector<16x16x56xbf16>
    tpu.vector_store %arg6[%c0_68, %c0_69, %c72], %31 {strides = array<i32>} : memref<16x16x128xbf16, #tpu.memory_space<vmem>>, vector<16x16x56xbf16>,
    %c0_70 = arith.constant 0 : index
    %c0_71 = arith.constant 0 : index
    %c0_72 = arith.constant 0 : index
    %33 = vector.load %arg6[%c0_70, %c0_71, %c0_72] : memref<16x16x128xbf16, #tpu.memory_space<vmem>>, vector<16x16x128xbf16>
    %34 = vector.shape_cast %33 : vector<16x16x128xbf16> to vector<256x128xbf16>
    %c0_73 = arith.constant 0 : index
    %c0_74 = arith.constant 0 : index
    %35 = vector.load %arg2[%c0_73, %c0_74] : memref<128x128xbf16, #tpu.memory_space<vmem>>, vector<128x128xbf16>
    %cst_75 = arith.constant dense<0.000000e+00> : vector<256x128xf32>
    %36 = tpu.matmul %34, %35, %cst_75 {dimension_numbers = #tpu.dot_dimension_numbers<[1], [0], [0], [1], [0, 0, 1, 1], [], []>} : vector<256x128xbf16>, vector<128x128xbf16>, vector<256x128xf32> -> vector<256x128xf32>
    %cst_76 = arith.constant dense<0.000000e+00> : vector<128xf32>
    %37 = vector.multi_reduction <add>, %36, %cst_76 [0] : vector<256x128xf32> to vector<128xf32>
    %38 = vector.shape_cast %37 : vector<128xf32> to vector<1x128xf32>
    %c0_77 = arith.constant 0 : index
    %c0_78 = arith.constant 0 : index
    %c0_79 = arith.constant 0 : index
    %39 = vector.load %arg4[%c0_77, %c0_78, %c0_79] : memref<1x2x128xf32, #tpu.memory_space<vmem>>, vector<1x1x128xf32>
    %40 = vector.shape_cast %39 : vector<1x1x128xf32> to vector<1x128xf32>
    %41 = vector.shape_cast %38 : vector<1x128xf32> to vector<1x1x128xf32>
    tpu.vector_store %arg4[%c0_77, %c0_78, %c0_79], %41 {strides = array<i32>} : memref<1x2x128xf32, #tpu.memory_space<vmem>>, vector<1x1x128xf32>,
    %42 = arith.mulf %36, %36 : vector<256x128xf32>
    %cst_80 = arith.constant dense<0.000000e+00> : vector<128xf32>
    %43 = vector.multi_reduction <add>, %42, %cst_80 [0] : vector<256x128xf32> to vector<128xf32>
    %44 = vector.shape_cast %43 : vector<128xf32> to vector<1x128xf32>
    %c0_81 = arith.constant 0 : index
    %c1_82 = arith.constant 1 : index
    %c0_83 = arith.constant 0 : index
    %45 = vector.load %arg4[%c0_81, %c1_82, %c0_83] : memref<1x2x128xf32, #tpu.memory_space<vmem>>, vector<1x1x128xf32>
    %46 = vector.shape_cast %45 : vector<1x1x128xf32> to vector<1x128xf32>
    %47 = vector.shape_cast %44 : vector<1x128xf32> to vector<1x1x128xf32>
    tpu.vector_store %arg4[%c0_81, %c1_82, %c0_83], %47 {strides = array<i32>} : memref<1x2x128xf32, #tpu.memory_space<vmem>>, vector<1x1x128xf32>,
    %48 = tpu.transpose %36, [1, 0] : vector<256x128xf32> -> vector<128x256xf32>
    %49 = vector.extract_strided_slice %48 {offsets = [0, 0], sizes = [8, 256], strides = [1, 1]} : vector<128x256xf32> to vector<8x256xf32>
    %50 = arith.truncf %49 : vector<8x256xf32> to vector<8x256xbf16>
    %51 = vector.shape_cast %50 : vector<8x256xbf16> to vector<1x8x256xbf16>
    %c0_84 = arith.constant 0 : index
    %c0_85 = arith.constant 0 : index
    %c0_86 = arith.constant 0 : index
    %52 = vector.load %arg3[%c0_84, %c0_85, %c0_86] : memref<1x8x256xbf16, #tpu.memory_space<vmem>>, vector<1x8x256xbf16>
    tpu.vector_store %arg3[%c0_84, %c0_85, %c0_86], %51 {strides = array<i32>} : memref<1x8x256xbf16, #tpu.memory_space<vmem>>, vector<1x8x256xbf16>,
    return
  }
  func.func @transform_0(%arg0: i32) -> (i32, i32, i32, i32) {
    %c0_i32 = arith.constant 0 : i32
    %c0_i32_0 = arith.constant 0 : i32
    %c0_i32_1 = arith.constant 0 : i32
    %c0_i32_2 = arith.constant 0 : i32
    return %arg0, %c0_i32, %c0_i32_0, %c0_i32_1 : i32, i32, i32, i32
  }
  func.func @transform_1(%arg0: i32) -> (i32, i32) {
    %c0_i32 = arith.constant 0 : i32
    %c0_i32_0 = arith.constant 0 : i32
    %c0_i32_1 = arith.constant 0 : i32
    return %c0_i32, %c0_i32_0 : i32, i32
  }
  func.func @transform_2(%arg0: i32) -> (i32, i32, i32) {
    %c0_i32 = arith.constant 0 : i32
    %c0_i32_0 = arith.constant 0 : i32
    %c0_i32_1 = arith.constant 0 : i32
    return %arg0, %c0_i32, %c0_i32_0 : i32, i32, i32
  }
  func.func @transform_3(%arg0: i32) -> (i32, i32, i32) {
    %c0_i32 = arith.constant 0 : i32
    %c0_i32_0 = arith.constant 0 : i32
    %c0_i32_1 = arith.constant 0 : i32
    return %arg0, %c0_i32, %c0_i32_0 : i32, i32, i32
  }
}

</mosaic_0001>

<llo_original>
// kernel: tpu_custom_call.1
$region0: #{tpu_custom_call.1}
  #allocation0 [shape = 'u32[]', space=smem, size = 0x4, offset = 0x4, fixed_abs, tag = 'smem constant byte address 0x4 - core index']
  #allocation1 [shape = 'u32[144,128]{1,0:T(1,128)}', space=vmem, size = 0x12000, scoped, tag = 'internal scratch']
  #allocation2 [shape = 'bf16[18,18,8]{2,1,0:T(8,128)(2,1)}', space=vmem, size = 0x1b000, scoped, tag = 'scratch operand']
  #allocation3 [shape = 'bf16[16,16,128]{2,1,0:T(8,128)(2,1)}', space=vmem, size = 0x10000, scoped, tag = 'scratch operand']
  %s0 = inlined_call_operand.vmem [shape: bf16[2,16,16,4], index: 0, kind: input, shape index: {}]
  %s1 = inlined_call_operand.vmem [shape: bf16[128,128], index: 1, kind: input, shape index: {}]
  %s2 = inlined_call_operand.hbm [shape: bf16[2,8,256], index: 2, kind: output, shape index: {0}]
  %s3 = inlined_call_operand.hbm [shape: f32[2,2,128], index: 3, kind: output, shape index: {1}]
  %4 = xla_tuple %s2, %s3
  %s5 = sld [smem:[#allocation0]]
  $region49: #{tpu_custom_call.1} parent=0
    _
  %s7 = ssub.s32 1, %s5
  %s8 = scalar_select 0, %s7, %s5
  $region1: #{tpu_custom_call.1} parent=0
    #allocation4 [shape = 'u8[8192]{0}', space=vmem, size = 0x2000, scoped, tag = 'output window, operand 0']
    #allocation5 [shape = 's32[2]{0}', space=sflag, size = 0x8, scoped, tag = 'scoped memory for tpu_custom_call.1']
    #allocation6 [shape = 'u8[2048]{0}', space=vmem, size = 0x800, scoped, tag = 'output window, operand 1']
    #allocation7 [shape = 's32[2]{0}', space=sflag, size = 0x8, scoped, tag = 'scoped memory for tpu_custom_call.1']
    %9 = vsyncpa [#allocation5], 0
    %s10 = scalar_lea.sflag [#allocation5], 1
    %11 = vsyncpa %s10, 0
    %12 = vsyncpa [#allocation7], 0
    %s13 = scalar_lea.sflag [#allocation7], 1
    %14 = vsyncpa %s13, 0
    loop: start=0, step=1, limit=4
    $region2: #{tpu_custom_call.1} parent=1 // loop_pre_header
      _
    $region3: #{tpu_custom_call.1} parent=1 // loop_header
      %s16 = sphi 0, %s20
      %p17 = scmp.ge.s32.totalorder %s16, 4
      %s26 = sphi 0, %s28
      %s29 = sphi 0, %s26
      %s30 = sphi 0, %s29
      %s46 = sphi 0, %s30
      %s50 = sphi 0, %s50
      %s52 = sphi 0, %s50
      %s53 = sphi 0, %s52
      %s67 = sphi 0, %s53
      %s73 = sphi 0, %s75
      %s76 = sphi 0, %s73
      %s77 = sphi 0, %s76
      %s93 = sphi 0, %s77
      %s99 = sphi 0, %s101
      %s102 = sphi 0, %s99
      %s103 = sphi 0, %s102
      %s119 = sphi 0, %s103
    $region4: #{tpu_custom_call.1} parent=1 // loop_header_branch
      %19 = sbr.rel (%p17) target = $region8
    $region5: #{tpu_custom_call.1} parent=1 // loop_body
      %s21 = ssub.s32 %s16, 1
      %s22 = ssub.s32 %s16, 2
      %s23 = sadd.s32 %s16, 1
      %s24 = ssub.s32 %s16, %s23
      %p25 = scmp.eq.s32.totalorder %s24, 0
      %s27 = sadd.s32 %s26, 1
      %s28 = scalar_select %p25, %s26, %s27
      %p31 = pneg %p25
      %p32 = scmp.eq.s32.totalorder %s16, 1
      %p33 = por %p31, %p32
      %p34 = scmp.ne.s32.totalorder %s26, %s29
      %p35 = scmp.eq.s32.totalorder %s16, 0
      %p36 = por %p34, %p35
      %p37 = scmp.ne.s32.totalorder %s26, %s29
      %p38 = scmp.eq.s32.totalorder %s21, 1
      %p39 = por %p37, %p38
      %p40 = scmp.ne.s32.totalorder %s29, %s30
      %p41 = scmp.eq.s32.totalorder %s21, 0
      %p42 = por %p40, %p41
      %p43 = scmp.ne.s32.totalorder %s29, %s30
      %p44 = scmp.eq.s32.totalorder %s22, 1
      %p45 = por %p43, %p44
      %p47 = scmp.ne.s32.totalorder %s30, %s46
      %p48 = scmp.eq.s32.totalorder %s22, 0
      %p49 = por %p47, %p48
      %s51 = sadd.s32 %s50, 1
      %p54 = scmp.eq.s32.totalorder %s16, 1
      %p55 = scmp.ne.s32.totalorder %s50, %s52
      %p56 = scmp.eq.s32.totalorder %s16, 0
      %p57 = por %p55, %p56
      %p58 = scmp.ne.s32.totalorder %s50, %s52
      %p59 = scmp.eq.s32.totalorder %s21, 1
      %p60 = por %p58, %p59
      %p61 = scmp.ne.s32.totalorder %s52, %s53
      %p62 = scmp.eq.s32.totalorder %s21, 0
      %p63 = por %p61, %p62
      %p64 = scmp.ne.s32.totalorder %s52, %s53
      %p65 = scmp.eq.s32.totalorder %s22, 1
      %p66 = por %p64, %p65
      %p68 = scmp.ne.s32.totalorder %s53, %s67
      %p69 = scmp.eq.s32.totalorder %s22, 0
      %p70 = por %p68, %p69
      %s71 = ssub.s32 %s16, %s23
      %p72 = scmp.eq.s32.totalorder %s71, 0
      %s74 = sadd.s32 %s73, 1
      %s75 = scalar_select %p72, %s73, %s74
      %p78 = pneg %p72
      %p79 = scmp.eq.s32.totalorder %s16, 1
      %p80 = por %p78, %p79
      %p81 = scmp.ne.s32.totalorder %s73, %s76
      %p82 = scmp.eq.s32.totalorder %s16, 0
      %p83 = por %p81, %p82
      %p84 = scmp.ne.s32.totalorder %s73, %s76
      %p85 = scmp.eq.s32.totalorder %s21, 1
      %p86 = por %p84, %p85
      %p87 = scmp.ne.s32.totalorder %s76, %s77
      %p88 = scmp.eq.s32.totalorder %s21, 0
      %p89 = por %p87, %p88
      %p90 = scmp.ne.s32.totalorder %s76, %s77
      %p91 = scmp.eq.s32.totalorder %s22, 1
      %p92 = por %p90, %p91
      %p94 = scmp.ne.s32.totalorder %s77, %s93
      %p95 = scmp.eq.s32.totalorder %s22, 0
      %p96 = por %p94, %p95
      %s97 = ssub.s32 %s16, %s23
      %p98 = scmp.eq.s32.totalorder %s97, 0
      %s100 = sadd.s32 %s99, 1
      %s101 = scalar_select %p98, %s99, %s100
      %p104 = pneg %p98
      %p105 = scmp.eq.s32.totalorder %s16, 1
      %p106 = por %p104, %p105
      %p107 = scmp.ne.s32.totalorder %s99, %s102
      %p108 = scmp.eq.s32.totalorder %s16, 0
      %p109 = por %p107, %p108
      %p110 = scmp.ne.s32.totalorder %s99, %s102
      %p111 = scmp.eq.s32.totalorder %s21, 1
      %p112 = por %p110, %p111
      %p113 = scmp.ne.s32.totalorder %s102, %s103
      %p114 = scmp.eq.s32.totalorder %s21, 0
      %p115 = por %p113, %p114
      %p116 = scmp.ne.s32.totalorder %s102, %s103
      %p117 = scmp.eq.s32.totalorder %s22, 1
      %p118 = por %p116, %p117
      %p120 = scmp.ne.s32.totalorder %s103, %s119
      %p121 = scmp.eq.s32.totalorder %s22, 0
      %p122 = por %p120, %p121
      %p123 = scmp.le.s32.totalorder 1, %s16
      %p124 = scmp.lt.s32.totalorder %s16, 3
      %p125 = pnand %p123, %p124
      %p126 = pneg %p125
      // Predicated region
      $region9: #{tpu_custom_call.1} parent=5 // pred_check
        _
      $region10: #{tpu_custom_call.1} parent=5 // pred_check_branch
        %128 = sbr.rel (%p125) target = $region12
      $region11: #{tpu_custom_call.1} parent=5 // pred_region
        %s129 = ssub.s32 %s16, 1
        // Predicated region
        $region13: #{tpu_custom_call.1} parent=11 // pred_check
          %p130 = pneg %p63
        $region14: #{tpu_custom_call.1} parent=11 // pred_check_branch
          %132 = sbr.rel (%p130) target = $region16
        $region15: #{tpu_custom_call.1} parent=11 // pred_region
          _
        $region16: #{tpu_custom_call.1} parent=11 // pred_fallthru
          _
      $region12: #{tpu_custom_call.1} parent=5 // pred_fallthru
        _
      %p133 = scmp.lt.s32.totalorder %s16, 2
      // Predicated region
      $region17: #{tpu_custom_call.1} parent=5 // pred_check
        %p134 = pneg %p133
      $region18: #{tpu_custom_call.1} parent=5 // pred_check_branch
        %136 = sbr.rel (%p134) target = $region20
      $region19: #{tpu_custom_call.1} parent=5 // pred_region
        // Predicated region
        $region21: #{tpu_custom_call.1} parent=19 // pred_check
          %p137 = pneg %p36
        $region22: #{tpu_custom_call.1} parent=19 // pred_check_branch
          %139 = sbr.rel (%p137) target = $region24
        $region23: #{tpu_custom_call.1} parent=19 // pred_region
          %p140 = scmp.lt.s32.totalorder %s16, 1
          %s141 = scalar_select %p140, %s16, 1
          %s142 = smul.addr %s141, 32
          %s143 = smul.addr %s142, 4
          %s144 = scalar_lea.vmem %s0, %s143
        $region24: #{tpu_custom_call.1} parent=19 // pred_fallthru
          _
      $region20: #{tpu_custom_call.1} parent=5 // pred_fallthru
        _
      %p145 = scmp.le.s32.totalorder 1, %s16
      %p146 = scmp.lt.s32.totalorder %s16, 3
      %p147 = pnand %p145, %p146
      %p148 = pneg %p147
      // Predicated region
      $region25: #{tpu_custom_call.1} parent=5 // pred_check
        _
      $region26: #{tpu_custom_call.1} parent=5 // pred_check_branch
        %150 = sbr.rel (%p147) target = $region28
      $region27: #{tpu_custom_call.1} parent=5 // pred_region
        %s151 = ssub.s32 %s16, 1
        %p152 = scmp.lt.s32.totalorder %s21, 1
        %s153 = scalar_select %p152, %s21, 1
        %s154 = smul.addr %s153, 32
        %s155 = smul.addr %s154, 4
        %s156 = scalar_lea.vmem %s0, %s155
        %p157 = pneg %p42
        %p158 = pneg %p39
        %p159 = pneg %p63
        %p160 = pneg %p60
        %p161 = pneg %p89
        %p162 = pneg %p86
        %s163 = sand.u32 %s76, 1
        %s164 = scalar_lea.sflag [#allocation5], %s163
        %s165 = sand.u32 %s76, 1
        %s166 = smul.addr %s165, 8
        %s167 = scalar_lea.vmem [#allocation4], %s166
        %p168 = pneg %p115
        %p169 = pneg %p112
        %s170 = sand.u32 %s102, 1
        %s171 = scalar_lea.sflag [#allocation7], %s170
        %s172 = sand.u32 %s102, 1
        %s173 = smul.addr %s172, 2
        %s174 = scalar_lea.vmem [#allocation6], %s173
        %p175 = scmp.lt.s32.totalorder %s21, 1
        %s176 = scalar_select %p175, %s21, 1
        %s177 = smul.addr %s176, 32
        %s178 = smul.addr %s177, 4
        %s179 = scalar_lea.vmem %s0, %s178
        %vm181 = vcmask 60416
        %182 = vst.msk [vmem:[#allocation2] sm:$0xf] %vm181, 0
        %183 = vst.msk [vmem:[#allocation2 + $0x4] sm:$0xf] %vm181, 0
        %vm184 = vcmask 57344
        %185 = vst.msk [vmem:[#allocation2 + $0x8] sm:$0x1] %vm184, 0
        %s186 = scalar_lea.vmem [#allocation2], 204
        %187 = vst.msk [vmem:[%s186] sm:$0xf] %vm181, 0
        %188 = vst.msk [vmem:[%s186 + $0x4] sm:$0xf] %vm181, 0
        %189 = vst.msk [vmem:[%s186 + $0x8] sm:$0x1] %vm184, 0
        %s190 = scalar_lea.vmem [#allocation2], 12
        %vm191 = vcmask 57344
        %vm192 = vsmask.f32 256
        %vm193 = vmand %vm191, %vm192
        %v194 = vld [vmem:[%s190] sm:$0x1]
        %v195 = vsel %vm193, 0, %v194
        %196 = vst [vmem:[%s190] sm:$0x1] %v195
        %v197 = vld [vmem:[%s190 + $0xc] sm:$0x1]
        %v198 = vsel %vm193, 0, %v197
        %199 = vst [vmem:[%s190 + $0xc] sm:$0x1] %v198
        %v200 = vld [vmem:[%s190 + $0x18] sm:$0x1]
        %v201 = vsel %vm193, 0, %v200
        %202 = vst [vmem:[%s190 + $0x18] sm:$0x1] %v201
        %v203 = vld [vmem:[%s190 + $0x24] sm:$0x1]
        %v204 = vsel %vm193, 0, %v203
        %205 = vst [vmem:[%s190 + $0x24] sm:$0x1] %v204
        %v206 = vld [vmem:[%s190 + $0x30] sm:$0x1]
        %v207 = vsel %vm193, 0, %v206
        %208 = vst [vmem:[%s190 + $0x30] sm:$0x1] %v207
        %v209 = vld [vmem:[%s190 + $0x3c] sm:$0x1]
        %v210 = vsel %vm193, 0, %v209
        %211 = vst [vmem:[%s190 + $0x3c] sm:$0x1] %v210
        %v212 = vld [vmem:[%s190 + $0x48] sm:$0x1]
        %v213 = vsel %vm193, 0, %v212
        %214 = vst [vmem:[%s190 + $0x48] sm:$0x1] %v213
        %v215 = vld [vmem:[%s190 + $0x54] sm:$0x1]
        %v216 = vsel %vm193, 0, %v215
        %217 = vst [vmem:[%s190 + $0x54] sm:$0x1] %v216
        %v218 = vld [vmem:[%s190 + $0x60] sm:$0x1]
        %v219 = vsel %vm193, 0, %v218
        %220 = vst [vmem:[%s190 + $0x60] sm:$0x1] %v219
        %v221 = vld [vmem:[%s190 + $0x6c] sm:$0x1]
        %v222 = vsel %vm193, 0, %v221
        %223 = vst [vmem:[%s190 + $0x6c] sm:$0x1] %v222
        %v224 = vld [vmem:[%s190 + $0x78] sm:$0x1]
        %v225 = vsel %vm193, 0, %v224
        %226 = vst [vmem:[%s190 + $0x78] sm:$0x1] %v225
        %v227 = vld [vmem:[%s190 + $0x84] sm:$0x1]
        %v228 = vsel %vm193, 0, %v227
        %229 = vst [vmem:[%s190 + $0x84] sm:$0x1] %v228
        %v230 = vld [vmem:[%s190 + $0x90] sm:$0x1]
        %v231 = vsel %vm193, 0, %v230
        %232 = vst [vmem:[%s190 + $0x90] sm:$0x1] %v231
        %v233 = vld [vmem:[%s190 + $0x9c] sm:$0x1]
        %v234 = vsel %vm193, 0, %v233
        %235 = vst [vmem:[%s190 + $0x9c] sm:$0x1] %v234
        %v236 = vld [vmem:[%s190 + $0xa8] sm:$0x1]
        %v237 = vsel %vm193, 0, %v236
        %238 = vst [vmem:[%s190 + $0xa8] sm:$0x1] %v237
        %v239 = vld [vmem:[%s190 + $0xb4] sm:$0x1]
        %v240 = vsel %vm193, 0, %v239
        %241 = vst [vmem:[%s190 + $0xb4] sm:$0x1] %v240
        %vm242 = vsmask.f32 7938
        %vm243 = vmand %vm191, %vm242
        %v244 = vld [vmem:[%s190 + $0x8] sm:$0x1]
        %v245 = vsel %vm243, 0, %v244
        %246 = vst [vmem:[%s190 + $0x8] sm:$0x1] %v245
        %v247 = vld [vmem:[%s190 + $0x14] sm:$0x1]
        %v248 = vsel %vm243, 0, %v247
        %249 = vst [vmem:[%s190 + $0x14] sm:$0x1] %v248
        %v250 = vld [vmem:[%s190 + $0x20] sm:$0x1]
        %v251 = vsel %vm243, 0, %v250
        %252 = vst [vmem:[%s190 + $0x20] sm:$0x1] %v251
        %v253 = vld [vmem:[%s190 + $0x2c] sm:$0x1]
        %v254 = vsel %vm243, 0, %v253
        %255 = vst [vmem:[%s190 + $0x2c] sm:$0x1] %v254
        %v256 = vld [vmem:[%s190 + $0x38] sm:$0x1]
        %v257 = vsel %vm243, 0, %v256
        %258 = vst [vmem:[%s190 + $0x38] sm:$0x1] %v257
        %v259 = vld [vmem:[%s190 + $0x44] sm:$0x1]
        %v260 = vsel %vm243, 0, %v259
        %261 = vst [vmem:[%s190 + $0x44] sm:$0x1] %v260
        %v262 = vld [vmem:[%s190 + $0x50] sm:$0x1]
        %v263 = vsel %vm243, 0, %v262
        %264 = vst [vmem:[%s190 + $0x50] sm:$0x1] %v263
        %v265 = vld [vmem:[%s190 + $0x5c] sm:$0x1]
        %v266 = vsel %vm243, 0, %v265
        %267 = vst [vmem:[%s190 + $0x5c] sm:$0x1] %v266
        %v268 = vld [vmem:[%s190 + $0x68] sm:$0x1]
        %v269 = vsel %vm243, 0, %v268
        %270 = vst [vmem:[%s190 + $0x68] sm:$0x1] %v269
        %v271 = vld [vmem:[%s190 + $0x74] sm:$0x1]
        %v272 = vsel %vm243, 0, %v271
        %273 = vst [vmem:[%s190 + $0x74] sm:$0x1] %v272
        %v274 = vld [vmem:[%s190 + $0x80] sm:$0x1]
        %v275 = vsel %vm243, 0, %v274
        %276 = vst [vmem:[%s190 + $0x80] sm:$0x1] %v275
        %v277 = vld [vmem:[%s190 + $0x8c] sm:$0x1]
        %v278 = vsel %vm243, 0, %v277
        %279 = vst [vmem:[%s190 + $0x8c] sm:$0x1] %v278
        %v280 = vld [vmem:[%s190 + $0x98] sm:$0x1]
        %v281 = vsel %vm243, 0, %v280
        %282 = vst [vmem:[%s190 + $0x98] sm:$0x1] %v281
        %v283 = vld [vmem:[%s190 + $0xa4] sm:$0x1]
        %v284 = vsel %vm243, 0, %v283
        %285 = vst [vmem:[%s190 + $0xa4] sm:$0x1] %v284
        %v286 = vld [vmem:[%s190 + $0xb0] sm:$0x1]
        %v287 = vsel %vm243, 0, %v286
        %288 = vst [vmem:[%s190 + $0xb0] sm:$0x1] %v287
        %v289 = vld [vmem:[%s190 + $0xbc] sm:$0x1]
        %v290 = vsel %vm243, 0, %v289
        %291 = vst [vmem:[%s190 + $0xbc] sm:$0x1] %v290
        %vm292 = vcmask 60448
        %vm293 = vmand %vm292, %vm242
        %v294 = vld [vmem:[%s190] sm:$0xf]
        %v295 = vsel %vm293, 0, %v294
        %296 = vst [vmem:[%s190] sm:$0xf] %v295
        %vm297 = vcmask 60448
        %298 = vst.msk [vmem:[%s190 + $0x4] sm:$0xf] %vm297, 0
        %vm299 = vcmask 57376
        %vm300 = vmand %vm299, %vm192
        %v301 = vld [vmem:[%s190 + $0x8] sm:$0x1]
        %v302 = vsel %vm300, 0, %v301
        %303 = vst [vmem:[%s190 + $0x8] sm:$0x1] %v302
        %v304 = vld [vmem:[%s190 + $0xc] sm:$0xf]
        %v305 = vsel %vm293, 0, %v304
        %306 = vst [vmem:[%s190 + $0xc] sm:$0xf] %v305
        %307 = vst.msk [vmem:[%s190 + $0x10] sm:$0xf] %vm297, 0
        %v308 = vld [vmem:[%s190 + $0x14] sm:$0x1]
        %v309 = vsel %vm300, 0, %v308
        %310 = vst [vmem:[%s190 + $0x14] sm:$0x1] %v309
        %v311 = vld [vmem:[%s190 + $0x18] sm:$0xf]
        %v312 = vsel %vm293, 0, %v311
        %313 = vst [vmem:[%s190 + $0x18] sm:$0xf] %v312
        %314 = vst.msk [vmem:[%s190 + $0x1c] sm:$0xf] %vm297, 0
        %v315 = vld [vmem:[%s190 + $0x20] sm:$0x1]
        %v316 = vsel %vm300, 0, %v315
        %317 = vst [vmem:[%s190 + $0x20] sm:$0x1] %v316
        %v318 = vld [vmem:[%s190 + $0x24] sm:$0xf]
        %v319 = vsel %vm293, 0, %v318
        %320 = vst [vmem:[%s190 + $0x24] sm:$0xf] %v319
        %321 = vst.msk [vmem:[%s190 + $0x28] sm:$0xf] %vm297, 0
        %v322 = vld [vmem:[%s190 + $0x2c] sm:$0x1]
        %v323 = vsel %vm300, 0, %v322
        %324 = vst [vmem:[%s190 + $0x2c] sm:$0x1] %v323
        %v325 = vld [vmem:[%s190 + $0x30] sm:$0xf]
        %v326 = vsel %vm293, 0, %v325
        %327 = vst [vmem:[%s190 + $0x30] sm:$0xf] %v326
        %328 = vst.msk [vmem:[%s190 + $0x34] sm:$0xf] %vm297, 0
        %v329 = vld [vmem:[%s190 + $0x38] sm:$0x1]
        %v330 = vsel %vm300, 0, %v329
        %331 = vst [vmem:[%s190 + $0x38] sm:$0x1] %v330
        %v332 = vld [vmem:[%s190 + $0x3c] sm:$0xf]
        %v333 = vsel %vm293, 0, %v332
        %334 = vst [vmem:[%s190 + $0x3c] sm:$0xf] %v333
        %335 = vst.msk [vmem:[%s190 + $0x40] sm:$0xf] %vm297, 0
        %v336 = vld [vmem:[%s190 + $0x44] sm:$0x1]
        %v337 = vsel %vm300, 0, %v336
        %338 = vst [vmem:[%s190 + $0x44] sm:$0x1] %v337
        %v339 = vld [vmem:[%s190 + $0x48] sm:$0xf]
        %v340 = vsel %vm293, 0, %v339
        %341 = vst [vmem:[%s190 + $0x48] sm:$0xf] %v340
        %342 = vst.msk [vmem:[%s190 + $0x4c] sm:$0xf] %vm297, 0
        %v343 = vld [vmem:[%s190 + $0x50] sm:$0x1]
        %v344 = vsel %vm300, 0, %v343
        %345 = vst [vmem:[%s190 + $0x50] sm:$0x1] %v344
        %v346 = vld [vmem:[%s190 + $0x54] sm:$0xf]
        %v347 = vsel %vm293, 0, %v346
        %348 = vst [vmem:[%s190 + $0x54] sm:$0xf] %v347
        %349 = vst.msk [vmem:[%s190 + $0x58] sm:$0xf] %vm297, 0
        %v350 = vld [vmem:[%s190 + $0x5c] sm:$0x1]
        %v351 = vsel %vm300, 0, %v350
        %352 = vst [vmem:[%s190 + $0x5c] sm:$0x1] %v351
        %v353 = vld [vmem:[%s190 + $0x60] sm:$0xf]
        %v354 = vsel %vm293, 0, %v353
        %355 = vst [vmem:[%s190 + $0x60] sm:$0xf] %v354
        %356 = vst.msk [vmem:[%s190 + $0x64] sm:$0xf] %vm297, 0
        %v357 = vld [vmem:[%s190 + $0x68] sm:$0x1]
        %v358 = vsel %vm300, 0, %v357
        %359 = vst [vmem:[%s190 + $0x68] sm:$0x1] %v358
        %v360 = vld [vmem:[%s190 + $0x6c] sm:$0xf]
        %v361 = vsel %vm293, 0, %v360
        %362 = vst [vmem:[%s190 + $0x6c] sm:$0xf] %v361
        %363 = vst.msk [vmem:[%s190 + $0x70] sm:$0xf] %vm297, 0
        %v364 = vld [vmem:[%s190 + $0x74] sm:$0x1]
        %v365 = vsel %vm300, 0, %v364
        %366 = vst [vmem:[%s190 + $0x74] sm:$0x1] %v365
        %v367 = vld [vmem:[%s190 + $0x78] sm:$0xf]
        %v368 = vsel %vm293, 0, %v367
        %369 = vst [vmem:[%s190 + $0x78] sm:$0xf] %v368
        %370 = vst.msk [vmem:[%s190 + $0x7c] sm:$0xf] %vm297, 0
        %v371 = vld [vmem:[%s190 + $0x80] sm:$0x1]
        %v372 = vsel %vm300, 0, %v371
        %373 = vst [vmem:[%s190 + $0x80] sm:$0x1] %v372
        %v374 = vld [vmem:[%s190 + $0x84] sm:$0xf]
        %v375 = vsel %vm293, 0, %v374
        %376 = vst [vmem:[%s190 + $0x84] sm:$0xf] %v375
        %377 = vst.msk [vmem:[%s190 + $0x88] sm:$0xf] %vm297, 0
        %v378 = vld [vmem:[%s190 + $0x8c] sm:$0x1]
        %v379 = vsel %vm300, 0, %v378
        %380 = vst [vmem:[%s190 + $0x8c] sm:$0x1] %v379
        %v381 = vld [vmem:[%s190 + $0x90] sm:$0xf]
        %v382 = vsel %vm293, 0, %v381
        %383 = vst [vmem:[%s190 + $0x90] sm:$0xf] %v382
        %384 = vst.msk [vmem:[%s190 + $0x94] sm:$0xf] %vm297, 0
        %v385 = vld [vmem:[%s190 + $0x98] sm:$0x1]
        %v386 = vsel %vm300, 0, %v385
        %387 = vst [vmem:[%s190 + $0x98] sm:$0x1] %v386
        %v388 = vld [vmem:[%s190 + $0x9c] sm:$0xf]
        %v389 = vsel %vm293, 0, %v388
        %390 = vst [vmem:[%s190 + $0x9c] sm:$0xf] %v389
        %391 = vst.msk [vmem:[%s190 + $0xa0] sm:$0xf] %vm297, 0
        %v392 = vld [vmem:[%s190 + $0xa4] sm:$0x1]
        %v393 = vsel %vm300, 0, %v392
        %394 = vst [vmem:[%s190 + $0xa4] sm:$0x1] %v393
        %v395 = vld [vmem:[%s190 + $0xa8] sm:$0xf]
        %v396 = vsel %vm293, 0, %v395
        %397 = vst [vmem:[%s190 + $0xa8] sm:$0xf] %v396
        %398 = vst.msk [vmem:[%s190 + $0xac] sm:$0xf] %vm297, 0
        %v399 = vld [vmem:[%s190 + $0xb0] sm:$0x1]
        %v400 = vsel %vm300, 0, %v399
        %401 = vst [vmem:[%s190 + $0xb0] sm:$0x1] %v400
        %v402 = vld [vmem:[%s190 + $0xb4] sm:$0xf]
        %v403 = vsel %vm293, 0, %v402
        %404 = vst [vmem:[%s190 + $0xb4] sm:$0xf] %v403
        %405 = vst.msk [vmem:[%s190 + $0xb8] sm:$0xf] %vm297, 0
        %v406 = vld [vmem:[%s190 + $0xbc] sm:$0x1]
        %v407 = vsel %vm300, 0, %v406
        %408 = vst [vmem:[%s190 + $0xbc] sm:$0x1] %v407
        %v409 = vld [vmem:[%s179] sm:$0xf]
        %v410 = vld [vmem:[%s179 + $0x4] sm:$0xf]
        %v411 = vld [vmem:[%s179 + $0x8] sm:$0xf]
        %v412 = vld [vmem:[%s179 + $0xc] sm:$0xf]
        %v413 = vld [vmem:[%s179 + $0x10] sm:$0xf]
        %v414 = vld [vmem:[%s179 + $0x14] sm:$0xf]
        %v415 = vld [vmem:[%s179 + $0x18] sm:$0xf]
        %v416 = vld [vmem:[%s179 + $0x1c] sm:$0xf]
        %v417 = vld [vmem:[%s179 + $0x20] sm:$0xf]
        %v418 = vld [vmem:[%s179 + $0x24] sm:$0xf]
        %v419 = vld [vmem:[%s179 + $0x28] sm:$0xf]
        %v420 = vld [vmem:[%s179 + $0x2c] sm:$0xf]
        %v421 = vld [vmem:[%s179 + $0x30] sm:$0xf]
        %v422 = vld [vmem:[%s179 + $0x34] sm:$0xf]
        %v423 = vld [vmem:[%s179 + $0x38] sm:$0xf]
        %v424 = vld [vmem:[%s179 + $0x3c] sm:$0xf]
        %v425 = vld [vmem:[%s179 + $0x40] sm:$0xf]
        %v426 = vld [vmem:[%s179 + $0x44] sm:$0xf]
        %v427 = vld [vmem:[%s179 + $0x48] sm:$0xf]
        %v428 = vld [vmem:[%s179 + $0x4c] sm:$0xf]
        %v429 = vld [vmem:[%s179 + $0x50] sm:$0xf]
        %v430 = vld [vmem:[%s179 + $0x54] sm:$0xf]
        %v431 = vld [vmem:[%s179 + $0x58] sm:$0xf]
        %v432 = vld [vmem:[%s179 + $0x5c] sm:$0xf]
        %v433 = vld [vmem:[%s179 + $0x60] sm:$0xf]
        %v434 = vld [vmem:[%s179 + $0x64] sm:$0xf]
        %v435 = vld [vmem:[%s179 + $0x68] sm:$0xf]
        %v436 = vld [vmem:[%s179 + $0x6c] sm:$0xf]
        %v437 = vld [vmem:[%s179 + $0x70] sm:$0xf]
        %v438 = vld [vmem:[%s179 + $0x74] sm:$0xf]
        %v439 = vld [vmem:[%s179 + $0x78] sm:$0xf]
        %v440 = vld [vmem:[%s179 + $0x7c] sm:$0xf]
        %vm441 = vsmask.f32 4368
        %vm442 = vmor %vm192, %vm441
        %v444 = vshrl.u32 %v409, 16
        %v446 = vrot.slane %v444, 7
        %v447 = vshll.u32 %v409, 16
        %v449 = vor.u32 %v446, %v447
        %v450 = vrot.slane %v446, 4
        %v452 = vshrl.u32 %v410, 16
        %v454 = vrot.slane %v452, 7
        %v455 = vshll.u32 %v410, 16
        %v457 = vor.u32 %v454, %v455
        %v458 = vsel %vm442, %v450, %v457
        %v459 = vrot.slane %v454, 4
        %v461 = vshrl.u32 %v411, 16
        %v463 = vrot.slane %v461, 7
        %v464 = vshll.u32 %v411, 16
        %v466 = vor.u32 %v463, %v464
        %v467 = vrot.slane %v463, 4
        %v469 = vshrl.u32 %v412, 16
        %v471 = vrot.slane %v469, 7
        %v472 = vshll.u32 %v412, 16
        %v474 = vor.u32 %v471, %v472
        %v475 = vsel %vm442, %v467, %v474
        %v476 = vrot.slane %v471, 4
        %v478 = vshrl.u32 %v413, 16
        %v480 = vrot.slane %v478, 7
        %v481 = vshll.u32 %v413, 16
        %v483 = vor.u32 %v480, %v481
        %v484 = vrot.slane %v480, 4
        %v486 = vshrl.u32 %v414, 16
        %v488 = vrot.slane %v486, 7
        %v489 = vshll.u32 %v414, 16
        %v491 = vor.u32 %v488, %v489
        %v492 = vsel %vm442, %v484, %v491
        %v493 = vrot.slane %v488, 4
        %v495 = vshrl.u32 %v415, 16
        %v497 = vrot.slane %v495, 7
        %v498 = vshll.u32 %v415, 16
        %v500 = vor.u32 %v497, %v498
        %v501 = vrot.slane %v497, 4
        %v503 = vshrl.u32 %v416, 16
        %v505 = vrot.slane %v503, 7
        %v506 = vshll.u32 %v416, 16
        %v508 = vor.u32 %v505, %v506
        %v509 = vsel %vm442, %v501, %v508
        %v510 = vrot.slane %v505, 4
        %v512 = vshrl.u32 %v417, 16
        %v514 = vrot.slane %v512, 7
        %v515 = vshll.u32 %v417, 16
        %v517 = vor.u32 %v514, %v515
        %v518 = vrot.slane %v514, 4
        %v520 = vshrl.u32 %v418, 16
        %v522 = vrot.slane %v520, 7
        %v523 = vshll.u32 %v418, 16
        %v525 = vor.u32 %v522, %v523
        %v526 = vsel %vm442, %v518, %v525
        %v527 = vrot.slane %v522, 4
        %v529 = vshrl.u32 %v419, 16
        %v531 = vrot.slane %v529, 7
        %v532 = vshll.u32 %v419, 16
        %v534 = vor.u32 %v531, %v532
        %v535 = vrot.slane %v531, 4
        %v537 = vshrl.u32 %v420, 16
        %v539 = vrot.slane %v537, 7
        %v540 = vshll.u32 %v420, 16
        %v542 = vor.u32 %v539, %v540
        %v543 = vsel %vm442, %v535, %v542
        %v544 = vrot.slane %v539, 4
        %v546 = vshrl.u32 %v421, 16
        %v548 = vrot.slane %v546, 7
        %v549 = vshll.u32 %v421, 16
        %v551 = vor.u32 %v548, %v549
        %v552 = vrot.slane %v548, 4
        %v554 = vshrl.u32 %v422, 16
        %v556 = vrot.slane %v554, 7
        %v557 = vshll.u32 %v422, 16
        %v559 = vor.u32 %v556, %v557
        %v560 = vsel %vm442, %v552, %v559
        %v561 = vrot.slane %v556, 4
        %v563 = vshrl.u32 %v423, 16
        %v565 = vrot.slane %v563, 7
        %v566 = vshll.u32 %v423, 16
        %v568 = vor.u32 %v565, %v566
        %v569 = vrot.slane %v565, 4
        %v571 = vshrl.u32 %v424, 16
        %v573 = vrot.slane %v571, 7
        %v574 = vshll.u32 %v424, 16
        %v576 = vor.u32 %v573, %v574
        %v577 = vsel %vm442, %v569, %v576
        %v578 = vrot.slane %v573, 4
        %v580 = vshrl.u32 %v425, 16
        %v582 = vrot.slane %v580, 7
        %v583 = vshll.u32 %v425, 16
        %v585 = vor.u32 %v582, %v583
        %v586 = vrot.slane %v582, 4
        %v588 = vshrl.u32 %v426, 16
        %v590 = vrot.slane %v588, 7
        %v591 = vshll.u32 %v426, 16
        %v593 = vor.u32 %v590, %v591
        %v594 = vsel %vm442, %v586, %v593
        %v595 = vrot.slane %v590, 4
        %v597 = vshrl.u32 %v427, 16
        %v599 = vrot.slane %v597, 7
        %v600 = vshll.u32 %v427, 16
        %v602 = vor.u32 %v599, %v600
        %v603 = vrot.slane %v599, 4
        %v605 = vshrl.u32 %v428, 16
        %v607 = vrot.slane %v605, 7
        %v608 = vshll.u32 %v428, 16
        %v610 = vor.u32 %v607, %v608
        %v611 = vsel %vm442, %v603, %v610
        %v612 = vrot.slane %v607, 4
        %v614 = vshrl.u32 %v429, 16
        %v616 = vrot.slane %v614, 7
        %v617 = vshll.u32 %v429, 16
        %v619 = vor.u32 %v616, %v617
        %v620 = vrot.slane %v616, 4
        %v622 = vshrl.u32 %v430, 16
        %v624 = vrot.slane %v622, 7
        %v625 = vshll.u32 %v430, 16
        %v627 = vor.u32 %v624, %v625
        %v628 = vsel %vm442, %v620, %v627
        %v629 = vrot.slane %v624, 4
        %v631 = vshrl.u32 %v431, 16
        %v633 = vrot.slane %v631, 7
        %v634 = vshll.u32 %v431, 16
        %v636 = vor.u32 %v633, %v634
        %v637 = vrot.slane %v633, 4
        %v639 = vshrl.u32 %v432, 16
        %v641 = vrot.slane %v639, 7
        %v642 = vshll.u32 %v432, 16
        %v644 = vor.u32 %v641, %v642
        %v645 = vsel %vm442, %v637, %v644
        %v646 = vrot.slane %v641, 4
        %v648 = vshrl.u32 %v433, 16
        %v650 = vrot.slane %v648, 7
        %v651 = vshll.u32 %v433, 16
        %v653 = vor.u32 %v650, %v651
        %v654 = vrot.slane %v650, 4
        %v656 = vshrl.u32 %v434, 16
        %v658 = vrot.slane %v656, 7
        %v659 = vshll.u32 %v434, 16
        %v661 = vor.u32 %v658, %v659
        %v662 = vsel %vm442, %v654, %v661
        %v663 = vrot.slane %v658, 4
        %v665 = vshrl.u32 %v435, 16
        %v667 = vrot.slane %v665, 7
        %v668 = vshll.u32 %v435, 16
        %v670 = vor.u32 %v667, %v668
        %v671 = vrot.slane %v667, 4
        %v673 = vshrl.u32 %v436, 16
        %v675 = vrot.slane %v673, 7
        %v676 = vshll.u32 %v436, 16
        %v678 = vor.u32 %v675, %v676
        %v679 = vsel %vm442, %v671, %v678
        %v680 = vrot.slane %v675, 4
        %v682 = vshrl.u32 %v437, 16
        %v684 = vrot.slane %v682, 7
        %v685 = vshll.u32 %v437, 16
        %v687 = vor.u32 %v684, %v685
        %v688 = vrot.slane %v684, 4
        %v690 = vshrl.u32 %v438, 16
        %v692 = vrot.slane %v690, 7
        %v693 = vshll.u32 %v438, 16
        %v695 = vor.u32 %v692, %v693
        %v696 = vsel %vm442, %v688, %v695
        %v697 = vrot.slane %v692, 4
        %v699 = vshrl.u32 %v439, 16
        %v701 = vrot.slane %v699, 7
        %v702 = vshll.u32 %v439, 16
        %v704 = vor.u32 %v701, %v702
        %v705 = vrot.slane %v701, 4
        %v707 = vshrl.u32 %v440, 16
        %v709 = vrot.slane %v707, 7
        %v710 = vshll.u32 %v440, 16
        %v712 = vor.u32 %v709, %v710
        %v713 = vsel %vm442, %v705, %v712
        %v714 = vrot.slane %v709, 4
        %vm763 = vcmask 27648
        %vm764 = vmand %vm763, %vm242
        %v765 = vld [vmem:[%s190] sm:$0xf]
        %v766 = vsel %vm764, %v449, %v765
        %767 = vst [vmem:[%s190] sm:$0xf] %v766
        %vm768 = vcmask 27648
        %769 = vst.msk [vmem:[%s190 + $0x4] sm:$0xf] %vm768, %v458
        %vm770 = vcmask 24576
        %vm771 = vmand %vm770, %vm192
        %v772 = vld [vmem:[%s190 + $0x8] sm:$0x1]
        %v773 = vsel %vm771, %v459, %v772
        %774 = vst [vmem:[%s190 + $0x8] sm:$0x1] %v773
        %v775 = vld [vmem:[%s190 + $0xc] sm:$0xf]
        %v776 = vsel %vm764, %v466, %v775
        %777 = vst [vmem:[%s190 + $0xc] sm:$0xf] %v776
        %778 = vst.msk [vmem:[%s190 + $0x10] sm:$0xf] %vm768, %v475
        %v779 = vld [vmem:[%s190 + $0x14] sm:$0x1]
        %v780 = vsel %vm771, %v476, %v779
        %781 = vst [vmem:[%s190 + $0x14] sm:$0x1] %v780
        %v782 = vld [vmem:[%s190 + $0x18] sm:$0xf]
        %v783 = vsel %vm764, %v483, %v782
        %784 = vst [vmem:[%s190 + $0x18] sm:$0xf] %v783
        %785 = vst.msk [vmem:[%s190 + $0x1c] sm:$0xf] %vm768, %v492
        %v786 = vld [vmem:[%s190 + $0x20] sm:$0x1]
        %v787 = vsel %vm771, %v493, %v786
        %788 = vst [vmem:[%s190 + $0x20] sm:$0x1] %v787
        %v789 = vld [vmem:[%s190 + $0x24] sm:$0xf]
        %v790 = vsel %vm764, %v500, %v789
        %791 = vst [vmem:[%s190 + $0x24] sm:$0xf] %v790
        %792 = vst.msk [vmem:[%s190 + $0x28] sm:$0xf] %vm768, %v509
        %v793 = vld [vmem:[%s190 + $0x2c] sm:$0x1]
        %v794 = vsel %vm771, %v510, %v793
        %795 = vst [vmem:[%s190 + $0x2c] sm:$0x1] %v794
        %v796 = vld [vmem:[%s190 + $0x30] sm:$0xf]
        %v797 = vsel %vm764, %v517, %v796
        %798 = vst [vmem:[%s190 + $0x30] sm:$0xf] %v797
        %799 = vst.msk [vmem:[%s190 + $0x34] sm:$0xf] %vm768, %v526
        %v800 = vld [vmem:[%s190 + $0x38] sm:$0x1]
        %v801 = vsel %vm771, %v527, %v800
        %802 = vst [vmem:[%s190 + $0x38] sm:$0x1] %v801
        %v803 = vld [vmem:[%s190 + $0x3c] sm:$0xf]
        %v804 = vsel %vm764, %v534, %v803
        %805 = vst [vmem:[%s190 + $0x3c] sm:$0xf] %v804
        %806 = vst.msk [vmem:[%s190 + $0x40] sm:$0xf] %vm768, %v543
        %v807 = vld [vmem:[%s190 + $0x44] sm:$0x1]
        %v808 = vsel %vm771, %v544, %v807
        %809 = vst [vmem:[%s190 + $0x44] sm:$0x1] %v808
        %v810 = vld [vmem:[%s190 + $0x48] sm:$0xf]
        %v811 = vsel %vm764, %v551, %v810
        %812 = vst [vmem:[%s190 + $0x48] sm:$0xf] %v811
        %813 = vst.msk [vmem:[%s190 + $0x4c] sm:$0xf] %vm768, %v560
        %v814 = vld [vmem:[%s190 + $0x50] sm:$0x1]
        %v815 = vsel %vm771, %v561, %v814
        %816 = vst [vmem:[%s190 + $0x50] sm:$0x1] %v815
        %v817 = vld [vmem:[%s190 + $0x54] sm:$0xf]
        %v818 = vsel %vm764, %v568, %v817
        %819 = vst [vmem:[%s190 + $0x54] sm:$0xf] %v818
        %820 = vst.msk [vmem:[%s190 + $0x58] sm:$0xf] %vm768, %v577
        %v821 = vld [vmem:[%s190 + $0x5c] sm:$0x1]
        %v822 = vsel %vm771, %v578, %v821
        %823 = vst [vmem:[%s190 + $0x5c] sm:$0x1] %v822
        %v824 = vld [vmem:[%s190 + $0x60] sm:$0xf]
        %v825 = vsel %vm764, %v585, %v824
        %826 = vst [vmem:[%s190 + $0x60] sm:$0xf] %v825
        %827 = vst.msk [vmem:[%s190 + $0x64] sm:$0xf] %vm768, %v594
        %v828 = vld [vmem:[%s190 + $0x68] sm:$0x1]
        %v829 = vsel %vm771, %v595, %v828
        %830 = vst [vmem:[%s190 + $0x68] sm:$0x1] %v829
        %v831 = vld [vmem:[%s190 + $0x6c] sm:$0xf]
        %v832 = vsel %vm764, %v602, %v831
        %833 = vst [vmem:[%s190 + $0x6c] sm:$0xf] %v832
        %834 = vst.msk [vmem:[%s190 + $0x70] sm:$0xf] %vm768, %v611
        %v835 = vld [vmem:[%s190 + $0x74] sm:$0x1]
        %v836 = vsel %vm771, %v612, %v835
        %837 = vst [vmem:[%s190 + $0x74] sm:$0x1] %v836
        %v838 = vld [vmem:[%s190 + $0x78] sm:$0xf]
        %v839 = vsel %vm764, %v619, %v838
        %840 = vst [vmem:[%s190 + $0x78] sm:$0xf] %v839
        %841 = vst.msk [vmem:[%s190 + $0x7c] sm:$0xf] %vm768, %v628
        %v842 = vld [vmem:[%s190 + $0x80] sm:$0x1]
        %v843 = vsel %vm771, %v629, %v842
        %844 = vst [vmem:[%s190 + $0x80] sm:$0x1] %v843
        %v845 = vld [vmem:[%s190 + $0x84] sm:$0xf]
        %v846 = vsel %vm764, %v636, %v845
        %847 = vst [vmem:[%s190 + $0x84] sm:$0xf] %v846
        %848 = vst.msk [vmem:[%s190 + $0x88] sm:$0xf] %vm768, %v645
        %v849 = vld [vmem:[%s190 + $0x8c] sm:$0x1]
        %v850 = vsel %vm771, %v646, %v849
        %851 = vst [vmem:[%s190 + $0x8c] sm:$0x1] %v850
        %v852 = vld [vmem:[%s190 + $0x90] sm:$0xf]
        %v853 = vsel %vm764, %v653, %v852
        %854 = vst [vmem:[%s190 + $0x90] sm:$0xf] %v853
        %855 = vst.msk [vmem:[%s190 + $0x94] sm:$0xf] %vm768, %v662
        %v856 = vld [vmem:[%s190 + $0x98] sm:$0x1]
        %v857 = vsel %vm771, %v663, %v856
        %858 = vst [vmem:[%s190 + $0x98] sm:$0x1] %v857
        %v859 = vld [vmem:[%s190 + $0x9c] sm:$0xf]
        %v860 = vsel %vm764, %v670, %v859
        %861 = vst [vmem:[%s190 + $0x9c] sm:$0xf] %v860
        %862 = vst.msk [vmem:[%s190 + $0xa0] sm:$0xf] %vm768, %v679
        %v863 = vld [vmem:[%s190 + $0xa4] sm:$0x1]
        %v864 = vsel %vm771, %v680, %v863
        %865 = vst [vmem:[%s190 + $0xa4] sm:$0x1] %v864
        %v866 = vld [vmem:[%s190 + $0xa8] sm:$0xf]
        %v867 = vsel %vm764, %v687, %v866
        %868 = vst [vmem:[%s190 + $0xa8] sm:$0xf] %v867
        %869 = vst.msk [vmem:[%s190 + $0xac] sm:$0xf] %vm768, %v696
        %v870 = vld [vmem:[%s190 + $0xb0] sm:$0x1]
        %v871 = vsel %vm771, %v697, %v870
        %872 = vst [vmem:[%s190 + $0xb0] sm:$0x1] %v871
        %v873 = vld [vmem:[%s190 + $0xb4] sm:$0xf]
        %v874 = vsel %vm764, %v704, %v873
        %875 = vst [vmem:[%s190 + $0xb4] sm:$0xf] %v874
        %876 = vst.msk [vmem:[%s190 + $0xb8] sm:$0xf] %vm768, %v713
        %v877 = vld [vmem:[%s190 + $0xbc] sm:$0x1]
        %v878 = vsel %vm771, %v714, %v877
        %879 = vst [vmem:[%s190 + $0xbc] sm:$0x1] %v878
        %v880 = vld [vmem:[#allocation2] sm:$0xf]
        %v881 = vld [vmem:[#allocation2 + $0x4] sm:$0xf]
        %v882 = vld [vmem:[#allocation2 + $0xc] sm:$0xf]
        %v883 = vld [vmem:[#allocation2 + $0x10] sm:$0xf]
        %v884 = vld [vmem:[#allocation2 + $0x18] sm:$0xf]
        %v885 = vld [vmem:[#allocation2 + $0x1c] sm:$0xf]
        %v886 = vld [vmem:[#allocation2 + $0x24] sm:$0xf]
        %v887 = vld [vmem:[#allocation2 + $0x28] sm:$0xf]
        %v888 = vld [vmem:[#allocation2 + $0x30] sm:$0xf]
        %v889 = vld [vmem:[#allocation2 + $0x34] sm:$0xf]
        %v890 = vld [vmem:[#allocation2 + $0x3c] sm:$0xf]
        %v891 = vld [vmem:[#allocation2 + $0x40] sm:$0xf]
        %v892 = vld [vmem:[#allocation2 + $0x48] sm:$0xf]
        %v893 = vld [vmem:[#allocation2 + $0x4c] sm:$0xf]
        %v894 = vld [vmem:[#allocation2 + $0x54] sm:$0xf]
        %v895 = vld [vmem:[#allocation2 + $0x58] sm:$0xf]
        %v896 = vld [vmem:[#allocation2 + $0x60] sm:$0xf]
        %v897 = vld [vmem:[#allocation2 + $0x64] sm:$0xf]
        %v898 = vld [vmem:[#allocation2 + $0x6c] sm:$0xf]
        %v899 = vld [vmem:[#allocation2 + $0x70] sm:$0xf]
        %v900 = vld [vmem:[#allocation2 + $0x78] sm:$0xf]
        %v901 = vld [vmem:[#allocation2 + $0x7c] sm:$0xf]
        %v902 = vld [vmem:[#allocation2 + $0x84] sm:$0xf]
        %v903 = vld [vmem:[#allocation2 + $0x88] sm:$0xf]
        %v904 = vld [vmem:[#allocation2 + $0x90] sm:$0xf]
        %v905 = vld [vmem:[#allocation2 + $0x94] sm:$0xf]
        %v906 = vld [vmem:[#allocation2 + $0x9c] sm:$0xf]
        %v907 = vld [vmem:[#allocation2 + $0xa0] sm:$0xf]
        %v908 = vld [vmem:[#allocation2 + $0xa8] sm:$0xf]
        %v909 = vld [vmem:[#allocation2 + $0xac] sm:$0xf]
        %v910 = vld [vmem:[#allocation2 + $0xb4] sm:$0xf]
        %v911 = vld [vmem:[#allocation2 + $0xb8] sm:$0xf]
        %912 = vst.msk [vmem:[#allocation3] sm:$0xf] %vm181, %v880
        %913 = vst.msk [vmem:[#allocation3 + $0x4] sm:$0xf] %vm181, %v881
        %914 = vst.msk [vmem:[#allocation3 + $0x8] sm:$0xf] %vm181, %v882
        %915 = vst.msk [vmem:[#allocation3 + $0xc] sm:$0xf] %vm181, %v883
        %916 = vst.msk [vmem:[#allocation3 + $0x10] sm:$0xf] %vm181, %v884
        %917 = vst.msk [vmem:[#allocation3 + $0x14] sm:$0xf] %vm181, %v885
        %918 = vst.msk [vmem:[#allocation3 + $0x18] sm:$0xf] %vm181, %v886
        %919 = vst.msk [vmem:[#allocation3 + $0x1c] sm:$0xf] %vm181, %v887
        %920 = vst.msk [vmem:[#allocation3 + $0x20] sm:$0xf] %vm181, %v888
        %921 = vst.msk [vmem:[#allocation3 + $0x24] sm:$0xf] %vm181, %v889
        %922 = vst.msk [vmem:[#allocation3 + $0x28] sm:$0xf] %vm181, %v890
        %923 = vst.msk [vmem:[#allocation3 + $0x2c] sm:$0xf] %vm181, %v891
        %924 = vst.msk [vmem:[#allocation3 + $0x30] sm:$0xf] %vm181, %v892
        %925 = vst.msk [vmem:[#allocation3 + $0x34] sm:$0xf] %vm181, %v893
        %926 = vst.msk [vmem:[#allocation3 + $0x38] sm:$0xf] %vm181, %v894
        %927 = vst.msk [vmem:[#allocation3 + $0x3c] sm:$0xf] %vm181, %v895
        %928 = vst.msk [vmem:[#allocation3 + $0x40] sm:$0xf] %vm181, %v896
        %929 = vst.msk [vmem:[#allocation3 + $0x44] sm:$0xf] %vm181, %v897
        %930 = vst.msk [vmem:[#allocation3 + $0x48] sm:$0xf] %vm181, %v898
        %931 = vst.msk [vmem:[#allocation3 + $0x4c] sm:$0xf] %vm181, %v899
        %932 = vst.msk [vmem:[#allocation3 + $0x50] sm:$0xf] %vm181, %v900
        %933 = vst.msk [vmem:[#allocation3 + $0x54] sm:$0xf] %vm181, %v901
        %934 = vst.msk [vmem:[#allocation3 + $0x58] sm:$0xf] %vm181, %v902
        %935 = vst.msk [vmem:[#allocation3 + $0x5c] sm:$0xf] %vm181, %v903
        %936 = vst.msk [vmem:[#allocation3 + $0x60] sm:$0xf] %vm181, %v904
        %937 = vst.msk [vmem:[#allocation3 + $0x64] sm:$0xf] %vm181, %v905
        %938 = vst.msk [vmem:[#allocation3 + $0x68] sm:$0xf] %vm181, %v906
        %939 = vst.msk [vmem:[#allocation3 + $0x6c] sm:$0xf] %vm181, %v907
        %940 = vst.msk [vmem:[#allocation3 + $0x70] sm:$0xf] %vm181, %v908
        %941 = vst.msk [vmem:[#allocation3 + $0x74] sm:$0xf] %vm181, %v909
        %942 = vst.msk [vmem:[#allocation3 + $0x78] sm:$0xf] %vm181, %v910
        %943 = vst.msk [vmem:[#allocation3 + $0x7c] sm:$0xf] %vm181, %v911
        %v944 = vld [vmem:[#allocation2] sm:$0xf]
        %v945 = vld [vmem:[#allocation2 + $0x4] sm:$0xf]
        %v946 = vld [vmem:[#allocation2 + $0x8] sm:$0x1]
        %v947 = vld [vmem:[#allocation2 + $0xc] sm:$0xf]
        %v948 = vld [vmem:[#allocation2 + $0x10] sm:$0xf]
        %v949 = vld [vmem:[#allocation2 + $0x14] sm:$0x1]
        %v950 = vld [vmem:[#allocation2 + $0x18] sm:$0xf]
        %v951 = vld [vmem:[#allocation2 + $0x1c] sm:$0xf]
        %v952 = vld [vmem:[#allocation2 + $0x20] sm:$0x1]
        %v953 = vld [vmem:[#allocation2 + $0x24] sm:$0xf]
        %v954 = vld [vmem:[#allocation2 + $0x28] sm:$0xf]
        %v955 = vld [vmem:[#allocation2 + $0x2c] sm:$0x1]
        %v956 = vld [vmem:[#allocation2 + $0x30] sm:$0xf]
        %v957 = vld [vmem:[#allocation2 + $0x34] sm:$0xf]
        %v958 = vld [vmem:[#allocation2 + $0x38] sm:$0x1]
        %v959 = vld [vmem:[#allocation2 + $0x3c] sm:$0xf]
        %v960 = vld [vmem:[#allocation2 + $0x40] sm:$0xf]
        %v961 = vld [vmem:[#allocation2 + $0x44] sm:$0x1]
        %v962 = vld [vmem:[#allocation2 + $0x48] sm:$0xf]
        %v963 = vld [vmem:[#allocation2 + $0x4c] sm:$0xf]
        %v964 = vld [vmem:[#allocation2 + $0x50] sm:$0x1]
        %v965 = vld [vmem:[#allocation2 + $0x54] sm:$0xf]
        %v966 = vld [vmem:[#allocation2 + $0x58] sm:$0xf]
        %v967 = vld [vmem:[#allocation2 + $0x5c] sm:$0x1]
        %v968 = vld [vmem:[#allocation2 + $0x60] sm:$0xf]
        %v969 = vld [vmem:[#allocation2 + $0x64] sm:$0xf]
        %v970 = vld [vmem:[#allocation2 + $0x68] sm:$0x1]
        %v971 = vld [vmem:[#allocation2 + $0x6c] sm:$0xf]
        %v972 = vld [vmem:[#allocation2 + $0x70] sm:$0xf]
        %v973 = vld [vmem:[#allocation2 + $0x74] sm:$0x1]
        %v974 = vld [vmem:[#allocation2 + $0x78] sm:$0xf]
        %v975 = vld [vmem:[#allocation2 + $0x7c] sm:$0xf]
        %v976 = vld [vmem:[#allocation2 + $0x80] sm:$0x1]
        %v977 = vld [vmem:[#allocation2 + $0x84] sm:$0xf]
        %v978 = vld [vmem:[#allocation2 + $0x88] sm:$0xf]
        %v979 = vld [vmem:[#allocation2 + $0x8c] sm:$0x1]
        %v980 = vld [vmem:[#allocation2 + $0x90] sm:$0xf]
        %v981 = vld [vmem:[#allocation2 + $0x94] sm:$0xf]
        %v982 = vld [vmem:[#allocation2 + $0x98] sm:$0x1]
        %v983 = vld [vmem:[#allocation2 + $0x9c] sm:$0xf]
        %v984 = vld [vmem:[#allocation2 + $0xa0] sm:$0xf]
        %v985 = vld [vmem:[#allocation2 + $0xa4] sm:$0x1]
        %v986 = vld [vmem:[#allocation2 + $0xa8] sm:$0xf]
        %v987 = vld [vmem:[#allocation2 + $0xac] sm:$0xf]
        %v988 = vld [vmem:[#allocation2 + $0xb0] sm:$0x1]
        %v989 = vld [vmem:[#allocation2 + $0xb4] sm:$0xf]
        %v990 = vld [vmem:[#allocation2 + $0xb8] sm:$0xf]
        %v991 = vld [vmem:[#allocation2 + $0xbc] sm:$0x1]
        %vm992 = vsmask.f32 3328
        %vm993 = vsmask.f32 7440
        %vm994 = vmor %vm992, %vm993
        %v996 = vshrl.u32 %v944, 16
        %v998 = vrot.slane %v996, 4
        %v999 = vshll.u32 %v944, 16
        %v1001 = vrot.slane %v999, 5
        %v1002 = vor.u32 %v998, %v1001
        %v1003 = vrot.slane %v1002, 4
        %v1005 = vshll.u32 %v945, 16
        %v1007 = vrot.slane %v1005, 5
        %v1008 = vsel %vm994, %v1003, %v1007
        %v1009 = vshrl.u32 %v945, 16
        %v1011 = vrot.slane %v1009, 4
        %v1012 = vor.u32 %v1011, %v1007
        %v1013 = vrot.slane %v1012, 4
        %v1015 = vshll.u32 %v946, 16
        %v1017 = vrot.slane %v1015, 5
        %v1018 = vsel %vm994, %v1013, %v1017
        %v1020 = vshrl.u32 %v947, 16
        %v1022 = vrot.slane %v1020, 4
        %v1023 = vshll.u32 %v947, 16
        %v1025 = vrot.slane %v1023, 5
        %v1026 = vor.u32 %v1022, %v1025
        %v1027 = vrot.slane %v1026, 4
        %v1029 = vshll.u32 %v948, 16
        %v1031 = vrot.slane %v1029, 5
        %v1032 = vsel %vm994, %v1027, %v1031
        %v1033 = vshrl.u32 %v948, 16
        %v1035 = vrot.slane %v1033, 4
        %v1036 = vor.u32 %v1035, %v1031
        %v1037 = vrot.slane %v1036, 4
        %v1039 = vshll.u32 %v949, 16
        %v1041 = vrot.slane %v1039, 5
        %v1042 = vsel %vm994, %v1037, %v1041
        %v1044 = vshrl.u32 %v950, 16
        %v1046 = vrot.slane %v1044, 4
        %v1047 = vshll.u32 %v950, 16
        %v1049 = vrot.slane %v1047, 5
        %v1050 = vor.u32 %v1046, %v1049
        %v1051 = vrot.slane %v1050, 4
        %v1053 = vshll.u32 %v951, 16
        %v1055 = vrot.slane %v1053, 5
        %v1056 = vsel %vm994, %v1051, %v1055
        %v1057 = vshrl.u32 %v951, 16
        %v1059 = vrot.slane %v1057, 4
        %v1060 = vor.u32 %v1059, %v1055
        %v1061 = vrot.slane %v1060, 4
        %v1063 = vshll.u32 %v952, 16
        %v1065 = vrot.slane %v1063, 5
        %v1066 = vsel %vm994, %v1061, %v1065
        %v1068 = vshrl.u32 %v953, 16
        %v1070 = vrot.slane %v1068, 4
        %v1071 = vshll.u32 %v953, 16
        %v1073 = vrot.slane %v1071, 5
        %v1074 = vor.u32 %v1070, %v1073
        %v1075 = vrot.slane %v1074, 4
        %v1077 = vshll.u32 %v954, 16
        %v1079 = vrot.slane %v1077, 5
        %v1080 = vsel %vm994, %v1075, %v1079
        %v1081 = vshrl.u32 %v954, 16
        %v1083 = vrot.slane %v1081, 4
        %v1084 = vor.u32 %v1083, %v1079
        %v1085 = vrot.slane %v1084, 4
        %v1087 = vshll.u32 %v955, 16
        %v1089 = vrot.slane %v1087, 5
        %v1090 = vsel %vm994, %v1085, %v1089
        %v1092 = vshrl.u32 %v956, 16
        %v1094 = vrot.slane %v1092, 4
        %v1095 = vshll.u32 %v956, 16
        %v1097 = vrot.slane %v1095, 5
        %v1098 = vor.u32 %v1094, %v1097
        %v1099 = vrot.slane %v1098, 4
        %v1101 = vshll.u32 %v957, 16
        %v1103 = vrot.slane %v1101, 5
        %v1104 = vsel %vm994, %v1099, %v1103
        %v1105 = vshrl.u32 %v957, 16
        %v1107 = vrot.slane %v1105, 4
        %v1108 = vor.u32 %v1107, %v1103
        %v1109 = vrot.slane %v1108, 4
        %v1111 = vshll.u32 %v958, 16
        %v1113 = vrot.slane %v1111, 5
        %v1114 = vsel %vm994, %v1109, %v1113
        %v1116 = vshrl.u32 %v959, 16
        %v1118 = vrot.slane %v1116, 4
        %v1119 = vshll.u32 %v959, 16
        %v1121 = vrot.slane %v1119, 5
        %v1122 = vor.u32 %v1118, %v1121
        %v1123 = vrot.slane %v1122, 4
        %v1125 = vshll.u32 %v960, 16
        %v1127 = vrot.slane %v1125, 5
        %v1128 = vsel %vm994, %v1123, %v1127
        %v1129 = vshrl.u32 %v960, 16
        %v1131 = vrot.slane %v1129, 4
        %v1132 = vor.u32 %v1131, %v1127
        %v1133 = vrot.slane %v1132, 4
        %v1135 = vshll.u32 %v961, 16
        %v1137 = vrot.slane %v1135, 5
        %v1138 = vsel %vm994, %v1133, %v1137
        %v1140 = vshrl.u32 %v962, 16
        %v1142 = vrot.slane %v1140, 4
        %v1143 = vshll.u32 %v962, 16
        %v1145 = vrot.slane %v1143, 5
        %v1146 = vor.u32 %v1142, %v1145
        %v1147 = vrot.slane %v1146, 4
        %v1149 = vshll.u32 %v963, 16
        %v1151 = vrot.slane %v1149, 5
        %v1152 = vsel %vm994, %v1147, %v1151
        %v1153 = vshrl.u32 %v963, 16
        %v1155 = vrot.slane %v1153, 4
        %v1156 = vor.u32 %v1155, %v1151
        %v1157 = vrot.slane %v1156, 4
        %v1159 = vshll.u32 %v964, 16
        %v1161 = vrot.slane %v1159, 5
        %v1162 = vsel %vm994, %v1157, %v1161
        %v1164 = vshrl.u32 %v965, 16
        %v1166 = vrot.slane %v1164, 4
        %v1167 = vshll.u32 %v965, 16
        %v1169 = vrot.slane %v1167, 5
        %v1170 = vor.u32 %v1166, %v1169
        %v1171 = vrot.slane %v1170, 4
        %v1173 = vshll.u32 %v966, 16
        %v1175 = vrot.slane %v1173, 5
        %v1176 = vsel %vm994, %v1171, %v1175
        %v1177 = vshrl.u32 %v966, 16
        %v1179 = vrot.slane %v1177, 4
        %v1180 = vor.u32 %v1179, %v1175
        %v1181 = vrot.slane %v1180, 4
        %v1183 = vshll.u32 %v967, 16
        %v1185 = vrot.slane %v1183, 5
        %v1186 = vsel %vm994, %v1181, %v1185
        %v1188 = vshrl.u32 %v968, 16
        %v1190 = vrot.slane %v1188, 4
        %v1191 = vshll.u32 %v968, 16
        %v1193 = vrot.slane %v1191, 5
        %v1194 = vor.u32 %v1190, %v1193
        %v1195 = vrot.slane %v1194, 4
        %v1197 = vshll.u32 %v969, 16
        %v1199 = vrot.slane %v1197, 5
        %v1200 = vsel %vm994, %v1195, %v1199
        %v1201 = vshrl.u32 %v969, 16
        %v1203 = vrot.slane %v1201, 4
        %v1204 = vor.u32 %v1203, %v1199
        %v1205 = vrot.slane %v1204, 4
        %v1207 = vshll.u32 %v970, 16
        %v1209 = vrot.slane %v1207, 5
        %v1210 = vsel %vm994, %v1205, %v1209
        %v1212 = vshrl.u32 %v971, 16
        %v1214 = vrot.slane %v1212, 4
        %v1215 = vshll.u32 %v971, 16
        %v1217 = vrot.slane %v1215, 5
        %v1218 = vor.u32 %v1214, %v1217
        %v1219 = vrot.slane %v1218, 4
        %v1221 = vshll.u32 %v972, 16
        %v1223 = vrot.slane %v1221, 5
        %v1224 = vsel %vm994, %v1219, %v1223
        %v1225 = vshrl.u32 %v972, 16
        %v1227 = vrot.slane %v1225, 4
        %v1228 = vor.u32 %v1227, %v1223
        %v1229 = vrot.slane %v1228, 4
        %v1231 = vshll.u32 %v973, 16
        %v1233 = vrot.slane %v1231, 5
        %v1234 = vsel %vm994, %v1229, %v1233
        %v1236 = vshrl.u32 %v974, 16
        %v1238 = vrot.slane %v1236, 4
        %v1239 = vshll.u32 %v974, 16
        %v1241 = vrot.slane %v1239, 5
        %v1242 = vor.u32 %v1238, %v1241
        %v1243 = vrot.slane %v1242, 4
        %v1245 = vshll.u32 %v975, 16
        %v1247 = vrot.slane %v1245, 5
        %v1248 = vsel %vm994, %v1243, %v1247
        %v1249 = vshrl.u32 %v975, 16
        %v1251 = vrot.slane %v1249, 4
        %v1252 = vor.u32 %v1251, %v1247
        %v1253 = vrot.slane %v1252, 4
        %v1255 = vshll.u32 %v976, 16
        %v1257 = vrot.slane %v1255, 5
        %v1258 = vsel %vm994, %v1253, %v1257
        %v1260 = vshrl.u32 %v977, 16
        %v1262 = vrot.slane %v1260, 4
        %v1263 = vshll.u32 %v977, 16
        %v1265 = vrot.slane %v1263, 5
        %v1266 = vor.u32 %v1262, %v1265
        %v1267 = vrot.slane %v1266, 4
        %v1269 = vshll.u32 %v978, 16
        %v1271 = vrot.slane %v1269, 5
        %v1272 = vsel %vm994, %v1267, %v1271
        %v1273 = vshrl.u32 %v978, 16
        %v1275 = vrot.slane %v1273, 4
        %v1276 = vor.u32 %v1275, %v1271
        %v1277 = vrot.slane %v1276, 4
        %v1279 = vshll.u32 %v979, 16
        %v1281 = vrot.slane %v1279, 5
        %v1282 = vsel %vm994, %v1277, %v1281
        %v1284 = vshrl.u32 %v980, 16
        %v1286 = vrot.slane %v1284, 4
        %v1287 = vshll.u32 %v980, 16
        %v1289 = vrot.slane %v1287, 5
        %v1290 = vor.u32 %v1286, %v1289
        %v1291 = vrot.slane %v1290, 4
        %v1293 = vshll.u32 %v981, 16
        %v1295 = vrot.slane %v1293, 5
        %v1296 = vsel %vm994, %v1291, %v1295
        %v1297 = vshrl.u32 %v981, 16
        %v1299 = vrot.slane %v1297, 4
        %v1300 = vor.u32 %v1299, %v1295
        %v1301 = vrot.slane %v1300, 4
        %v1303 = vshll.u32 %v982, 16
        %v1305 = vrot.slane %v1303, 5
        %v1306 = vsel %vm994, %v1301, %v1305
        %v1308 = vshrl.u32 %v983, 16
        %v1310 = vrot.slane %v1308, 4
        %v1311 = vshll.u32 %v983, 16
        %v1313 = vrot.slane %v1311, 5
        %v1314 = vor.u32 %v1310, %v1313
        %v1315 = vrot.slane %v1314, 4
        %v1317 = vshll.u32 %v984, 16
        %v1319 = vrot.slane %v1317, 5
        %v1320 = vsel %vm994, %v1315, %v1319
        %v1321 = vshrl.u32 %v984, 16
        %v1323 = vrot.slane %v1321, 4
        %v1324 = vor.u32 %v1323, %v1319
        %v1325 = vrot.slane %v1324, 4
        %v1327 = vshll.u32 %v985, 16
        %v1329 = vrot.slane %v1327, 5
        %v1330 = vsel %vm994, %v1325, %v1329
        %v1332 = vshrl.u32 %v986, 16
        %v1334 = vrot.slane %v1332, 4
        %v1335 = vshll.u32 %v986, 16
        %v1337 = vrot.slane %v1335, 5
        %v1338 = vor.u32 %v1334, %v1337
        %v1339 = vrot.slane %v1338, 4
        %v1341 = vshll.u32 %v987, 16
        %v1343 = vrot.slane %v1341, 5
        %v1344 = vsel %vm994, %v1339, %v1343
        %v1345 = vshrl.u32 %v987, 16
        %v1347 = vrot.slane %v1345, 4
        %v1348 = vor.u32 %v1347, %v1343
        %v1349 = vrot.slane %v1348, 4
        %v1351 = vshll.u32 %v988, 16
        %v1353 = vrot.slane %v1351, 5
        %v1354 = vsel %vm994, %v1349, %v1353
        %v1356 = vshrl.u32 %v989, 16
        %v1358 = vrot.slane %v1356, 4
        %v1359 = vshll.u32 %v989, 16
        %v1361 = vrot.slane %v1359, 5
        %v1362 = vor.u32 %v1358, %v1361
        %v1363 = vrot.slane %v1362, 4
        %v1365 = vshll.u32 %v990, 16
        %v1367 = vrot.slane %v1365, 5
        %v1368 = vsel %vm994, %v1363, %v1367
        %v1369 = vshrl.u32 %v990, 16
        %v1371 = vrot.slane %v1369, 4
        %v1372 = vor.u32 %v1371, %v1367
        %v1373 = vrot.slane %v1372, 4
        %v1375 = vshll.u32 %v991, 16
        %v1377 = vrot.slane %v1375, 5
        %v1378 = vsel %vm994, %v1373, %v1377
        %1379 = vrot.lane.b32.xlu0 %v1008, 8
        %v1380 = vpop.permute.xlu0 %1379
        %1381 = vrot.lane.b32.xlu0 %v1018, 8
        %v1382 = vpop.permute.xlu0 %1381
        %1383 = vrot.lane.b32.xlu0 %v1032, 8
        %v1384 = vpop.permute.xlu0 %1383
        %1385 = vrot.lane.b32.xlu0 %v1042, 8
        %v1386 = vpop.permute.xlu0 %1385
        %1387 = vrot.lane.b32.xlu0 %v1056, 8
        %v1388 = vpop.permute.xlu0 %1387
        %1389 = vrot.lane.b32.xlu0 %v1066, 8
        %v1390 = vpop.permute.xlu0 %1389
        %1391 = vrot.lane.b32.xlu0 %v1080, 8
        %v1392 = vpop.permute.xlu0 %1391
        %1393 = vrot.lane.b32.xlu0 %v1090, 8
        %v1394 = vpop.permute.xlu0 %1393
        %1395 = vrot.lane.b32.xlu0 %v1104, 8
        %v1396 = vpop.permute.xlu0 %1395
        %1397 = vrot.lane.b32.xlu0 %v1114, 8
        %v1398 = vpop.permute.xlu0 %1397
        %1399 = vrot.lane.b32.xlu0 %v1128, 8
        %v1400 = vpop.permute.xlu0 %1399
        %1401 = vrot.lane.b32.xlu0 %v1138, 8
        %v1402 = vpop.permute.xlu0 %1401
        %1403 = vrot.lane.b32.xlu0 %v1152, 8
        %v1404 = vpop.permute.xlu0 %1403
        %1405 = vrot.lane.b32.xlu0 %v1162, 8
        %v1406 = vpop.permute.xlu0 %1405
        %1407 = vrot.lane.b32.xlu0 %v1176, 8
        %v1408 = vpop.permute.xlu0 %1407
        %1409 = vrot.lane.b32.xlu0 %v1186, 8
        %v1410 = vpop.permute.xlu0 %1409
        %1411 = vrot.lane.b32.xlu0 %v1200, 8
        %v1412 = vpop.permute.xlu0 %1411
        %1413 = vrot.lane.b32.xlu0 %v1210, 8
        %v1414 = vpop.permute.xlu0 %1413
        %1415 = vrot.lane.b32.xlu0 %v1224, 8
        %v1416 = vpop.permute.xlu0 %1415
        %1417 = vrot.lane.b32.xlu0 %v1234, 8
        %v1418 = vpop.permute.xlu0 %1417
        %1419 = vrot.lane.b32.xlu0 %v1248, 8
        %v1420 = vpop.permute.xlu0 %1419
        %1421 = vrot.lane.b32.xlu0 %v1258, 8
        %v1422 = vpop.permute.xlu0 %1421
        %1423 = vrot.lane.b32.xlu0 %v1272, 8
        %v1424 = vpop.permute.xlu0 %1423
        %1425 = vrot.lane.b32.xlu0 %v1282, 8
        %v1426 = vpop.permute.xlu0 %1425
        %1427 = vrot.lane.b32.xlu0 %v1296, 8
        %v1428 = vpop.permute.xlu0 %1427
        %1429 = vrot.lane.b32.xlu0 %v1306, 8
        %v1430 = vpop.permute.xlu0 %1429
        %1431 = vrot.lane.b32.xlu0 %v1320, 8
        %v1432 = vpop.permute.xlu0 %1431
        %1433 = vrot.lane.b32.xlu0 %v1330, 8
        %v1434 = vpop.permute.xlu0 %1433
        %1435 = vrot.lane.b32.xlu0 %v1344, 8
        %v1436 = vpop.permute.xlu0 %1435
        %1437 = vrot.lane.b32.xlu0 %v1354, 8
        %v1438 = vpop.permute.xlu0 %1437
        %1439 = vrot.lane.b32.xlu0 %v1368, 8
        %v1440 = vpop.permute.xlu0 %1439
        %1441 = vrot.lane.b32.xlu0 %v1378, 8
        %v1442 = vpop.permute.xlu0 %1441
        %vm1475 = vcmask 126016
        %1476 = vst.msk [vmem:[#allocation3] sm:$0xf] %vm1475, %v1380
        %1477 = vst.msk [vmem:[#allocation3 + $0x4] sm:$0xf] %vm1475, %v1382
        %1478 = vst.msk [vmem:[#allocation3 + $0x8] sm:$0xf] %vm1475, %v1384
        %1479 = vst.msk [vmem:[#allocation3 + $0xc] sm:$0xf] %vm1475, %v1386
        %1480 = vst.msk [vmem:[#allocation3 + $0x10] sm:$0xf] %vm1475, %v1388
        %1481 = vst.msk [vmem:[#allocation3 + $0x14] sm:$0xf] %vm1475, %v1390
        %1482 = vst.msk [vmem:[#allocation3 + $0x18] sm:$0xf] %vm1475, %v1392
        %1483 = vst.msk [vmem:[#allocation3 + $0x1c] sm:$0xf] %vm1475, %v1394
        %1484 = vst.msk [vmem:[#allocation3 + $0x20] sm:$0xf] %vm1475, %v1396
        %1485 = vst.msk [vmem:[#allocation3 + $0x24] sm:$0xf] %vm1475, %v1398
        %1486 = vst.msk [vmem:[#allocation3 + $0x28] sm:$0xf] %vm1475, %v1400
        %1487 = vst.msk [vmem:[#allocation3 + $0x2c] sm:$0xf] %vm1475, %v1402
        %1488 = vst.msk [vmem:[#allocation3 + $0x30] sm:$0xf] %vm1475, %v1404
        %1489 = vst.msk [vmem:[#allocation3 + $0x34] sm:$0xf] %vm1475, %v1406
        %1490 = vst.msk [vmem:[#allocation3 + $0x38] sm:$0xf] %vm1475, %v1408
        %1491 = vst.msk [vmem:[#allocation3 + $0x3c] sm:$0xf] %vm1475, %v1410
        %1492 = vst.msk [vmem:[#allocation3 + $0x40] sm:$0xf] %vm1475, %v1412
        %1493 = vst.msk [vmem:[#allocation3 + $0x44] sm:$0xf] %vm1475, %v1414
        %1494 = vst.msk [vmem:[#allocation3 + $0x48] sm:$0xf] %vm1475, %v1416
        %1495 = vst.msk [vmem:[#allocation3 + $0x4c] sm:$0xf] %vm1475, %v1418
        %1496 = vst.msk [vmem:[#allocation3 + $0x50] sm:$0xf] %vm1475, %v1420
        %1497 = vst.msk [vmem:[#allocation3 + $0x54] sm:$0xf] %vm1475, %v1422
        %1498 = vst.msk [vmem:[#allocation3 + $0x58] sm:$0xf] %vm1475, %v1424
        %1499 = vst.msk [vmem:[#allocation3 + $0x5c] sm:$0xf] %vm1475, %v1426
        %1500 = vst.msk [vmem:[#allocation3 + $0x60] sm:$0xf] %vm1475, %v1428
        %1501 = vst.msk [vmem:[#allocation3 + $0x64] sm:$0xf] %vm1475, %v1430
        %1502 = vst.msk [vmem:[#allocation3 + $0x68] sm:$0xf] %vm1475, %v1432
        %1503 = vst.msk [vmem:[#allocation3 + $0x6c] sm:$0xf] %vm1475, %v1434
        %1504 = vst.msk [vmem:[#allocation3 + $0x70] sm:$0xf] %vm1475, %v1436
        %1505 = vst.msk [vmem:[#allocation3 + $0x74] sm:$0xf] %vm1475, %v1438
        %1506 = vst.msk [vmem:[#allocation3 + $0x78] sm:$0xf] %vm1475, %v1440
        %1507 = vst.msk [vmem:[#allocation3 + $0x7c] sm:$0xf] %vm1475, %v1442
        %v1508 = vld [vmem:[#allocation2] sm:$0xe]
        %v1509 = vld [vmem:[#allocation2 + $0x4] sm:$0xf]
        %v1510 = vld [vmem:[#allocation2 + $0x8] sm:$0x1]
        %v1511 = vld [vmem:[#allocation2 + $0xc] sm:$0xe]
        %v1512 = vld [vmem:[#allocation2 + $0x10] sm:$0xf]
        %v1513 = vld [vmem:[#allocation2 + $0x14] sm:$0x1]
        %v1514 = vld [vmem:[#allocation2 + $0x18] sm:$0xe]
        %v1515 = vld [vmem:[#allocation2 + $0x1c] sm:$0xf]
        %v1516 = vld [vmem:[#allocation2 + $0x20] sm:$0x1]
        %v1517 = vld [vmem:[#allocation2 + $0x24] sm:$0xe]
        %v1518 = vld [vmem:[#allocation2 + $0x28] sm:$0xf]
        %v1519 = vld [vmem:[#allocation2 + $0x2c] sm:$0x1]
        %v1520 = vld [vmem:[#allocation2 + $0x30] sm:$0xe]
        %v1521 = vld [vmem:[#allocation2 + $0x34] sm:$0xf]
        %v1522 = vld [vmem:[#allocation2 + $0x38] sm:$0x1]
        %v1523 = vld [vmem:[#allocation2 + $0x3c] sm:$0xe]
        %v1524 = vld [vmem:[#allocation2 + $0x40] sm:$0xf]
        %v1525 = vld [vmem:[#allocation2 + $0x44] sm:$0x1]
        %v1526 = vld [vmem:[#allocation2 + $0x48] sm:$0xe]
        %v1527 = vld [vmem:[#allocation2 + $0x4c] sm:$0xf]
        %v1528 = vld [vmem:[#allocation2 + $0x50] sm:$0x1]
        %v1529 = vld [vmem:[#allocation2 + $0x54] sm:$0xe]
        %v1530 = vld [vmem:[#allocation2 + $0x58] sm:$0xf]
        %v1531 = vld [vmem:[#allocation2 + $0x5c] sm:$0x1]
        %v1532 = vld [vmem:[#allocation2 + $0x60] sm:$0xe]
        %v1533 = vld [vmem:[#allocation2 + $0x64] sm:$0xf]
        %v1534 = vld [vmem:[#allocation2 + $0x68] sm:$0x1]
        %v1535 = vld [vmem:[#allocation2 + $0x6c] sm:$0xe]
        %v1536 = vld [vmem:[#allocation2 + $0x70] sm:$0xf]
        %v1537 = vld [vmem:[#allocation2 + $0x74] sm:$0x1]
        %v1538 = vld [vmem:[#allocation2 + $0x78] sm:$0xe]
        %v1539 = vld [vmem:[#allocation2 + $0x7c] sm:$0xf]
        %v1540 = vld [vmem:[#allocation2 + $0x80] sm:$0x1]
        %v1541 = vld [vmem:[#allocation2 + $0x84] sm:$0xe]
        %v1542 = vld [vmem:[#allocation2 + $0x88] sm:$0xf]
        %v1543 = vld [vmem:[#allocation2 + $0x8c] sm:$0x1]
        %v1544 = vld [vmem:[#allocation2 + $0x90] sm:$0xe]
        %v1545 = vld [vmem:[#allocation2 + $0x94] sm:$0xf]
        %v1546 = vld [vmem:[#allocation2 + $0x98] sm:$0x1]
        %v1547 = vld [vmem:[#allocation2 + $0x9c] sm:$0xe]
        %v1548 = vld [vmem:[#allocation2 + $0xa0] sm:$0xf]
        %v1549 = vld [vmem:[#allocation2 + $0xa4] sm:$0x1]
        %v1550 = vld [vmem:[#allocation2 + $0xa8] sm:$0xe]
        %v1551 = vld [vmem:[#allocation2 + $0xac] sm:$0xf]
        %v1552 = vld [vmem:[#allocation2 + $0xb0] sm:$0x1]
        %v1553 = vld [vmem:[#allocation2 + $0xb4] sm:$0xe]
        %v1554 = vld [vmem:[#allocation2 + $0xb8] sm:$0xf]
        %v1555 = vld [vmem:[#allocation2 + $0xbc] sm:$0x1]
        %vm1604 = vcmask 1042432
        %vm1605 = vcmask 1046532
        %vm1606 = vmor %vm1604, %vm1605
        %v1607 = vrot.slane %v1508, 5
        %v1608 = vrot.slane %v1607, 4
        %v1609 = vrot.slane %v1509, 5
        %v1610 = vsel %vm1606, %v1608, %v1609
        %v1611 = vrot.slane %v1609, 4
        %v1612 = vrot.slane %v1510, 5
        %v1613 = vsel %vm1606, %v1611, %v1612
        %v1614 = vrot.slane %v1511, 5
        %v1615 = vrot.slane %v1614, 4
        %v1616 = vrot.slane %v1512, 5
        %v1617 = vsel %vm1606, %v1615, %v1616
        %v1618 = vrot.slane %v1616, 4
        %v1619 = vrot.slane %v1513, 5
        %v1620 = vsel %vm1606, %v1618, %v1619
        %v1621 = vrot.slane %v1514, 5
        %v1622 = vrot.slane %v1621, 4
        %v1623 = vrot.slane %v1515, 5
        %v1624 = vsel %vm1606, %v1622, %v1623
        %v1625 = vrot.slane %v1623, 4
        %v1626 = vrot.slane %v1516, 5
        %v1627 = vsel %vm1606, %v1625, %v1626
        %v1628 = vrot.slane %v1517, 5
        %v1629 = vrot.slane %v1628, 4
        %v1630 = vrot.slane %v1518, 5
        %v1631 = vsel %vm1606, %v1629, %v1630
        %v1632 = vrot.slane %v1630, 4
        %v1633 = vrot.slane %v1519, 5
        %v1634 = vsel %vm1606, %v1632, %v1633
        %v1635 = vrot.slane %v1520, 5
        %v1636 = vrot.slane %v1635, 4
        %v1637 = vrot.slane %v1521, 5
        %v1638 = vsel %vm1606, %v1636, %v1637
        %v1639 = vrot.slane %v1637, 4
        %v1640 = vrot.slane %v1522, 5
        %v1641 = vsel %vm1606, %v1639, %v1640
        %v1642 = vrot.slane %v1523, 5
        %v1643 = vrot.slane %v1642, 4
        %v1644 = vrot.slane %v1524, 5
        %v1645 = vsel %vm1606, %v1643, %v1644
        %v1646 = vrot.slane %v1644, 4
        %v1647 = vrot.slane %v1525, 5
        %v1648 = vsel %vm1606, %v1646, %v1647
        %v1649 = vrot.slane %v1526, 5
        %v1650 = vrot.slane %v1649, 4
        %v1651 = vrot.slane %v1527, 5
        %v1652 = vsel %vm1606, %v1650, %v1651
        %v1653 = vrot.slane %v1651, 4
        %v1654 = vrot.slane %v1528, 5
        %v1655 = vsel %vm1606, %v1653, %v1654
        %v1656 = vrot.slane %v1529, 5
        %v1657 = vrot.slane %v1656, 4
        %v1658 = vrot.slane %v1530, 5
        %v1659 = vsel %vm1606, %v1657, %v1658
        %v1660 = vrot.slane %v1658, 4
        %v1661 = vrot.slane %v1531, 5
        %v1662 = vsel %vm1606, %v1660, %v1661
        %v1663 = vrot.slane %v1532, 5
        %v1664 = vrot.slane %v1663, 4
        %v1665 = vrot.slane %v1533, 5
        %v1666 = vsel %vm1606, %v1664, %v1665
        %v1667 = vrot.slane %v1665, 4
        %v1668 = vrot.slane %v1534, 5
        %v1669 = vsel %vm1606, %v1667, %v1668
        %v1670 = vrot.slane %v1535, 5
        %v1671 = vrot.slane %v1670, 4
        %v1672 = vrot.slane %v1536, 5
        %v1673 = vsel %vm1606, %v1671, %v1672
        %v1674 = vrot.slane %v1672, 4
        %v1675 = vrot.slane %v1537, 5
        %v1676 = vsel %vm1606, %v1674, %v1675
        %v1677 = vrot.slane %v1538, 5
        %v1678 = vrot.slane %v1677, 4
        %v1679 = vrot.slane %v1539, 5
        %v1680 = vsel %vm1606, %v1678, %v1679
        %v1681 = vrot.slane %v1679, 4
        %v1682 = vrot.slane %v1540, 5
        %v1683 = vsel %vm1606, %v1681, %v1682
        %v1684 = vrot.slane %v1541, 5
        %v1685 = vrot.slane %v1684, 4
        %v1686 = vrot.slane %v1542, 5
        %v1687 = vsel %vm1606, %v1685, %v1686
        %v1688 = vrot.slane %v1686, 4
        %v1689 = vrot.slane %v1543, 5
        %v1690 = vsel %vm1606, %v1688, %v1689
        %v1691 = vrot.slane %v1544, 5
        %v1692 = vrot.slane %v1691, 4
        %v1693 = vrot.slane %v1545, 5
        %v1694 = vsel %vm1606, %v1692, %v1693
        %v1695 = vrot.slane %v1693, 4
        %v1696 = vrot.slane %v1546, 5
        %v1697 = vsel %vm1606, %v1695, %v1696
        %v1698 = vrot.slane %v1547, 5
        %v1699 = vrot.slane %v1698, 4
        %v1700 = vrot.slane %v1548, 5
        %v1701 = vsel %vm1606, %v1699, %v1700
        %v1702 = vrot.slane %v1700, 4
        %v1703 = vrot.slane %v1549, 5
        %v1704 = vsel %vm1606, %v1702, %v1703
        %v1705 = vrot.slane %v1550, 5
        %v1706 = vrot.slane %v1705, 4
        %v1707 = vrot.slane %v1551, 5
        %v1708 = vsel %vm1606, %v1706, %v1707
        %v1709 = vrot.slane %v1707, 4
        %v1710 = vrot.slane %v1552, 5
        %v1711 = vsel %vm1606, %v1709, %v1710
        %v1712 = vrot.slane %v1553, 5
        %v1713 = vrot.slane %v1712, 4
        %v1714 = vrot.slane %v1554, 5
        %v1715 = vsel %vm1606, %v1713, %v1714
        %v1716 = vrot.slane %v1714, 4
        %v1717 = vrot.slane %v1555, 5
        %v1718 = vsel %vm1606, %v1716, %v1717
        %1719 = vrot.lane.b32.xlu0 %v1610, 16
        %v1720 = vpop.permute.xlu0 %1719
        %1721 = vrot.lane.b32.xlu0 %v1613, 16
        %v1722 = vpop.permute.xlu0 %1721
        %1723 = vrot.lane.b32.xlu0 %v1617, 16
        %v1724 = vpop.permute.xlu0 %1723
        %1725 = vrot.lane.b32.xlu0 %v1620, 16
        %v1726 = vpop.permute.xlu0 %1725
        %1727 = vrot.lane.b32.xlu0 %v1624, 16
        %v1728 = vpop.permute.xlu0 %1727
        %1729 = vrot.lane.b32.xlu0 %v1627, 16
        %v1730 = vpop.permute.xlu0 %1729
        %1731 = vrot.lane.b32.xlu0 %v1631, 16
        %v1732 = vpop.permute.xlu0 %1731
        %1733 = vrot.lane.b32.xlu0 %v1634, 16
        %v1734 = vpop.permute.xlu0 %1733
        %1735 = vrot.lane.b32.xlu0 %v1638, 16
        %v1736 = vpop.permute.xlu0 %1735
        %1737 = vrot.lane.b32.xlu0 %v1641, 16
        %v1738 = vpop.permute.xlu0 %1737
        %1739 = vrot.lane.b32.xlu0 %v1645, 16
        %v1740 = vpop.permute.xlu0 %1739
        %1741 = vrot.lane.b32.xlu0 %v1648, 16
        %v1742 = vpop.permute.xlu0 %1741
        %1743 = vrot.lane.b32.xlu0 %v1652, 16
        %v1744 = vpop.permute.xlu0 %1743
        %1745 = vrot.lane.b32.xlu0 %v1655, 16
        %v1746 = vpop.permute.xlu0 %1745
        %1747 = vrot.lane.b32.xlu0 %v1659, 16
        %v1748 = vpop.permute.xlu0 %1747
        %1749 = vrot.lane.b32.xlu0 %v1662, 16
        %v1750 = vpop.permute.xlu0 %1749
        %1751 = vrot.lane.b32.xlu0 %v1666, 16
        %v1752 = vpop.permute.xlu0 %1751
        %1753 = vrot.lane.b32.xlu0 %v1669, 16
        %v1754 = vpop.permute.xlu0 %1753
        %1755 = vrot.lane.b32.xlu0 %v1673, 16
        %v1756 = vpop.permute.xlu0 %1755
        %1757 = vrot.lane.b32.xlu0 %v1676, 16
        %v1758 = vpop.permute.xlu0 %1757
        %1759 = vrot.lane.b32.xlu0 %v1680, 16
        %v1760 = vpop.permute.xlu0 %1759
        %1761 = vrot.lane.b32.xlu0 %v1683, 16
        %v1762 = vpop.permute.xlu0 %1761
        %1763 = vrot.lane.b32.xlu0 %v1687, 16
        %v1764 = vpop.permute.xlu0 %1763
        %1765 = vrot.lane.b32.xlu0 %v1690, 16
        %v1766 = vpop.permute.xlu0 %1765
        %1767 = vrot.lane.b32.xlu0 %v1694, 16
        %v1768 = vpop.permute.xlu0 %1767
        %1769 = vrot.lane.b32.xlu0 %v1697, 16
        %v1770 = vpop.permute.xlu0 %1769
        %1771 = vrot.lane.b32.xlu0 %v1701, 16
        %v1772 = vpop.permute.xlu0 %1771
        %1773 = vrot.lane.b32.xlu0 %v1704, 16
        %v1774 = vpop.permute.xlu0 %1773
        %1775 = vrot.lane.b32.xlu0 %v1708, 16
        %v1776 = vpop.permute.xlu0 %1775
        %1777 = vrot.lane.b32.xlu0 %v1711, 16
        %v1778 = vpop.permute.xlu0 %1777
        %1779 = vrot.lane.b32.xlu0 %v1715, 16
        %v1780 = vpop.permute.xlu0 %1779
        %1781 = vrot.lane.b32.xlu0 %v1718, 16
        %v1782 = vpop.permute.xlu0 %1781
        %vm1815 = vcmask 191616
        %1816 = vst.msk [vmem:[#allocation3] sm:$0xf] %vm1815, %v1720
        %1817 = vst.msk [vmem:[#allocation3 + $0x4] sm:$0xf] %vm1815, %v1722
        %1818 = vst.msk [vmem:[#allocation3 + $0x8] sm:$0xf] %vm1815, %v1724
        %1819 = vst.msk [vmem:[#allocation3 + $0xc] sm:$0xf] %vm1815, %v1726
        %1820 = vst.msk [vmem:[#allocation3 + $0x10] sm:$0xf] %vm1815, %v1728
        %1821 = vst.msk [vmem:[#allocation3 + $0x14] sm:$0xf] %vm1815, %v1730
        %1822 = vst.msk [vmem:[#allocation3 + $0x18] sm:$0xf] %vm1815, %v1732
        %1823 = vst.msk [vmem:[#allocation3 + $0x1c] sm:$0xf] %vm1815, %v1734
        %1824 = vst.msk [vmem:[#allocation3 + $0x20] sm:$0xf] %vm1815, %v1736
        %1825 = vst.msk [vmem:[#allocation3 + $0x24] sm:$0xf] %vm1815, %v1738
        %1826 = vst.msk [vmem:[#allocation3 + $0x28] sm:$0xf] %vm1815, %v1740
        %1827 = vst.msk [vmem:[#allocation3 + $0x2c] sm:$0xf] %vm1815, %v1742
        %1828 = vst.msk [vmem:[#allocation3 + $0x30] sm:$0xf] %vm1815, %v1744
        %1829 = vst.msk [vmem:[#allocation3 + $0x34] sm:$0xf] %vm1815, %v1746
        %1830 = vst.msk [vmem:[#allocation3 + $0x38] sm:$0xf] %vm1815, %v1748
        %1831 = vst.msk [vmem:[#allocation3 + $0x3c] sm:$0xf] %vm1815, %v1750
        %1832 = vst.msk [vmem:[#allocation3 + $0x40] sm:$0xf] %vm1815, %v1752
        %1833 = vst.msk [vmem:[#allocation3 + $0x44] sm:$0xf] %vm1815, %v1754
        %1834 = vst.msk [vmem:[#allocation3 + $0x48] sm:$0xf] %vm1815, %v1756
        %1835 = vst.msk [vmem:[#allocation3 + $0x4c] sm:$0xf] %vm1815, %v1758
        %1836 = vst.msk [vmem:[#allocation3 + $0x50] sm:$0xf] %vm1815, %v1760
        %1837 = vst.msk [vmem:[#allocation3 + $0x54] sm:$0xf] %vm1815, %v1762
        %1838 = vst.msk [vmem:[#allocation3 + $0x58] sm:$0xf] %vm1815, %v1764
        %1839 = vst.msk [vmem:[#allocation3 + $0x5c] sm:$0xf] %vm1815, %v1766
        %1840 = vst.msk [vmem:[#allocation3 + $0x60] sm:$0xf] %vm1815, %v1768
        %1841 = vst.msk [vmem:[#allocation3 + $0x64] sm:$0xf] %vm1815, %v1770
        %1842 = vst.msk [vmem:[#allocation3 + $0x68] sm:$0xf] %vm1815, %v1772
        %1843 = vst.msk [vmem:[#allocation3 + $0x6c] sm:$0xf] %vm1815, %v1774
        %1844 = vst.msk [vmem:[#allocation3 + $0x70] sm:$0xf] %vm1815, %v1776
        %1845 = vst.msk [vmem:[#allocation3 + $0x74] sm:$0xf] %vm1815, %v1778
        %1846 = vst.msk [vmem:[#allocation3 + $0x78] sm:$0xf] %vm1815, %v1780
        %1847 = vst.msk [vmem:[#allocation3 + $0x7c] sm:$0xf] %vm1815, %v1782
        %v1848 = vld [vmem:[%s190] sm:$0xf]
        %v1849 = vld [vmem:[%s190 + $0x4] sm:$0xf]
        %v1850 = vld [vmem:[%s190 + $0xc] sm:$0xf]
        %v1851 = vld [vmem:[%s190 + $0x10] sm:$0xf]
        %v1852 = vld [vmem:[%s190 + $0x18] sm:$0xf]
        %v1853 = vld [vmem:[%s190 + $0x1c] sm:$0xf]
        %v1854 = vld [vmem:[%s190 + $0x24] sm:$0xf]
        %v1855 = vld [vmem:[%s190 + $0x28] sm:$0xf]
        %v1856 = vld [vmem:[%s190 + $0x30] sm:$0xf]
        %v1857 = vld [vmem:[%s190 + $0x34] sm:$0xf]
        %v1858 = vld [vmem:[%s190 + $0x3c] sm:$0xf]
        %v1859 = vld [vmem:[%s190 + $0x40] sm:$0xf]
        %v1860 = vld [vmem:[%s190 + $0x48] sm:$0xf]
        %v1861 = vld [vmem:[%s190 + $0x4c] sm:$0xf]
        %v1862 = vld [vmem:[%s190 + $0x54] sm:$0xf]
        %v1863 = vld [vmem:[%s190 + $0x58] sm:$0xf]
        %v1864 = vld [vmem:[%s190 + $0x60] sm:$0xf]
        %v1865 = vld [vmem:[%s190 + $0x64] sm:$0xf]
        %v1866 = vld [vmem:[%s190 + $0x6c] sm:$0xf]
        %v1867 = vld [vmem:[%s190 + $0x70] sm:$0xf]
        %v1868 = vld [vmem:[%s190 + $0x78] sm:$0xf]
        %v1869 = vld [vmem:[%s190 + $0x7c] sm:$0xf]
        %v1870 = vld [vmem:[%s190 + $0x84] sm:$0xf]
        %v1871 = vld [vmem:[%s190 + $0x88] sm:$0xf]
        %v1872 = vld [vmem:[%s190 + $0x90] sm:$0xf]
        %v1873 = vld [vmem:[%s190 + $0x94] sm:$0xf]
        %v1874 = vld [vmem:[%s190 + $0x9c] sm:$0xf]
        %v1875 = vld [vmem:[%s190 + $0xa0] sm:$0xf]
        %v1876 = vld [vmem:[%s190 + $0xa8] sm:$0xf]
        %v1877 = vld [vmem:[%s190 + $0xac] sm:$0xf]
        %v1878 = vld [vmem:[%s190 + $0xb4] sm:$0xf]
        %v1879 = vld [vmem:[%s190 + $0xb8] sm:$0xf]
        %1912 = vrot.lane.b32.xlu0 %v1848, 24
        %v1913 = vpop.permute.xlu0 %1912
        %1914 = vrot.lane.b32.xlu0 %v1849, 24
        %v1915 = vpop.permute.xlu0 %1914
        %1916 = vrot.lane.b32.xlu0 %v1850, 24
        %v1917 = vpop.permute.xlu0 %1916
        %1918 = vrot.lane.b32.xlu0 %v1851, 24
        %v1919 = vpop.permute.xlu0 %1918
        %1920 = vrot.lane.b32.xlu0 %v1852, 24
        %v1921 = vpop.permute.xlu0 %1920
        %1922 = vrot.lane.b32.xlu0 %v1853, 24
        %v1923 = vpop.permute.xlu0 %1922
        %1924 = vrot.lane.b32.xlu0 %v1854, 24
        %v1925 = vpop.permute.xlu0 %1924
        %1926 = vrot.lane.b32.xlu0 %v1855, 24
        %v1927 = vpop.permute.xlu0 %1926
        %1928 = vrot.lane.b32.xlu0 %v1856, 24
        %v1929 = vpop.permute.xlu0 %1928
        %1930 = vrot.lane.b32.xlu0 %v1857, 24
        %v1931 = vpop.permute.xlu0 %1930
        %1932 = vrot.lane.b32.xlu0 %v1858, 24
        %v1933 = vpop.permute.xlu0 %1932
        %1934 = vrot.lane.b32.xlu0 %v1859, 24
        %v1935 = vpop.permute.xlu0 %1934
        %1936 = vrot.lane.b32.xlu0 %v1860, 24
        %v1937 = vpop.permute.xlu0 %1936
        %1938 = vrot.lane.b32.xlu0 %v1861, 24
        %v1939 = vpop.permute.xlu0 %1938
        %1940 = vrot.lane.b32.xlu0 %v1862, 24
        %v1941 = vpop.permute.xlu0 %1940
        %1942 = vrot.lane.b32.xlu0 %v1863, 24
        %v1943 = vpop.permute.xlu0 %1942
        %1944 = vrot.lane.b32.xlu0 %v1864, 24
        %v1945 = vpop.permute.xlu0 %1944
        %1946 = vrot.lane.b32.xlu0 %v1865, 24
        %v1947 = vpop.permute.xlu0 %1946
        %1948 = vrot.lane.b32.xlu0 %v1866, 24
        %v1949 = vpop.permute.xlu0 %1948
        %1950 = vrot.lane.b32.xlu0 %v1867, 24
        %v1951 = vpop.permute.xlu0 %1950
        %1952 = vrot.lane.b32.xlu0 %v1868, 24
        %v1953 = vpop.permute.xlu0 %1952
        %1954 = vrot.lane.b32.xlu0 %v1869, 24
        %v1955 = vpop.permute.xlu0 %1954
        %1956 = vrot.lane.b32.xlu0 %v1870, 24
        %v1957 = vpop.permute.xlu0 %1956
        %1958 = vrot.lane.b32.xlu0 %v1871, 24
        %v1959 = vpop.permute.xlu0 %1958
        %1960 = vrot.lane.b32.xlu0 %v1872, 24
        %v1961 = vpop.permute.xlu0 %1960
        %1962 = vrot.lane.b32.xlu0 %v1873, 24
        %v1963 = vpop.permute.xlu0 %1962
        %1964 = vrot.lane.b32.xlu0 %v1874, 24
        %v1965 = vpop.permute.xlu0 %1964
        %1966 = vrot.lane.b32.xlu0 %v1875, 24
        %v1967 = vpop.permute.xlu0 %1966
        %1968 = vrot.lane.b32.xlu0 %v1876, 24
        %v1969 = vpop.permute.xlu0 %1968
        %1970 = vrot.lane.b32.xlu0 %v1877, 24
        %v1971 = vpop.permute.xlu0 %1970
        %1972 = vrot.lane.b32.xlu0 %v1878, 24
        %v1973 = vpop.permute.xlu0 %1972
        %1974 = vrot.lane.b32.xlu0 %v1879, 24
        %v1975 = vpop.permute.xlu0 %1974
        %vm2008 = vcmask 257216
        %2009 = vst.msk [vmem:[#allocation3] sm:$0xf] %vm2008, %v1913
        %2010 = vst.msk [vmem:[#allocation3 + $0x4] sm:$0xf] %vm2008, %v1915
        %2011 = vst.msk [vmem:[#allocation3 + $0x8] sm:$0xf] %vm2008, %v1917
        %2012 = vst.msk [vmem:[#allocation3 + $0xc] sm:$0xf] %vm2008, %v1919
        %2013 = vst.msk [vmem:[#allocation3 + $0x10] sm:$0xf] %vm2008, %v1921
        %2014 = vst.msk [vmem:[#allocation3 + $0x14] sm:$0xf] %vm2008, %v1923
        %2015 = vst.msk [vmem:[#allocation3 + $0x18] sm:$0xf] %vm2008, %v1925
        %2016 = vst.msk [vmem:[#allocation3 + $0x1c] sm:$0xf] %vm2008, %v1927
        %2017 = vst.msk [vmem:[#allocation3 + $0x20] sm:$0xf] %vm2008, %v1929
        %2018 = vst.msk [vmem:[#allocation3 + $0x24] sm:$0xf] %vm2008, %v1931
        %2019 = vst.msk [vmem:[#allocation3 + $0x28] sm:$0xf] %vm2008, %v1933
        %2020 = vst.msk [vmem:[#allocation3 + $0x2c] sm:$0xf] %vm2008, %v1935
        %2021 = vst.msk [vmem:[#allocation3 + $0x30] sm:$0xf] %vm2008, %v1937
        %2022 = vst.msk [vmem:[#allocation3 + $0x34] sm:$0xf] %vm2008, %v1939
        %2023 = vst.msk [vmem:[#allocation3 + $0x38] sm:$0xf] %vm2008, %v1941
        %2024 = vst.msk [vmem:[#allocation3 + $0x3c] sm:$0xf] %vm2008, %v1943
        %2025 = vst.msk [vmem:[#allocation3 + $0x40] sm:$0xf] %vm2008, %v1945
        %2026 = vst.msk [vmem:[#allocation3 + $0x44] sm:$0xf] %vm2008, %v1947
        %2027 = vst.msk [vmem:[#allocation3 + $0x48] sm:$0xf] %vm2008, %v1949
        %2028 = vst.msk [vmem:[#allocation3 + $0x4c] sm:$0xf] %vm2008, %v1951
        %2029 = vst.msk [vmem:[#allocation3 + $0x50] sm:$0xf] %vm2008, %v1953
        %2030 = vst.msk [vmem:[#allocation3 + $0x54] sm:$0xf] %vm2008, %v1955
        %2031 = vst.msk [vmem:[#allocation3 + $0x58] sm:$0xf] %vm2008, %v1957
        %2032 = vst.msk [vmem:[#allocation3 + $0x5c] sm:$0xf] %vm2008, %v1959
        %2033 = vst.msk [vmem:[#allocation3 + $0x60] sm:$0xf] %vm2008, %v1961
        %2034 = vst.msk [vmem:[#allocation3 + $0x64] sm:$0xf] %vm2008, %v1963
        %2035 = vst.msk [vmem:[#allocation3 + $0x68] sm:$0xf] %vm2008, %v1965
        %2036 = vst.msk [vmem:[#allocation3 + $0x6c] sm:$0xf] %vm2008, %v1967
        %2037 = vst.msk [vmem:[#allocation3 + $0x70] sm:$0xf] %vm2008, %v1969
        %2038 = vst.msk [vmem:[#allocation3 + $0x74] sm:$0xf] %vm2008, %v1971
        %2039 = vst.msk [vmem:[#allocation3 + $0x78] sm:$0xf] %vm2008, %v1973
        %2040 = vst.msk [vmem:[#allocation3 + $0x7c] sm:$0xf] %vm2008, %v1975
        %v2041 = vld [vmem:[%s190] sm:$0xf]
        %v2042 = vld [vmem:[%s190 + $0x4] sm:$0xf]
        %v2043 = vld [vmem:[%s190 + $0x8] sm:$0x1]
        %v2044 = vld [vmem:[%s190 + $0xc] sm:$0xf]
        %v2045 = vld [vmem:[%s190 + $0x10] sm:$0xf]
        %v2046 = vld [vmem:[%s190 + $0x14] sm:$0x1]
        %v2047 = vld [vmem:[%s190 + $0x18] sm:$0xf]
        %v2048 = vld [vmem:[%s190 + $0x1c] sm:$0xf]
        %v2049 = vld [vmem:[%s190 + $0x20] sm:$0x1]
        %v2050 = vld [vmem:[%s190 + $0x24] sm:$0xf]
        %v2051 = vld [vmem:[%s190 + $0x28] sm:$0xf]
        %v2052 = vld [vmem:[%s190 + $0x2c] sm:$0x1]
        %v2053 = vld [vmem:[%s190 + $0x30] sm:$0xf]
        %v2054 = vld [vmem:[%s190 + $0x34] sm:$0xf]
        %v2055 = vld [vmem:[%s190 + $0x38] sm:$0x1]
        %v2056 = vld [vmem:[%s190 + $0x3c] sm:$0xf]
        %v2057 = vld [vmem:[%s190 + $0x40] sm:$0xf]
        %v2058 = vld [vmem:[%s190 + $0x44] sm:$0x1]
        %v2059 = vld [vmem:[%s190 + $0x48] sm:$0xf]
        %v2060 = vld [vmem:[%s190 + $0x4c] sm:$0xf]
        %v2061 = vld [vmem:[%s190 + $0x50] sm:$0x1]
        %v2062 = vld [vmem:[%s190 + $0x54] sm:$0xf]
        %v2063 = vld [vmem:[%s190 + $0x58] sm:$0xf]
        %v2064 = vld [vmem:[%s190 + $0x5c] sm:$0x1]
        %v2065 = vld [vmem:[%s190 + $0x60] sm:$0xf]
        %v2066 = vld [vmem:[%s190 + $0x64] sm:$0xf]
        %v2067 = vld [vmem:[%s190 + $0x68] sm:$0x1]
        %v2068 = vld [vmem:[%s190 + $0x6c] sm:$0xf]
        %v2069 = vld [vmem:[%s190 + $0x70] sm:$0xf]
        %v2070 = vld [vmem:[%s190 + $0x74] sm:$0x1]
        %v2071 = vld [vmem:[%s190 + $0x78] sm:$0xf]
        %v2072 = vld [vmem:[%s190 + $0x7c] sm:$0xf]
        %v2073 = vld [vmem:[%s190 + $0x80] sm:$0x1]
        %v2074 = vld [vmem:[%s190 + $0x84] sm:$0xf]
        %v2075 = vld [vmem:[%s190 + $0x88] sm:$0xf]
        %v2076 = vld [vmem:[%s190 + $0x8c] sm:$0x1]
        %v2077 = vld [vmem:[%s190 + $0x90] sm:$0xf]
        %v2078 = vld [vmem:[%s190 + $0x94] sm:$0xf]
        %v2079 = vld [vmem:[%s190 + $0x98] sm:$0x1]
        %v2080 = vld [vmem:[%s190 + $0x9c] sm:$0xf]
        %v2081 = vld [vmem:[%s190 + $0xa0] sm:$0xf]
        %v2082 = vld [vmem:[%s190 + $0xa4] sm:$0x1]
        %v2083 = vld [vmem:[%s190 + $0xa8] sm:$0xf]
        %v2084 = vld [vmem:[%s190 + $0xac] sm:$0xf]
        %v2085 = vld [vmem:[%s190 + $0xb0] sm:$0x1]
        %v2086 = vld [vmem:[%s190 + $0xb4] sm:$0xf]
        %v2087 = vld [vmem:[%s190 + $0xb8] sm:$0xf]
        %v2088 = vld [vmem:[%s190 + $0xbc] sm:$0x1]
        %v2090 = vshrl.u32 %v2041, 16
        %v2092 = vrot.slane %v2090, 4
        %v2093 = vshll.u32 %v2041, 16
        %v2095 = vrot.slane %v2093, 5
        %v2096 = vor.u32 %v2092, %v2095
        %v2097 = vrot.slane %v2096, 4
        %v2099 = vshll.u32 %v2042, 16
        %v2101 = vrot.slane %v2099, 5
        %v2102 = vsel %vm994, %v2097, %v2101
        %v2103 = vshrl.u32 %v2042, 16
        %v2105 = vrot.slane %v2103, 4
        %v2106 = vor.u32 %v2105, %v2101
        %v2107 = vrot.slane %v2106, 4
        %v2109 = vshll.u32 %v2043, 16
        %v2111 = vrot.slane %v2109, 5
        %v2112 = vsel %vm994, %v2107, %v2111
        %v2114 = vshrl.u32 %v2044, 16
        %v2116 = vrot.slane %v2114, 4
        %v2117 = vshll.u32 %v2044, 16
        %v2119 = vrot.slane %v2117, 5
        %v2120 = vor.u32 %v2116, %v2119
        %v2121 = vrot.slane %v2120, 4
        %v2123 = vshll.u32 %v2045, 16
        %v2125 = vrot.slane %v2123, 5
        %v2126 = vsel %vm994, %v2121, %v2125
        %v2127 = vshrl.u32 %v2045, 16
        %v2129 = vrot.slane %v2127, 4
        %v2130 = vor.u32 %v2129, %v2125
        %v2131 = vrot.slane %v2130, 4
        %v2133 = vshll.u32 %v2046, 16
        %v2135 = vrot.slane %v2133, 5
        %v2136 = vsel %vm994, %v2131, %v2135
        %v2138 = vshrl.u32 %v2047, 16
        %v2140 = vrot.slane %v2138, 4
        %v2141 = vshll.u32 %v2047, 16
        %v2143 = vrot.slane %v2141, 5
        %v2144 = vor.u32 %v2140, %v2143
        %v2145 = vrot.slane %v2144, 4
        %v2147 = vshll.u32 %v2048, 16
        %v2149 = vrot.slane %v2147, 5
        %v2150 = vsel %vm994, %v2145, %v2149
        %v2151 = vshrl.u32 %v2048, 16
        %v2153 = vrot.slane %v2151, 4
        %v2154 = vor.u32 %v2153, %v2149
        %v2155 = vrot.slane %v2154, 4
        %v2157 = vshll.u32 %v2049, 16
        %v2159 = vrot.slane %v2157, 5
        %v2160 = vsel %vm994, %v2155, %v2159
        %v2162 = vshrl.u32 %v2050, 16
        %v2164 = vrot.slane %v2162, 4
        %v2165 = vshll.u32 %v2050, 16
        %v2167 = vrot.slane %v2165, 5
        %v2168 = vor.u32 %v2164, %v2167
        %v2169 = vrot.slane %v2168, 4
        %v2171 = vshll.u32 %v2051, 16
        %v2173 = vrot.slane %v2171, 5
        %v2174 = vsel %vm994, %v2169, %v2173
        %v2175 = vshrl.u32 %v2051, 16
        %v2177 = vrot.slane %v2175, 4
        %v2178 = vor.u32 %v2177, %v2173
        %v2179 = vrot.slane %v2178, 4
        %v2181 = vshll.u32 %v2052, 16
        %v2183 = vrot.slane %v2181, 5
        %v2184 = vsel %vm994, %v2179, %v2183
        %v2186 = vshrl.u32 %v2053, 16
        %v2188 = vrot.slane %v2186, 4
        %v2189 = vshll.u32 %v2053, 16
        %v2191 = vrot.slane %v2189, 5
        %v2192 = vor.u32 %v2188, %v2191
        %v2193 = vrot.slane %v2192, 4
        %v2195 = vshll.u32 %v2054, 16
        %v2197 = vrot.slane %v2195, 5
        %v2198 = vsel %vm994, %v2193, %v2197
        %v2199 = vshrl.u32 %v2054, 16
        %v2201 = vrot.slane %v2199, 4
        %v2202 = vor.u32 %v2201, %v2197
        %v2203 = vrot.slane %v2202, 4
        %v2205 = vshll.u32 %v2055, 16
        %v2207 = vrot.slane %v2205, 5
        %v2208 = vsel %vm994, %v2203, %v2207
        %v2210 = vshrl.u32 %v2056, 16
        %v2212 = vrot.slane %v2210, 4
        %v2213 = vshll.u32 %v2056, 16
        %v2215 = vrot.slane %v2213, 5
        %v2216 = vor.u32 %v2212, %v2215
        %v2217 = vrot.slane %v2216, 4
        %v2219 = vshll.u32 %v2057, 16
        %v2221 = vrot.slane %v2219, 5
        %v2222 = vsel %vm994, %v2217, %v2221
        %v2223 = vshrl.u32 %v2057, 16
        %v2225 = vrot.slane %v2223, 4
        %v2226 = vor.u32 %v2225, %v2221
        %v2227 = vrot.slane %v2226, 4
        %v2229 = vshll.u32 %v2058, 16
        %v2231 = vrot.slane %v2229, 5
        %v2232 = vsel %vm994, %v2227, %v2231
        %v2234 = vshrl.u32 %v2059, 16
        %v2236 = vrot.slane %v2234, 4
        %v2237 = vshll.u32 %v2059, 16
        %v2239 = vrot.slane %v2237, 5
        %v2240 = vor.u32 %v2236, %v2239
        %v2241 = vrot.slane %v2240, 4
        %v2243 = vshll.u32 %v2060, 16
        %v2245 = vrot.slane %v2243, 5
        %v2246 = vsel %vm994, %v2241, %v2245
        %v2247 = vshrl.u32 %v2060, 16
        %v2249 = vrot.slane %v2247, 4
        %v2250 = vor.u32 %v2249, %v2245
        %v2251 = vrot.slane %v2250, 4
        %v2253 = vshll.u32 %v2061, 16
        %v2255 = vrot.slane %v2253, 5
        %v2256 = vsel %vm994, %v2251, %v2255
        %v2258 = vshrl.u32 %v2062, 16
        %v2260 = vrot.slane %v2258, 4
        %v2261 = vshll.u32 %v2062, 16
        %v2263 = vrot.slane %v2261, 5
        %v2264 = vor.u32 %v2260, %v2263
        %v2265 = vrot.slane %v2264, 4
        %v2267 = vshll.u32 %v2063, 16
        %v2269 = vrot.slane %v2267, 5
        %v2270 = vsel %vm994, %v2265, %v2269
        %v2271 = vshrl.u32 %v2063, 16
        %v2273 = vrot.slane %v2271, 4
        %v2274 = vor.u32 %v2273, %v2269
        %v2275 = vrot.slane %v2274, 4
        %v2277 = vshll.u32 %v2064, 16
        %v2279 = vrot.slane %v2277, 5
        %v2280 = vsel %vm994, %v2275, %v2279
        %v2282 = vshrl.u32 %v2065, 16
        %v2284 = vrot.slane %v2282, 4
        %v2285 = vshll.u32 %v2065, 16
        %v2287 = vrot.slane %v2285, 5
        %v2288 = vor.u32 %v2284, %v2287
        %v2289 = vrot.slane %v2288, 4
        %v2291 = vshll.u32 %v2066, 16
        %v2293 = vrot.slane %v2291, 5
        %v2294 = vsel %vm994, %v2289, %v2293
        %v2295 = vshrl.u32 %v2066, 16
        %v2297 = vrot.slane %v2295, 4
        %v2298 = vor.u32 %v2297, %v2293
        %v2299 = vrot.slane %v2298, 4
        %v2301 = vshll.u32 %v2067, 16
        %v2303 = vrot.slane %v2301, 5
        %v2304 = vsel %vm994, %v2299, %v2303
        %v2306 = vshrl.u32 %v2068, 16
        %v2308 = vrot.slane %v2306, 4
        %v2309 = vshll.u32 %v2068, 16
        %v2311 = vrot.slane %v2309, 5
        %v2312 = vor.u32 %v2308, %v2311
        %v2313 = vrot.slane %v2312, 4
        %v2315 = vshll.u32 %v2069, 16
        %v2317 = vrot.slane %v2315, 5
        %v2318 = vsel %vm994, %v2313, %v2317
        %v2319 = vshrl.u32 %v2069, 16
        %v2321 = vrot.slane %v2319, 4
        %v2322 = vor.u32 %v2321, %v2317
        %v2323 = vrot.slane %v2322, 4
        %v2325 = vshll.u32 %v2070, 16
        %v2327 = vrot.slane %v2325, 5
        %v2328 = vsel %vm994, %v2323, %v2327
        %v2330 = vshrl.u32 %v2071, 16
        %v2332 = vrot.slane %v2330, 4
        %v2333 = vshll.u32 %v2071, 16
        %v2335 = vrot.slane %v2333, 5
        %v2336 = vor.u32 %v2332, %v2335
        %v2337 = vrot.slane %v2336, 4
        %v2339 = vshll.u32 %v2072, 16
        %v2341 = vrot.slane %v2339, 5
        %v2342 = vsel %vm994, %v2337, %v2341
        %v2343 = vshrl.u32 %v2072, 16
        %v2345 = vrot.slane %v2343, 4
        %v2346 = vor.u32 %v2345, %v2341
        %v2347 = vrot.slane %v2346, 4
        %v2349 = vshll.u32 %v2073, 16
        %v2351 = vrot.slane %v2349, 5
        %v2352 = vsel %vm994, %v2347, %v2351
        %v2354 = vshrl.u32 %v2074, 16
        %v2356 = vrot.slane %v2354, 4
        %v2357 = vshll.u32 %v2074, 16
        %v2359 = vrot.slane %v2357, 5
        %v2360 = vor.u32 %v2356, %v2359
        %v2361 = vrot.slane %v2360, 4
        %v2363 = vshll.u32 %v2075, 16
        %v2365 = vrot.slane %v2363, 5
        %v2366 = vsel %vm994, %v2361, %v2365
        %v2367 = vshrl.u32 %v2075, 16
        %v2369 = vrot.slane %v2367, 4
        %v2370 = vor.u32 %v2369, %v2365
        %v2371 = vrot.slane %v2370, 4
        %v2373 = vshll.u32 %v2076, 16
        %v2375 = vrot.slane %v2373, 5
        %v2376 = vsel %vm994, %v2371, %v2375
        %v2378 = vshrl.u32 %v2077, 16
        %v2380 = vrot.slane %v2378, 4
        %v2381 = vshll.u32 %v2077, 16
        %v2383 = vrot.slane %v2381, 5
        %v2384 = vor.u32 %v2380, %v2383
        %v2385 = vrot.slane %v2384, 4
        %v2387 = vshll.u32 %v2078, 16
        %v2389 = vrot.slane %v2387, 5
        %v2390 = vsel %vm994, %v2385, %v2389
        %v2391 = vshrl.u32 %v2078, 16
        %v2393 = vrot.slane %v2391, 4
        %v2394 = vor.u32 %v2393, %v2389
        %v2395 = vrot.slane %v2394, 4
        %v2397 = vshll.u32 %v2079, 16
        %v2399 = vrot.slane %v2397, 5
        %v2400 = vsel %vm994, %v2395, %v2399
        %v2402 = vshrl.u32 %v2080, 16
        %v2404 = vrot.slane %v2402, 4
        %v2405 = vshll.u32 %v2080, 16
        %v2407 = vrot.slane %v2405, 5
        %v2408 = vor.u32 %v2404, %v2407
        %v2409 = vrot.slane %v2408, 4
        %v2411 = vshll.u32 %v2081, 16
        %v2413 = vrot.slane %v2411, 5
        %v2414 = vsel %vm994, %v2409, %v2413
        %v2415 = vshrl.u32 %v2081, 16
        %v2417 = vrot.slane %v2415, 4
        %v2418 = vor.u32 %v2417, %v2413
        %v2419 = vrot.slane %v2418, 4
        %v2421 = vshll.u32 %v2082, 16
        %v2423 = vrot.slane %v2421, 5
        %v2424 = vsel %vm994, %v2419, %v2423
        %v2426 = vshrl.u32 %v2083, 16
        %v2428 = vrot.slane %v2426, 4
        %v2429 = vshll.u32 %v2083, 16
        %v2431 = vrot.slane %v2429, 5
        %v2432 = vor.u32 %v2428, %v2431
        %v2433 = vrot.slane %v2432, 4
        %v2435 = vshll.u32 %v2084, 16
        %v2437 = vrot.slane %v2435, 5
        %v2438 = vsel %vm994, %v2433, %v2437
        %v2439 = vshrl.u32 %v2084, 16
        %v2441 = vrot.slane %v2439, 4
        %v2442 = vor.u32 %v2441, %v2437
        %v2443 = vrot.slane %v2442, 4
        %v2445 = vshll.u32 %v2085, 16
        %v2447 = vrot.slane %v2445, 5
        %v2448 = vsel %vm994, %v2443, %v2447
        %v2450 = vshrl.u32 %v2086, 16
        %v2452 = vrot.slane %v2450, 4
        %v2453 = vshll.u32 %v2086, 16
        %v2455 = vrot.slane %v2453, 5
        %v2456 = vor.u32 %v2452, %v2455
        %v2457 = vrot.slane %v2456, 4
        %v2459 = vshll.u32 %v2087, 16
        %v2461 = vrot.slane %v2459, 5
        %v2462 = vsel %vm994, %v2457, %v2461
        %v2463 = vshrl.u32 %v2087, 16
        %v2465 = vrot.slane %v2463, 4
        %v2466 = vor.u32 %v2465, %v2461
        %v2467 = vrot.slane %v2466, 4
        %v2469 = vshll.u32 %v2088, 16
        %v2471 = vrot.slane %v2469, 5
        %v2472 = vsel %vm994, %v2467, %v2471
        %2473 = vrot.lane.b32.xlu0 %v2102, 32
        %v2474 = vpop.permute.xlu0 %2473
        %2475 = vrot.lane.b32.xlu0 %v2112, 32
        %v2476 = vpop.permute.xlu0 %2475
        %2477 = vrot.lane.b32.xlu0 %v2126, 32
        %v2478 = vpop.permute.xlu0 %2477
        %2479 = vrot.lane.b32.xlu0 %v2136, 32
        %v2480 = vpop.permute.xlu0 %2479
        %2481 = vrot.lane.b32.xlu0 %v2150, 32
        %v2482 = vpop.permute.xlu0 %2481
        %2483 = vrot.lane.b32.xlu0 %v2160, 32
        %v2484 = vpop.permute.xlu0 %2483
        %2485 = vrot.lane.b32.xlu0 %v2174, 32
        %v2486 = vpop.permute.xlu0 %2485
        %2487 = vrot.lane.b32.xlu0 %v2184, 32
        %v2488 = vpop.permute.xlu0 %2487
        %2489 = vrot.lane.b32.xlu0 %v2198, 32
        %v2490 = vpop.permute.xlu0 %2489
        %2491 = vrot.lane.b32.xlu0 %v2208, 32
        %v2492 = vpop.permute.xlu0 %2491
        %2493 = vrot.lane.b32.xlu0 %v2222, 32
        %v2494 = vpop.permute.xlu0 %2493
        %2495 = vrot.lane.b32.xlu0 %v2232, 32
        %v2496 = vpop.permute.xlu0 %2495
        %2497 = vrot.lane.b32.xlu0 %v2246, 32
        %v2498 = vpop.permute.xlu0 %2497
        %2499 = vrot.lane.b32.xlu0 %v2256, 32
        %v2500 = vpop.permute.xlu0 %2499
        %2501 = vrot.lane.b32.xlu0 %v2270, 32
        %v2502 = vpop.permute.xlu0 %2501
        %2503 = vrot.lane.b32.xlu0 %v2280, 32
        %v2504 = vpop.permute.xlu0 %2503
        %2505 = vrot.lane.b32.xlu0 %v2294, 32
        %v2506 = vpop.permute.xlu0 %2505
        %2507 = vrot.lane.b32.xlu0 %v2304, 32
        %v2508 = vpop.permute.xlu0 %2507
        %2509 = vrot.lane.b32.xlu0 %v2318, 32
        %v2510 = vpop.permute.xlu0 %2509
        %2511 = vrot.lane.b32.xlu0 %v2328, 32
        %v2512 = vpop.permute.xlu0 %2511
        %2513 = vrot.lane.b32.xlu0 %v2342, 32
        %v2514 = vpop.permute.xlu0 %2513
        %2515 = vrot.lane.b32.xlu0 %v2352, 32
        %v2516 = vpop.permute.xlu0 %2515
        %2517 = vrot.lane.b32.xlu0 %v2366, 32
        %v2518 = vpop.permute.xlu0 %2517
        %2519 = vrot.lane.b32.xlu0 %v2376, 32
        %v2520 = vpop.permute.xlu0 %2519
        %2521 = vrot.lane.b32.xlu0 %v2390, 32
        %v2522 = vpop.permute.xlu0 %2521
        %2523 = vrot.lane.b32.xlu0 %v2400, 32
        %v2524 = vpop.permute.xlu0 %2523
        %2525 = vrot.lane.b32.xlu0 %v2414, 32
        %v2526 = vpop.permute.xlu0 %2525
        %2527 = vrot.lane.b32.xlu0 %v2424, 32
        %v2528 = vpop.permute.xlu0 %2527
        %2529 = vrot.lane.b32.xlu0 %v2438, 32
        %v2530 = vpop.permute.xlu0 %2529
        %2531 = vrot.lane.b32.xlu0 %v2448, 32
        %v2532 = vpop.permute.xlu0 %2531
        %2533 = vrot.lane.b32.xlu0 %v2462, 32
        %v2534 = vpop.permute.xlu0 %2533
        %2535 = vrot.lane.b32.xlu0 %v2472, 32
        %v2536 = vpop.permute.xlu0 %2535
        %vm2569 = vcmask 322816
        %2570 = vst.msk [vmem:[#allocation3] sm:$0xf] %vm2569, %v2474
        %2571 = vst.msk [vmem:[#allocation3 + $0x4] sm:$0xf] %vm2569, %v2476
        %2572 = vst.msk [vmem:[#allocation3 + $0x8] sm:$0xf] %vm2569, %v2478
        %2573 = vst.msk [vmem:[#allocation3 + $0xc] sm:$0xf] %vm2569, %v2480
        %2574 = vst.msk [vmem:[#allocation3 + $0x10] sm:$0xf] %vm2569, %v2482
        %2575 = vst.msk [vmem:[#allocation3 + $0x14] sm:$0xf] %vm2569, %v2484
        %2576 = vst.msk [vmem:[#allocation3 + $0x18] sm:$0xf] %vm2569, %v2486
        %2577 = vst.msk [vmem:[#allocation3 + $0x1c] sm:$0xf] %vm2569, %v2488
        %2578 = vst.msk [vmem:[#allocation3 + $0x20] sm:$0xf] %vm2569, %v2490
        %2579 = vst.msk [vmem:[#allocation3 + $0x24] sm:$0xf] %vm2569, %v2492
        %2580 = vst.msk [vmem:[#allocation3 + $0x28] sm:$0xf] %vm2569, %v2494
        %2581 = vst.msk [vmem:[#allocation3 + $0x2c] sm:$0xf] %vm2569, %v2496
        %2582 = vst.msk [vmem:[#allocation3 + $0x30] sm:$0xf] %vm2569, %v2498
        %2583 = vst.msk [vmem:[#allocation3 + $0x34] sm:$0xf] %vm2569, %v2500
        %2584 = vst.msk [vmem:[#allocation3 + $0x38] sm:$0xf] %vm2569, %v2502
        %2585 = vst.msk [vmem:[#allocation3 + $0x3c] sm:$0xf] %vm2569, %v2504
        %2586 = vst.msk [vmem:[#allocation3 + $0x40] sm:$0xf] %vm2569, %v2506
        %2587 = vst.msk [vmem:[#allocation3 + $0x44] sm:$0xf] %vm2569, %v2508
        %2588 = vst.msk [vmem:[#allocation3 + $0x48] sm:$0xf] %vm2569, %v2510
        %2589 = vst.msk [vmem:[#allocation3 + $0x4c] sm:$0xf] %vm2569, %v2512
        %2590 = vst.msk [vmem:[#allocation3 + $0x50] sm:$0xf] %vm2569, %v2514
        %2591 = vst.msk [vmem:[#allocation3 + $0x54] sm:$0xf] %vm2569, %v2516
        %2592 = vst.msk [vmem:[#allocation3 + $0x58] sm:$0xf] %vm2569, %v2518
        %2593 = vst.msk [vmem:[#allocation3 + $0x5c] sm:$0xf] %vm2569, %v2520
        %2594 = vst.msk [vmem:[#allocation3 + $0x60] sm:$0xf] %vm2569, %v2522
        %2595 = vst.msk [vmem:[#allocation3 + $0x64] sm:$0xf] %vm2569, %v2524
        %2596 = vst.msk [vmem:[#allocation3 + $0x68] sm:$0xf] %vm2569, %v2526
        %2597 = vst.msk [vmem:[#allocation3 + $0x6c] sm:$0xf] %vm2569, %v2528
        %2598 = vst.msk [vmem:[#allocation3 + $0x70] sm:$0xf] %vm2569, %v2530
        %2599 = vst.msk [vmem:[#allocation3 + $0x74] sm:$0xf] %vm2569, %v2532
        %2600 = vst.msk [vmem:[#allocation3 + $0x78] sm:$0xf] %vm2569, %v2534
        %2601 = vst.msk [vmem:[#allocation3 + $0x7c] sm:$0xf] %vm2569, %v2536
        %v2602 = vld [vmem:[%s190] sm:$0xe]
        %v2603 = vld [vmem:[%s190 + $0x4] sm:$0xf]
        %v2604 = vld [vmem:[%s190 + $0x8] sm:$0x1]
        %v2605 = vld [vmem:[%s190 + $0xc] sm:$0xe]
        %v2606 = vld [vmem:[%s190 + $0x10] sm:$0xf]
        %v2607 = vld [vmem:[%s190 + $0x14] sm:$0x1]
        %v2608 = vld [vmem:[%s190 + $0x18] sm:$0xe]
        %v2609 = vld [vmem:[%s190 + $0x1c] sm:$0xf]
        %v2610 = vld [vmem:[%s190 + $0x20] sm:$0x1]
        %v2611 = vld [vmem:[%s190 + $0x24] sm:$0xe]
        %v2612 = vld [vmem:[%s190 + $0x28] sm:$0xf]
        %v2613 = vld [vmem:[%s190 + $0x2c] sm:$0x1]
        %v2614 = vld [vmem:[%s190 + $0x30] sm:$0xe]
        %v2615 = vld [vmem:[%s190 + $0x34] sm:$0xf]
        %v2616 = vld [vmem:[%s190 + $0x38] sm:$0x1]
        %v2617 = vld [vmem:[%s190 + $0x3c] sm:$0xe]
        %v2618 = vld [vmem:[%s190 + $0x40] sm:$0xf]
        %v2619 = vld [vmem:[%s190 + $0x44] sm:$0x1]
        %v2620 = vld [vmem:[%s190 + $0x48] sm:$0xe]
        %v2621 = vld [vmem:[%s190 + $0x4c] sm:$0xf]
        %v2622 = vld [vmem:[%s190 + $0x50] sm:$0x1]
        %v2623 = vld [vmem:[%s190 + $0x54] sm:$0xe]
        %v2624 = vld [vmem:[%s190 + $0x58] sm:$0xf]
        %v2625 = vld [vmem:[%s190 + $0x5c] sm:$0x1]
        %v2626 = vld [vmem:[%s190 + $0x60] sm:$0xe]
        %v2627 = vld [vmem:[%s190 + $0x64] sm:$0xf]
        %v2628 = vld [vmem:[%s190 + $0x68] sm:$0x1]
        %v2629 = vld [vmem:[%s190 + $0x6c] sm:$0xe]
        %v2630 = vld [vmem:[%s190 + $0x70] sm:$0xf]
        %v2631 = vld [vmem:[%s190 + $0x74] sm:$0x1]
        %v2632 = vld [vmem:[%s190 + $0x78] sm:$0xe]
        %v2633 = vld [vmem:[%s190 + $0x7c] sm:$0xf]
        %v2634 = vld [vmem:[%s190 + $0x80] sm:$0x1]
        %v2635 = vld [vmem:[%s190 + $0x84] sm:$0xe]
        %v2636 = vld [vmem:[%s190 + $0x88] sm:$0xf]
        %v2637 = vld [vmem:[%s190 + $0x8c] sm:$0x1]
        %v2638 = vld [vmem:[%s190 + $0x90] sm:$0xe]
        %v2639 = vld [vmem:[%s190 + $0x94] sm:$0xf]
        %v2640 = vld [vmem:[%s190 + $0x98] sm:$0x1]
        %v2641 = vld [vmem:[%s190 + $0x9c] sm:$0xe]
        %v2642 = vld [vmem:[%s190 + $0xa0] sm:$0xf]
        %v2643 = vld [vmem:[%s190 + $0xa4] sm:$0x1]
        %v2644 = vld [vmem:[%s190 + $0xa8] sm:$0xe]
        %v2645 = vld [vmem:[%s190 + $0xac] sm:$0xf]
        %v2646 = vld [vmem:[%s190 + $0xb0] sm:$0x1]
        %v2647 = vld [vmem:[%s190 + $0xb4] sm:$0xe]
        %v2648 = vld [vmem:[%s190 + $0xb8] sm:$0xf]
        %v2649 = vld [vmem:[%s190 + $0xbc] sm:$0x1]
        %v2698 = vrot.slane %v2602, 5
        %v2699 = vrot.slane %v2698, 4
        %v2700 = vrot.slane %v2603, 5
        %v2701 = vsel %vm1606, %v2699, %v2700
        %v2702 = vrot.slane %v2700, 4
        %v2703 = vrot.slane %v2604, 5
        %v2704 = vsel %vm1606, %v2702, %v2703
        %v2705 = vrot.slane %v2605, 5
        %v2706 = vrot.slane %v2705, 4
        %v2707 = vrot.slane %v2606, 5
        %v2708 = vsel %vm1606, %v2706, %v2707
        %v2709 = vrot.slane %v2707, 4
        %v2710 = vrot.slane %v2607, 5
        %v2711 = vsel %vm1606, %v2709, %v2710
        %v2712 = vrot.slane %v2608, 5
        %v2713 = vrot.slane %v2712, 4
        %v2714 = vrot.slane %v2609, 5
        %v2715 = vsel %vm1606, %v2713, %v2714
        %v2716 = vrot.slane %v2714, 4
        %v2717 = vrot.slane %v2610, 5
        %v2718 = vsel %vm1606, %v2716, %v2717
        %v2719 = vrot.slane %v2611, 5
        %v2720 = vrot.slane %v2719, 4
        %v2721 = vrot.slane %v2612, 5
        %v2722 = vsel %vm1606, %v2720, %v2721
        %v2723 = vrot.slane %v2721, 4
        %v2724 = vrot.slane %v2613, 5
        %v2725 = vsel %vm1606, %v2723, %v2724
        %v2726 = vrot.slane %v2614, 5
        %v2727 = vrot.slane %v2726, 4
        %v2728 = vrot.slane %v2615, 5
        %v2729 = vsel %vm1606, %v2727, %v2728
        %v2730 = vrot.slane %v2728, 4
        %v2731 = vrot.slane %v2616, 5
        %v2732 = vsel %vm1606, %v2730, %v2731
        %v2733 = vrot.slane %v2617, 5
        %v2734 = vrot.slane %v2733, 4
        %v2735 = vrot.slane %v2618, 5
        %v2736 = vsel %vm1606, %v2734, %v2735
        %v2737 = vrot.slane %v2735, 4
        %v2738 = vrot.slane %v2619, 5
        %v2739 = vsel %vm1606, %v2737, %v2738
        %v2740 = vrot.slane %v2620, 5
        %v2741 = vrot.slane %v2740, 4
        %v2742 = vrot.slane %v2621, 5
        %v2743 = vsel %vm1606, %v2741, %v2742
        %v2744 = vrot.slane %v2742, 4
        %v2745 = vrot.slane %v2622, 5
        %v2746 = vsel %vm1606, %v2744, %v2745
        %v2747 = vrot.slane %v2623, 5
        %v2748 = vrot.slane %v2747, 4
        %v2749 = vrot.slane %v2624, 5
        %v2750 = vsel %vm1606, %v2748, %v2749
        %v2751 = vrot.slane %v2749, 4
        %v2752 = vrot.slane %v2625, 5
        %v2753 = vsel %vm1606, %v2751, %v2752
        %v2754 = vrot.slane %v2626, 5
        %v2755 = vrot.slane %v2754, 4
        %v2756 = vrot.slane %v2627, 5
        %v2757 = vsel %vm1606, %v2755, %v2756
        %v2758 = vrot.slane %v2756, 4
        %v2759 = vrot.slane %v2628, 5
        %v2760 = vsel %vm1606, %v2758, %v2759
        %v2761 = vrot.slane %v2629, 5
        %v2762 = vrot.slane %v2761, 4
        %v2763 = vrot.slane %v2630, 5
        %v2764 = vsel %vm1606, %v2762, %v2763
        %v2765 = vrot.slane %v2763, 4
        %v2766 = vrot.slane %v2631, 5
        %v2767 = vsel %vm1606, %v2765, %v2766
        %v2768 = vrot.slane %v2632, 5
        %v2769 = vrot.slane %v2768, 4
        %v2770 = vrot.slane %v2633, 5
        %v2771 = vsel %vm1606, %v2769, %v2770
        %v2772 = vrot.slane %v2770, 4
        %v2773 = vrot.slane %v2634, 5
        %v2774 = vsel %vm1606, %v2772, %v2773
        %v2775 = vrot.slane %v2635, 5
        %v2776 = vrot.slane %v2775, 4
        %v2777 = vrot.slane %v2636, 5
        %v2778 = vsel %vm1606, %v2776, %v2777
        %v2779 = vrot.slane %v2777, 4
        %v2780 = vrot.slane %v2637, 5
        %v2781 = vsel %vm1606, %v2779, %v2780
        %v2782 = vrot.slane %v2638, 5
        %v2783 = vrot.slane %v2782, 4
        %v2784 = vrot.slane %v2639, 5
        %v2785 = vsel %vm1606, %v2783, %v2784
        %v2786 = vrot.slane %v2784, 4
        %v2787 = vrot.slane %v2640, 5
        %v2788 = vsel %vm1606, %v2786, %v2787
        %v2789 = vrot.slane %v2641, 5
        %v2790 = vrot.slane %v2789, 4
        %v2791 = vrot.slane %v2642, 5
        %v2792 = vsel %vm1606, %v2790, %v2791
        %v2793 = vrot.slane %v2791, 4
        %v2794 = vrot.slane %v2643, 5
        %v2795 = vsel %vm1606, %v2793, %v2794
        %v2796 = vrot.slane %v2644, 5
        %v2797 = vrot.slane %v2796, 4
        %v2798 = vrot.slane %v2645, 5
        %v2799 = vsel %vm1606, %v2797, %v2798
        %v2800 = vrot.slane %v2798, 4
        %v2801 = vrot.slane %v2646, 5
        %v2802 = vsel %vm1606, %v2800, %v2801
        %v2803 = vrot.slane %v2647, 5
        %v2804 = vrot.slane %v2803, 4
        %v2805 = vrot.slane %v2648, 5
        %v2806 = vsel %vm1606, %v2804, %v2805
        %v2807 = vrot.slane %v2805, 4
        %v2808 = vrot.slane %v2649, 5
        %v2809 = vsel %vm1606, %v2807, %v2808
        %2810 = vrot.lane.b32.xlu0 %v2701, 40
        %v2811 = vpop.permute.xlu0 %2810
        %2812 = vrot.lane.b32.xlu0 %v2704, 40
        %v2813 = vpop.permute.xlu0 %2812
        %2814 = vrot.lane.b32.xlu0 %v2708, 40
        %v2815 = vpop.permute.xlu0 %2814
        %2816 = vrot.lane.b32.xlu0 %v2711, 40
        %v2817 = vpop.permute.xlu0 %2816
        %2818 = vrot.lane.b32.xlu0 %v2715, 40
        %v2819 = vpop.permute.xlu0 %2818
        %2820 = vrot.lane.b32.xlu0 %v2718, 40
        %v2821 = vpop.permute.xlu0 %2820
        %2822 = vrot.lane.b32.xlu0 %v2722, 40
        %v2823 = vpop.permute.xlu0 %2822
        %2824 = vrot.lane.b32.xlu0 %v2725, 40
        %v2825 = vpop.permute.xlu0 %2824
        %2826 = vrot.lane.b32.xlu0 %v2729, 40
        %v2827 = vpop.permute.xlu0 %2826
        %2828 = vrot.lane.b32.xlu0 %v2732, 40
        %v2829 = vpop.permute.xlu0 %2828
        %2830 = vrot.lane.b32.xlu0 %v2736, 40
        %v2831 = vpop.permute.xlu0 %2830
        %2832 = vrot.lane.b32.xlu0 %v2739, 40
        %v2833 = vpop.permute.xlu0 %2832
        %2834 = vrot.lane.b32.xlu0 %v2743, 40
        %v2835 = vpop.permute.xlu0 %2834
        %2836 = vrot.lane.b32.xlu0 %v2746, 40
        %v2837 = vpop.permute.xlu0 %2836
        %2838 = vrot.lane.b32.xlu0 %v2750, 40
        %v2839 = vpop.permute.xlu0 %2838
        %2840 = vrot.lane.b32.xlu0 %v2753, 40
        %v2841 = vpop.permute.xlu0 %2840
        %2842 = vrot.lane.b32.xlu0 %v2757, 40
        %v2843 = vpop.permute.xlu0 %2842
        %2844 = vrot.lane.b32.xlu0 %v2760, 40
        %v2845 = vpop.permute.xlu0 %2844
        %2846 = vrot.lane.b32.xlu0 %v2764, 40
        %v2847 = vpop.permute.xlu0 %2846
        %2848 = vrot.lane.b32.xlu0 %v2767, 40
        %v2849 = vpop.permute.xlu0 %2848
        %2850 = vrot.lane.b32.xlu0 %v2771, 40
        %v2851 = vpop.permute.xlu0 %2850
        %2852 = vrot.lane.b32.xlu0 %v2774, 40
        %v2853 = vpop.permute.xlu0 %2852
        %2854 = vrot.lane.b32.xlu0 %v2778, 40
        %v2855 = vpop.permute.xlu0 %2854
        %2856 = vrot.lane.b32.xlu0 %v2781, 40
        %v2857 = vpop.permute.xlu0 %2856
        %2858 = vrot.lane.b32.xlu0 %v2785, 40
        %v2859 = vpop.permute.xlu0 %2858
        %2860 = vrot.lane.b32.xlu0 %v2788, 40
        %v2861 = vpop.permute.xlu0 %2860
        %2862 = vrot.lane.b32.xlu0 %v2792, 40
        %v2863 = vpop.permute.xlu0 %2862
        %2864 = vrot.lane.b32.xlu0 %v2795, 40
        %v2865 = vpop.permute.xlu0 %2864
        %2866 = vrot.lane.b32.xlu0 %v2799, 40
        %v2867 = vpop.permute.xlu0 %2866
        %2868 = vrot.lane.b32.xlu0 %v2802, 40
        %v2869 = vpop.permute.xlu0 %2868
        %2870 = vrot.lane.b32.xlu0 %v2806, 40
        %v2871 = vpop.permute.xlu0 %2870
        %2872 = vrot.lane.b32.xlu0 %v2809, 40
        %v2873 = vpop.permute.xlu0 %2872
        %vm2906 = vcmask 388416
        %2907 = vst.msk [vmem:[#allocation3] sm:$0xf] %vm2906, %v2811
        %2908 = vst.msk [vmem:[#allocation3 + $0x4] sm:$0xf] %vm2906, %v2813
        %2909 = vst.msk [vmem:[#allocation3 + $0x8] sm:$0xf] %vm2906, %v2815
        %2910 = vst.msk [vmem:[#allocation3 + $0xc] sm:$0xf] %vm2906, %v2817
        %2911 = vst.msk [vmem:[#allocation3 + $0x10] sm:$0xf] %vm2906, %v2819
        %2912 = vst.msk [vmem:[#allocation3 + $0x14] sm:$0xf] %vm2906, %v2821
        %2913 = vst.msk [vmem:[#allocation3 + $0x18] sm:$0xf] %vm2906, %v2823
        %2914 = vst.msk [vmem:[#allocation3 + $0x1c] sm:$0xf] %vm2906, %v2825
        %2915 = vst.msk [vmem:[#allocation3 + $0x20] sm:$0xf] %vm2906, %v2827
        %2916 = vst.msk [vmem:[#allocation3 + $0x24] sm:$0xf] %vm2906, %v2829
        %2917 = vst.msk [vmem:[#allocation3 + $0x28] sm:$0xf] %vm2906, %v2831
        %2918 = vst.msk [vmem:[#allocation3 + $0x2c] sm:$0xf] %vm2906, %v2833
        %2919 = vst.msk [vmem:[#allocation3 + $0x30] sm:$0xf] %vm2906, %v2835
        %2920 = vst.msk [vmem:[#allocation3 + $0x34] sm:$0xf] %vm2906, %v2837
        %2921 = vst.msk [vmem:[#allocation3 + $0x38] sm:$0xf] %vm2906, %v2839
        %2922 = vst.msk [vmem:[#allocation3 + $0x3c] sm:$0xf] %vm2906, %v2841
        %2923 = vst.msk [vmem:[#allocation3 + $0x40] sm:$0xf] %vm2906, %v2843
        %2924 = vst.msk [vmem:[#allocation3 + $0x44] sm:$0xf] %vm2906, %v2845
        %2925 = vst.msk [vmem:[#allocation3 + $0x48] sm:$0xf] %vm2906, %v2847
        %2926 = vst.msk [vmem:[#allocation3 + $0x4c] sm:$0xf] %vm2906, %v2849
        %2927 = vst.msk [vmem:[#allocation3 + $0x50] sm:$0xf] %vm2906, %v2851
        %2928 = vst.msk [vmem:[#allocation3 + $0x54] sm:$0xf] %vm2906, %v2853
        %2929 = vst.msk [vmem:[#allocation3 + $0x58] sm:$0xf] %vm2906, %v2855
        %2930 = vst.msk [vmem:[#allocation3 + $0x5c] sm:$0xf] %vm2906, %v2857
        %2931 = vst.msk [vmem:[#allocation3 + $0x60] sm:$0xf] %vm2906, %v2859
        %2932 = vst.msk [vmem:[#allocation3 + $0x64] sm:$0xf] %vm2906, %v2861
        %2933 = vst.msk [vmem:[#allocation3 + $0x68] sm:$0xf] %vm2906, %v2863
        %2934 = vst.msk [vmem:[#allocation3 + $0x6c] sm:$0xf] %vm2906, %v2865
        %2935 = vst.msk [vmem:[#allocation3 + $0x70] sm:$0xf] %vm2906, %v2867
        %2936 = vst.msk [vmem:[#allocation3 + $0x74] sm:$0xf] %vm2906, %v2869
        %2937 = vst.msk [vmem:[#allocation3 + $0x78] sm:$0xf] %vm2906, %v2871
        %2938 = vst.msk [vmem:[#allocation3 + $0x7c] sm:$0xf] %vm2906, %v2873
        %s2939 = scalar_lea.vmem [#allocation2], 24
        %v2940 = vld [vmem:[%s2939] sm:$0xf]
        %v2941 = vld [vmem:[%s2939 + $0x4] sm:$0xf]
        %v2942 = vld [vmem:[%s2939 + $0xc] sm:$0xf]
        %v2943 = vld [vmem:[%s2939 + $0x10] sm:$0xf]
        %v2944 = vld [vmem:[%s2939 + $0x18] sm:$0xf]
        %v2945 = vld [vmem:[%s2939 + $0x1c] sm:$0xf]
        %v2946 = vld [vmem:[%s2939 + $0x24] sm:$0xf]
        %v2947 = vld [vmem:[%s2939 + $0x28] sm:$0xf]
        %v2948 = vld [vmem:[%s2939 + $0x30] sm:$0xf]
        %v2949 = vld [vmem:[%s2939 + $0x34] sm:$0xf]
        %v2950 = vld [vmem:[%s2939 + $0x3c] sm:$0xf]
        %v2951 = vld [vmem:[%s2939 + $0x40] sm:$0xf]
        %v2952 = vld [vmem:[%s2939 + $0x48] sm:$0xf]
        %v2953 = vld [vmem:[%s2939 + $0x4c] sm:$0xf]
        %v2954 = vld [vmem:[%s2939 + $0x54] sm:$0xf]
        %v2955 = vld [vmem:[%s2939 + $0x58] sm:$0xf]
        %v2956 = vld [vmem:[%s2939 + $0x60] sm:$0xf]
        %v2957 = vld [vmem:[%s2939 + $0x64] sm:$0xf]
        %v2958 = vld [vmem:[%s2939 + $0x6c] sm:$0xf]
        %v2959 = vld [vmem:[%s2939 + $0x70] sm:$0xf]
        %v2960 = vld [vmem:[%s2939 + $0x78] sm:$0xf]
        %v2961 = vld [vmem:[%s2939 + $0x7c] sm:$0xf]
        %v2962 = vld [vmem:[%s2939 + $0x84] sm:$0xf]
        %v2963 = vld [vmem:[%s2939 + $0x88] sm:$0xf]
        %v2964 = vld [vmem:[%s2939 + $0x90] sm:$0xf]
        %v2965 = vld [vmem:[%s2939 + $0x94] sm:$0xf]
        %v2966 = vld [vmem:[%s2939 + $0x9c] sm:$0xf]
        %v2967 = vld [vmem:[%s2939 + $0xa0] sm:$0xf]
        %v2968 = vld [vmem:[%s2939 + $0xa8] sm:$0xf]
        %v2969 = vld [vmem:[%s2939 + $0xac] sm:$0xf]
        %v2970 = vld [vmem:[%s2939 + $0xb4] sm:$0xf]
        %v2971 = vld [vmem:[%s2939 + $0xb8] sm:$0xf]
        %3004 = vrot.lane.b32.xlu0 %v2940, 48
        %v3005 = vpop.permute.xlu0 %3004
        %3006 = vrot.lane.b32.xlu0 %v2941, 48
        %v3007 = vpop.permute.xlu0 %3006
        %3008 = vrot.lane.b32.xlu0 %v2942, 48
        %v3009 = vpop.permute.xlu0 %3008
        %3010 = vrot.lane.b32.xlu0 %v2943, 48
        %v3011 = vpop.permute.xlu0 %3010
        %3012 = vrot.lane.b32.xlu0 %v2944, 48
        %v3013 = vpop.permute.xlu0 %3012
        %3014 = vrot.lane.b32.xlu0 %v2945, 48
        %v3015 = vpop.permute.xlu0 %3014
        %3016 = vrot.lane.b32.xlu0 %v2946, 48
        %v3017 = vpop.permute.xlu0 %3016
        %3018 = vrot.lane.b32.xlu0 %v2947, 48
        %v3019 = vpop.permute.xlu0 %3018
        %3020 = vrot.lane.b32.xlu0 %v2948, 48
        %v3021 = vpop.permute.xlu0 %3020
        %3022 = vrot.lane.b32.xlu0 %v2949, 48
        %v3023 = vpop.permute.xlu0 %3022
        %3024 = vrot.lane.b32.xlu0 %v2950, 48
        %v3025 = vpop.permute.xlu0 %3024
        %3026 = vrot.lane.b32.xlu0 %v2951, 48
        %v3027 = vpop.permute.xlu0 %3026
        %3028 = vrot.lane.b32.xlu0 %v2952, 48
        %v3029 = vpop.permute.xlu0 %3028
        %3030 = vrot.lane.b32.xlu0 %v2953, 48
        %v3031 = vpop.permute.xlu0 %3030
        %3032 = vrot.lane.b32.xlu0 %v2954, 48
        %v3033 = vpop.permute.xlu0 %3032
        %3034 = vrot.lane.b32.xlu0 %v2955, 48
        %v3035 = vpop.permute.xlu0 %3034
        %3036 = vrot.lane.b32.xlu0 %v2956, 48
        %v3037 = vpop.permute.xlu0 %3036
        %3038 = vrot.lane.b32.xlu0 %v2957, 48
        %v3039 = vpop.permute.xlu0 %3038
        %3040 = vrot.lane.b32.xlu0 %v2958, 48
        %v3041 = vpop.permute.xlu0 %3040
        %3042 = vrot.lane.b32.xlu0 %v2959, 48
        %v3043 = vpop.permute.xlu0 %3042
        %3044 = vrot.lane.b32.xlu0 %v2960, 48
        %v3045 = vpop.permute.xlu0 %3044
        %3046 = vrot.lane.b32.xlu0 %v2961, 48
        %v3047 = vpop.permute.xlu0 %3046
        %3048 = vrot.lane.b32.xlu0 %v2962, 48
        %v3049 = vpop.permute.xlu0 %3048
        %3050 = vrot.lane.b32.xlu0 %v2963, 48
        %v3051 = vpop.permute.xlu0 %3050
        %3052 = vrot.lane.b32.xlu0 %v2964, 48
        %v3053 = vpop.permute.xlu0 %3052
        %3054 = vrot.lane.b32.xlu0 %v2965, 48
        %v3055 = vpop.permute.xlu0 %3054
        %3056 = vrot.lane.b32.xlu0 %v2966, 48
        %v3057 = vpop.permute.xlu0 %3056
        %3058 = vrot.lane.b32.xlu0 %v2967, 48
        %v3059 = vpop.permute.xlu0 %3058
        %3060 = vrot.lane.b32.xlu0 %v2968, 48
        %v3061 = vpop.permute.xlu0 %3060
        %3062 = vrot.lane.b32.xlu0 %v2969, 48
        %v3063 = vpop.permute.xlu0 %3062
        %3064 = vrot.lane.b32.xlu0 %v2970, 48
        %v3065 = vpop.permute.xlu0 %3064
        %3066 = vrot.lane.b32.xlu0 %v2971, 48
        %v3067 = vpop.permute.xlu0 %3066
        %vm3100 = vcmask 454016
        %3101 = vst.msk [vmem:[#allocation3] sm:$0xf] %vm3100, %v3005
        %3102 = vst.msk [vmem:[#allocation3 + $0x4] sm:$0xf] %vm3100, %v3007
        %3103 = vst.msk [vmem:[#allocation3 + $0x8] sm:$0xf] %vm3100, %v3009
        %3104 = vst.msk [vmem:[#allocation3 + $0xc] sm:$0xf] %vm3100, %v3011
        %3105 = vst.msk [vmem:[#allocation3 + $0x10] sm:$0xf] %vm3100, %v3013
        %3106 = vst.msk [vmem:[#allocation3 + $0x14] sm:$0xf] %vm3100, %v3015
        %3107 = vst.msk [vmem:[#allocation3 + $0x18] sm:$0xf] %vm3100, %v3017
        %3108 = vst.msk [vmem:[#allocation3 + $0x1c] sm:$0xf] %vm3100, %v3019
        %3109 = vst.msk [vmem:[#allocation3 + $0x20] sm:$0xf] %vm3100, %v3021
        %3110 = vst.msk [vmem:[#allocation3 + $0x24] sm:$0xf] %vm3100, %v3023
        %3111 = vst.msk [vmem:[#allocation3 + $0x28] sm:$0xf] %vm3100, %v3025
        %3112 = vst.msk [vmem:[#allocation3 + $0x2c] sm:$0xf] %vm3100, %v3027
        %3113 = vst.msk [vmem:[#allocation3 + $0x30] sm:$0xf] %vm3100, %v3029
        %3114 = vst.msk [vmem:[#allocation3 + $0x34] sm:$0xf] %vm3100, %v3031
        %3115 = vst.msk [vmem:[#allocation3 + $0x38] sm:$0xf] %vm3100, %v3033
        %3116 = vst.msk [vmem:[#allocation3 + $0x3c] sm:$0xf] %vm3100, %v3035
        %3117 = vst.msk [vmem:[#allocation3 + $0x40] sm:$0xf] %vm3100, %v3037
        %3118 = vst.msk [vmem:[#allocation3 + $0x44] sm:$0xf] %vm3100, %v3039
        %3119 = vst.msk [vmem:[#allocation3 + $0x48] sm:$0xf] %vm3100, %v3041
        %3120 = vst.msk [vmem:[#allocation3 + $0x4c] sm:$0xf] %vm3100, %v3043
        %3121 = vst.msk [vmem:[#allocation3 + $0x50] sm:$0xf] %vm3100, %v3045
        %3122 = vst.msk [vmem:[#allocation3 + $0x54] sm:$0xf] %vm3100, %v3047
        %3123 = vst.msk [vmem:[#allocation3 + $0x58] sm:$0xf] %vm3100, %v3049
        %3124 = vst.msk [vmem:[#allocation3 + $0x5c] sm:$0xf] %vm3100, %v3051
        %3125 = vst.msk [vmem:[#allocation3 + $0x60] sm:$0xf] %vm3100, %v3053
        %3126 = vst.msk [vmem:[#allocation3 + $0x64] sm:$0xf] %vm3100, %v3055
        %3127 = vst.msk [vmem:[#allocation3 + $0x68] sm:$0xf] %vm3100, %v3057
        %3128 = vst.msk [vmem:[#allocation3 + $0x6c] sm:$0xf] %vm3100, %v3059
        %3129 = vst.msk [vmem:[#allocation3 + $0x70] sm:$0xf] %vm3100, %v3061
        %3130 = vst.msk [vmem:[#allocation3 + $0x74] sm:$0xf] %vm3100, %v3063
        %3131 = vst.msk [vmem:[#allocation3 + $0x78] sm:$0xf] %vm3100, %v3065
        %3132 = vst.msk [vmem:[#allocation3 + $0x7c] sm:$0xf] %vm3100, %v3067
        %v3133 = vld [vmem:[%s2939] sm:$0xf]
        %v3134 = vld [vmem:[%s2939 + $0x4] sm:$0xf]
        %v3135 = vld [vmem:[%s2939 + $0x8] sm:$0x1]
        %v3136 = vld [vmem:[%s2939 + $0xc] sm:$0xf]
        %v3137 = vld [vmem:[%s2939 + $0x10] sm:$0xf]
        %v3138 = vld [vmem:[%s2939 + $0x14] sm:$0x1]
        %v3139 = vld [vmem:[%s2939 + $0x18] sm:$0xf]
        %v3140 = vld [vmem:[%s2939 + $0x1c] sm:$0xf]
        %v3141 = vld [vmem:[%s2939 + $0x20] sm:$0x1]
        %v3142 = vld [vmem:[%s2939 + $0x24] sm:$0xf]
        %v3143 = vld [vmem:[%s2939 + $0x28] sm:$0xf]
        %v3144 = vld [vmem:[%s2939 + $0x2c] sm:$0x1]
        %v3145 = vld [vmem:[%s2939 + $0x30] sm:$0xf]
        %v3146 = vld [vmem:[%s2939 + $0x34] sm:$0xf]
        %v3147 = vld [vmem:[%s2939 + $0x38] sm:$0x1]
        %v3148 = vld [vmem:[%s2939 + $0x3c] sm:$0xf]
        %v3149 = vld [vmem:[%s2939 + $0x40] sm:$0xf]
        %v3150 = vld [vmem:[%s2939 + $0x44] sm:$0x1]
        %v3151 = vld [vmem:[%s2939 + $0x48] sm:$0xf]
        %v3152 = vld [vmem:[%s2939 + $0x4c] sm:$0xf]
        %v3153 = vld [vmem:[%s2939 + $0x50] sm:$0x1]
        %v3154 = vld [vmem:[%s2939 + $0x54] sm:$0xf]
        %v3155 = vld [vmem:[%s2939 + $0x58] sm:$0xf]
        %v3156 = vld [vmem:[%s2939 + $0x5c] sm:$0x1]
        %v3157 = vld [vmem:[%s2939 + $0x60] sm:$0xf]
        %v3158 = vld [vmem:[%s2939 + $0x64] sm:$0xf]
        %v3159 = vld [vmem:[%s2939 + $0x68] sm:$0x1]
        %v3160 = vld [vmem:[%s2939 + $0x6c] sm:$0xf]
        %v3161 = vld [vmem:[%s2939 + $0x70] sm:$0xf]
        %v3162 = vld [vmem:[%s2939 + $0x74] sm:$0x1]
        %v3163 = vld [vmem:[%s2939 + $0x78] sm:$0xf]
        %v3164 = vld [vmem:[%s2939 + $0x7c] sm:$0xf]
        %v3165 = vld [vmem:[%s2939 + $0x80] sm:$0x1]
        %v3166 = vld [vmem:[%s2939 + $0x84] sm:$0xf]
        %v3167 = vld [vmem:[%s2939 + $0x88] sm:$0xf]
        %v3168 = vld [vmem:[%s2939 + $0x8c] sm:$0x1]
        %v3169 = vld [vmem:[%s2939 + $0x90] sm:$0xf]
        %v3170 = vld [vmem:[%s2939 + $0x94] sm:$0xf]
        %v3171 = vld [vmem:[%s2939 + $0x98] sm:$0x1]
        %v3172 = vld [vmem:[%s2939 + $0x9c] sm:$0xf]
        %v3173 = vld [vmem:[%s2939 + $0xa0] sm:$0xf]
        %v3174 = vld [vmem:[%s2939 + $0xa4] sm:$0x1]
        %v3175 = vld [vmem:[%s2939 + $0xa8] sm:$0xf]
        %v3176 = vld [vmem:[%s2939 + $0xac] sm:$0xf]
        %v3177 = vld [vmem:[%s2939 + $0xb0] sm:$0x1]
        %v3178 = vld [vmem:[%s2939 + $0xb4] sm:$0xf]
        %v3179 = vld [vmem:[%s2939 + $0xb8] sm:$0xf]
        %v3180 = vld [vmem:[%s2939 + $0xbc] sm:$0x1]
        %v3182 = vshrl.u32 %v3133, 16
        %v3184 = vrot.slane %v3182, 4
        %v3185 = vshll.u32 %v3133, 16
        %v3187 = vrot.slane %v3185, 5
        %v3188 = vor.u32 %v3184, %v3187
        %v3189 = vrot.slane %v3188, 4
        %v3191 = vshll.u32 %v3134, 16
        %v3193 = vrot.slane %v3191, 5
        %v3194 = vsel %vm994, %v3189, %v3193
        %v3195 = vshrl.u32 %v3134, 16
        %v3197 = vrot.slane %v3195, 4
        %v3198 = vor.u32 %v3197, %v3193
        %v3199 = vrot.slane %v3198, 4
        %v3201 = vshll.u32 %v3135, 16
        %v3203 = vrot.slane %v3201, 5
        %v3204 = vsel %vm994, %v3199, %v3203
        %v3206 = vshrl.u32 %v3136, 16
        %v3208 = vrot.slane %v3206, 4
        %v3209 = vshll.u32 %v3136, 16
        %v3211 = vrot.slane %v3209, 5
        %v3212 = vor.u32 %v3208, %v3211
        %v3213 = vrot.slane %v3212, 4
        %v3215 = vshll.u32 %v3137, 16
        %v3217 = vrot.slane %v3215, 5
        %v3218 = vsel %vm994, %v3213, %v3217
        %v3219 = vshrl.u32 %v3137, 16
        %v3221 = vrot.slane %v3219, 4
        %v3222 = vor.u32 %v3221, %v3217
        %v3223 = vrot.slane %v3222, 4
        %v3225 = vshll.u32 %v3138, 16
        %v3227 = vrot.slane %v3225, 5
        %v3228 = vsel %vm994, %v3223, %v3227
        %v3230 = vshrl.u32 %v3139, 16
        %v3232 = vrot.slane %v3230, 4
        %v3233 = vshll.u32 %v3139, 16
        %v3235 = vrot.slane %v3233, 5
        %v3236 = vor.u32 %v3232, %v3235
        %v3237 = vrot.slane %v3236, 4
        %v3239 = vshll.u32 %v3140, 16
        %v3241 = vrot.slane %v3239, 5
        %v3242 = vsel %vm994, %v3237, %v3241
        %v3243 = vshrl.u32 %v3140, 16
        %v3245 = vrot.slane %v3243, 4
        %v3246 = vor.u32 %v3245, %v3241
        %v3247 = vrot.slane %v3246, 4
        %v3249 = vshll.u32 %v3141, 16
        %v3251 = vrot.slane %v3249, 5
        %v3252 = vsel %vm994, %v3247, %v3251
        %v3254 = vshrl.u32 %v3142, 16
        %v3256 = vrot.slane %v3254, 4
        %v3257 = vshll.u32 %v3142, 16
        %v3259 = vrot.slane %v3257, 5
        %v3260 = vor.u32 %v3256, %v3259
        %v3261 = vrot.slane %v3260, 4
        %v3263 = vshll.u32 %v3143, 16
        %v3265 = vrot.slane %v3263, 5
        %v3266 = vsel %vm994, %v3261, %v3265
        %v3267 = vshrl.u32 %v3143, 16
        %v3269 = vrot.slane %v3267, 4
        %v3270 = vor.u32 %v3269, %v3265
        %v3271 = vrot.slane %v3270, 4
        %v3273 = vshll.u32 %v3144, 16
        %v3275 = vrot.slane %v3273, 5
        %v3276 = vsel %vm994, %v3271, %v3275
        %v3278 = vshrl.u32 %v3145, 16
        %v3280 = vrot.slane %v3278, 4
        %v3281 = vshll.u32 %v3145, 16
        %v3283 = vrot.slane %v3281, 5
        %v3284 = vor.u32 %v3280, %v3283
        %v3285 = vrot.slane %v3284, 4
        %v3287 = vshll.u32 %v3146, 16
        %v3289 = vrot.slane %v3287, 5
        %v3290 = vsel %vm994, %v3285, %v3289
        %v3291 = vshrl.u32 %v3146, 16
        %v3293 = vrot.slane %v3291, 4
        %v3294 = vor.u32 %v3293, %v3289
        %v3295 = vrot.slane %v3294, 4
        %v3297 = vshll.u32 %v3147, 16
        %v3299 = vrot.slane %v3297, 5
        %v3300 = vsel %vm994, %v3295, %v3299
        %v3302 = vshrl.u32 %v3148, 16
        %v3304 = vrot.slane %v3302, 4
        %v3305 = vshll.u32 %v3148, 16
        %v3307 = vrot.slane %v3305, 5
        %v3308 = vor.u32 %v3304, %v3307
        %v3309 = vrot.slane %v3308, 4
        %v3311 = vshll.u32 %v3149, 16
        %v3313 = vrot.slane %v3311, 5
        %v3314 = vsel %vm994, %v3309, %v3313
        %v3315 = vshrl.u32 %v3149, 16
        %v3317 = vrot.slane %v3315, 4
        %v3318 = vor.u32 %v3317, %v3313
        %v3319 = vrot.slane %v3318, 4
        %v3321 = vshll.u32 %v3150, 16
        %v3323 = vrot.slane %v3321, 5
        %v3324 = vsel %vm994, %v3319, %v3323
        %v3326 = vshrl.u32 %v3151, 16
        %v3328 = vrot.slane %v3326, 4
        %v3329 = vshll.u32 %v3151, 16
        %v3331 = vrot.slane %v3329, 5
        %v3332 = vor.u32 %v3328, %v3331
        %v3333 = vrot.slane %v3332, 4
        %v3335 = vshll.u32 %v3152, 16
        %v3337 = vrot.slane %v3335, 5
        %v3338 = vsel %vm994, %v3333, %v3337
        %v3339 = vshrl.u32 %v3152, 16
        %v3341 = vrot.slane %v3339, 4
        %v3342 = vor.u32 %v3341, %v3337
        %v3343 = vrot.slane %v3342, 4
        %v3345 = vshll.u32 %v3153, 16
        %v3347 = vrot.slane %v3345, 5
        %v3348 = vsel %vm994, %v3343, %v3347
        %v3350 = vshrl.u32 %v3154, 16
        %v3352 = vrot.slane %v3350, 4
        %v3353 = vshll.u32 %v3154, 16
        %v3355 = vrot.slane %v3353, 5
        %v3356 = vor.u32 %v3352, %v3355
        %v3357 = vrot.slane %v3356, 4
        %v3359 = vshll.u32 %v3155, 16
        %v3361 = vrot.slane %v3359, 5
        %v3362 = vsel %vm994, %v3357, %v3361
        %v3363 = vshrl.u32 %v3155, 16
        %v3365 = vrot.slane %v3363, 4
        %v3366 = vor.u32 %v3365, %v3361
        %v3367 = vrot.slane %v3366, 4
        %v3369 = vshll.u32 %v3156, 16
        %v3371 = vrot.slane %v3369, 5
        %v3372 = vsel %vm994, %v3367, %v3371
        %v3374 = vshrl.u32 %v3157, 16
        %v3376 = vrot.slane %v3374, 4
        %v3377 = vshll.u32 %v3157, 16
        %v3379 = vrot.slane %v3377, 5
        %v3380 = vor.u32 %v3376, %v3379
        %v3381 = vrot.slane %v3380, 4
        %v3383 = vshll.u32 %v3158, 16
        %v3385 = vrot.slane %v3383, 5
        %v3386 = vsel %vm994, %v3381, %v3385
        %v3387 = vshrl.u32 %v3158, 16
        %v3389 = vrot.slane %v3387, 4
        %v3390 = vor.u32 %v3389, %v3385
        %v3391 = vrot.slane %v3390, 4
        %v3393 = vshll.u32 %v3159, 16
        %v3395 = vrot.slane %v3393, 5
        %v3396 = vsel %vm994, %v3391, %v3395
        %v3398 = vshrl.u32 %v3160, 16
        %v3400 = vrot.slane %v3398, 4
        %v3401 = vshll.u32 %v3160, 16
        %v3403 = vrot.slane %v3401, 5
        %v3404 = vor.u32 %v3400, %v3403
        %v3405 = vrot.slane %v3404, 4
        %v3407 = vshll.u32 %v3161, 16
        %v3409 = vrot.slane %v3407, 5
        %v3410 = vsel %vm994, %v3405, %v3409
        %v3411 = vshrl.u32 %v3161, 16
        %v3413 = vrot.slane %v3411, 4
        %v3414 = vor.u32 %v3413, %v3409
        %v3415 = vrot.slane %v3414, 4
        %v3417 = vshll.u32 %v3162, 16
        %v3419 = vrot.slane %v3417, 5
        %v3420 = vsel %vm994, %v3415, %v3419
        %v3422 = vshrl.u32 %v3163, 16
        %v3424 = vrot.slane %v3422, 4
        %v3425 = vshll.u32 %v3163, 16
        %v3427 = vrot.slane %v3425, 5
        %v3428 = vor.u32 %v3424, %v3427
        %v3429 = vrot.slane %v3428, 4
        %v3431 = vshll.u32 %v3164, 16
        %v3433 = vrot.slane %v3431, 5
        %v3434 = vsel %vm994, %v3429, %v3433
        %v3435 = vshrl.u32 %v3164, 16
        %v3437 = vrot.slane %v3435, 4
        %v3438 = vor.u32 %v3437, %v3433
        %v3439 = vrot.slane %v3438, 4
        %v3441 = vshll.u32 %v3165, 16
        %v3443 = vrot.slane %v3441, 5
        %v3444 = vsel %vm994, %v3439, %v3443
        %v3446 = vshrl.u32 %v3166, 16
        %v3448 = vrot.slane %v3446, 4
        %v3449 = vshll.u32 %v3166, 16
        %v3451 = vrot.slane %v3449, 5
        %v3452 = vor.u32 %v3448, %v3451
        %v3453 = vrot.slane %v3452, 4
        %v3455 = vshll.u32 %v3167, 16
        %v3457 = vrot.slane %v3455, 5
        %v3458 = vsel %vm994, %v3453, %v3457
        %v3459 = vshrl.u32 %v3167, 16
        %v3461 = vrot.slane %v3459, 4
        %v3462 = vor.u32 %v3461, %v3457
        %v3463 = vrot.slane %v3462, 4
        %v3465 = vshll.u32 %v3168, 16
        %v3467 = vrot.slane %v3465, 5
        %v3468 = vsel %vm994, %v3463, %v3467
        %v3470 = vshrl.u32 %v3169, 16
        %v3472 = vrot.slane %v3470, 4
        %v3473 = vshll.u32 %v3169, 16
        %v3475 = vrot.slane %v3473, 5
        %v3476 = vor.u32 %v3472, %v3475
        %v3477 = vrot.slane %v3476, 4
        %v3479 = vshll.u32 %v3170, 16
        %v3481 = vrot.slane %v3479, 5
        %v3482 = vsel %vm994, %v3477, %v3481
        %v3483 = vshrl.u32 %v3170, 16
        %v3485 = vrot.slane %v3483, 4
        %v3486 = vor.u32 %v3485, %v3481
        %v3487 = vrot.slane %v3486, 4
        %v3489 = vshll.u32 %v3171, 16
        %v3491 = vrot.slane %v3489, 5
        %v3492 = vsel %vm994, %v3487, %v3491
        %v3494 = vshrl.u32 %v3172, 16
        %v3496 = vrot.slane %v3494, 4
        %v3497 = vshll.u32 %v3172, 16
        %v3499 = vrot.slane %v3497, 5
        %v3500 = vor.u32 %v3496, %v3499
        %v3501 = vrot.slane %v3500, 4
        %v3503 = vshll.u32 %v3173, 16
        %v3505 = vrot.slane %v3503, 5
        %v3506 = vsel %vm994, %v3501, %v3505
        %v3507 = vshrl.u32 %v3173, 16
        %v3509 = vrot.slane %v3507, 4
        %v3510 = vor.u32 %v3509, %v3505
        %v3511 = vrot.slane %v3510, 4
        %v3513 = vshll.u32 %v3174, 16
        %v3515 = vrot.slane %v3513, 5
        %v3516 = vsel %vm994, %v3511, %v3515
        %v3518 = vshrl.u32 %v3175, 16
        %v3520 = vrot.slane %v3518, 4
        %v3521 = vshll.u32 %v3175, 16
        %v3523 = vrot.slane %v3521, 5
        %v3524 = vor.u32 %v3520, %v3523
        %v3525 = vrot.slane %v3524, 4
        %v3527 = vshll.u32 %v3176, 16
        %v3529 = vrot.slane %v3527, 5
        %v3530 = vsel %vm994, %v3525, %v3529
        %v3531 = vshrl.u32 %v3176, 16
        %v3533 = vrot.slane %v3531, 4
        %v3534 = vor.u32 %v3533, %v3529
        %v3535 = vrot.slane %v3534, 4
        %v3537 = vshll.u32 %v3177, 16
        %v3539 = vrot.slane %v3537, 5
        %v3540 = vsel %vm994, %v3535, %v3539
        %v3542 = vshrl.u32 %v3178, 16
        %v3544 = vrot.slane %v3542, 4
        %v3545 = vshll.u32 %v3178, 16
        %v3547 = vrot.slane %v3545, 5
        %v3548 = vor.u32 %v3544, %v3547
        %v3549 = vrot.slane %v3548, 4
        %v3551 = vshll.u32 %v3179, 16
        %v3553 = vrot.slane %v3551, 5
        %v3554 = vsel %vm994, %v3549, %v3553
        %v3555 = vshrl.u32 %v3179, 16
        %v3557 = vrot.slane %v3555, 4
        %v3558 = vor.u32 %v3557, %v3553
        %v3559 = vrot.slane %v3558, 4
        %v3561 = vshll.u32 %v3180, 16
        %v3563 = vrot.slane %v3561, 5
        %v3564 = vsel %vm994, %v3559, %v3563
        %3565 = vrot.lane.b32.xlu0 %v3194, 56
        %v3566 = vpop.permute.xlu0 %3565
        %3567 = vrot.lane.b32.xlu0 %v3204, 56
        %v3568 = vpop.permute.xlu0 %3567
        %3569 = vrot.lane.b32.xlu0 %v3218, 56
        %v3570 = vpop.permute.xlu0 %3569
        %3571 = vrot.lane.b32.xlu0 %v3228, 56
        %v3572 = vpop.permute.xlu0 %3571
        %3573 = vrot.lane.b32.xlu0 %v3242, 56
        %v3574 = vpop.permute.xlu0 %3573
        %3575 = vrot.lane.b32.xlu0 %v3252, 56
        %v3576 = vpop.permute.xlu0 %3575
        %3577 = vrot.lane.b32.xlu0 %v3266, 56
        %v3578 = vpop.permute.xlu0 %3577
        %3579 = vrot.lane.b32.xlu0 %v3276, 56
        %v3580 = vpop.permute.xlu0 %3579
        %3581 = vrot.lane.b32.xlu0 %v3290, 56
        %v3582 = vpop.permute.xlu0 %3581
        %3583 = vrot.lane.b32.xlu0 %v3300, 56
        %v3584 = vpop.permute.xlu0 %3583
        %3585 = vrot.lane.b32.xlu0 %v3314, 56
        %v3586 = vpop.permute.xlu0 %3585
        %3587 = vrot.lane.b32.xlu0 %v3324, 56
        %v3588 = vpop.permute.xlu0 %3587
        %3589 = vrot.lane.b32.xlu0 %v3338, 56
        %v3590 = vpop.permute.xlu0 %3589
        %3591 = vrot.lane.b32.xlu0 %v3348, 56
        %v3592 = vpop.permute.xlu0 %3591
        %3593 = vrot.lane.b32.xlu0 %v3362, 56
        %v3594 = vpop.permute.xlu0 %3593
        %3595 = vrot.lane.b32.xlu0 %v3372, 56
        %v3596 = vpop.permute.xlu0 %3595
        %3597 = vrot.lane.b32.xlu0 %v3386, 56
        %v3598 = vpop.permute.xlu0 %3597
        %3599 = vrot.lane.b32.xlu0 %v3396, 56
        %v3600 = vpop.permute.xlu0 %3599
        %3601 = vrot.lane.b32.xlu0 %v3410, 56
        %v3602 = vpop.permute.xlu0 %3601
        %3603 = vrot.lane.b32.xlu0 %v3420, 56
        %v3604 = vpop.permute.xlu0 %3603
        %3605 = vrot.lane.b32.xlu0 %v3434, 56
        %v3606 = vpop.permute.xlu0 %3605
        %3607 = vrot.lane.b32.xlu0 %v3444, 56
        %v3608 = vpop.permute.xlu0 %3607
        %3609 = vrot.lane.b32.xlu0 %v3458, 56
        %v3610 = vpop.permute.xlu0 %3609
        %3611 = vrot.lane.b32.xlu0 %v3468, 56
        %v3612 = vpop.permute.xlu0 %3611
        %3613 = vrot.lane.b32.xlu0 %v3482, 56
        %v3614 = vpop.permute.xlu0 %3613
        %3615 = vrot.lane.b32.xlu0 %v3492, 56
        %v3616 = vpop.permute.xlu0 %3615
        %3617 = vrot.lane.b32.xlu0 %v3506, 56
        %v3618 = vpop.permute.xlu0 %3617
        %3619 = vrot.lane.b32.xlu0 %v3516, 56
        %v3620 = vpop.permute.xlu0 %3619
        %3621 = vrot.lane.b32.xlu0 %v3530, 56
        %v3622 = vpop.permute.xlu0 %3621
        %3623 = vrot.lane.b32.xlu0 %v3540, 56
        %v3624 = vpop.permute.xlu0 %3623
        %3625 = vrot.lane.b32.xlu0 %v3554, 56
        %v3626 = vpop.permute.xlu0 %3625
        %3627 = vrot.lane.b32.xlu0 %v3564, 56
        %v3628 = vpop.permute.xlu0 %3627
        %vm3661 = vcmask 519616
        %3662 = vst.msk [vmem:[#allocation3] sm:$0xf] %vm3661, %v3566
        %3663 = vst.msk [vmem:[#allocation3 + $0x4] sm:$0xf] %vm3661, %v3568
        %3664 = vst.msk [vmem:[#allocation3 + $0x8] sm:$0xf] %vm3661, %v3570
        %3665 = vst.msk [vmem:[#allocation3 + $0xc] sm:$0xf] %vm3661, %v3572
        %3666 = vst.msk [vmem:[#allocation3 + $0x10] sm:$0xf] %vm3661, %v3574
        %3667 = vst.msk [vmem:[#allocation3 + $0x14] sm:$0xf] %vm3661, %v3576
        %3668 = vst.msk [vmem:[#allocation3 + $0x18] sm:$0xf] %vm3661, %v3578
        %3669 = vst.msk [vmem:[#allocation3 + $0x1c] sm:$0xf] %vm3661, %v3580
        %3670 = vst.msk [vmem:[#allocation3 + $0x20] sm:$0xf] %vm3661, %v3582
        %3671 = vst.msk [vmem:[#allocation3 + $0x24] sm:$0xf] %vm3661, %v3584
        %3672 = vst.msk [vmem:[#allocation3 + $0x28] sm:$0xf] %vm3661, %v3586
        %3673 = vst.msk [vmem:[#allocation3 + $0x2c] sm:$0xf] %vm3661, %v3588
        %3674 = vst.msk [vmem:[#allocation3 + $0x30] sm:$0xf] %vm3661, %v3590
        %3675 = vst.msk [vmem:[#allocation3 + $0x34] sm:$0xf] %vm3661, %v3592
        %3676 = vst.msk [vmem:[#allocation3 + $0x38] sm:$0xf] %vm3661, %v3594
        %3677 = vst.msk [vmem:[#allocation3 + $0x3c] sm:$0xf] %vm3661, %v3596
        %3678 = vst.msk [vmem:[#allocation3 + $0x40] sm:$0xf] %vm3661, %v3598
        %3679 = vst.msk [vmem:[#allocation3 + $0x44] sm:$0xf] %vm3661, %v3600
        %3680 = vst.msk [vmem:[#allocation3 + $0x48] sm:$0xf] %vm3661, %v3602
        %3681 = vst.msk [vmem:[#allocation3 + $0x4c] sm:$0xf] %vm3661, %v3604
        %3682 = vst.msk [vmem:[#allocation3 + $0x50] sm:$0xf] %vm3661, %v3606
        %3683 = vst.msk [vmem:[#allocation3 + $0x54] sm:$0xf] %vm3661, %v3608
        %3684 = vst.msk [vmem:[#allocation3 + $0x58] sm:$0xf] %vm3661, %v3610
        %3685 = vst.msk [vmem:[#allocation3 + $0x5c] sm:$0xf] %vm3661, %v3612
        %3686 = vst.msk [vmem:[#allocation3 + $0x60] sm:$0xf] %vm3661, %v3614
        %3687 = vst.msk [vmem:[#allocation3 + $0x64] sm:$0xf] %vm3661, %v3616
        %3688 = vst.msk [vmem:[#allocation3 + $0x68] sm:$0xf] %vm3661, %v3618
        %3689 = vst.msk [vmem:[#allocation3 + $0x6c] sm:$0xf] %vm3661, %v3620
        %3690 = vst.msk [vmem:[#allocation3 + $0x70] sm:$0xf] %vm3661, %v3622
        %3691 = vst.msk [vmem:[#allocation3 + $0x74] sm:$0xf] %vm3661, %v3624
        %3692 = vst.msk [vmem:[#allocation3 + $0x78] sm:$0xf] %vm3661, %v3626
        %3693 = vst.msk [vmem:[#allocation3 + $0x7c] sm:$0xf] %vm3661, %v3628
        %v3694 = vld [vmem:[%s2939] sm:$0xe]
        %v3695 = vld [vmem:[%s2939 + $0x4] sm:$0xf]
        %v3696 = vld [vmem:[%s2939 + $0x8] sm:$0x1]
        %v3697 = vld [vmem:[%s2939 + $0xc] sm:$0xe]
        %v3698 = vld [vmem:[%s2939 + $0x10] sm:$0xf]
        %v3699 = vld [vmem:[%s2939 + $0x14] sm:$0x1]
        %v3700 = vld [vmem:[%s2939 + $0x18] sm:$0xe]
        %v3701 = vld [vmem:[%s2939 + $0x1c] sm:$0xf]
        %v3702 = vld [vmem:[%s2939 + $0x20] sm:$0x1]
        %v3703 = vld [vmem:[%s2939 + $0x24] sm:$0xe]
        %v3704 = vld [vmem:[%s2939 + $0x28] sm:$0xf]
        %v3705 = vld [vmem:[%s2939 + $0x2c] sm:$0x1]
        %v3706 = vld [vmem:[%s2939 + $0x30] sm:$0xe]
        %v3707 = vld [vmem:[%s2939 + $0x34] sm:$0xf]
        %v3708 = vld [vmem:[%s2939 + $0x38] sm:$0x1]
        %v3709 = vld [vmem:[%s2939 + $0x3c] sm:$0xe]
        %v3710 = vld [vmem:[%s2939 + $0x40] sm:$0xf]
        %v3711 = vld [vmem:[%s2939 + $0x44] sm:$0x1]
        %v3712 = vld [vmem:[%s2939 + $0x48] sm:$0xe]
        %v3713 = vld [vmem:[%s2939 + $0x4c] sm:$0xf]
        %v3714 = vld [vmem:[%s2939 + $0x50] sm:$0x1]
        %v3715 = vld [vmem:[%s2939 + $0x54] sm:$0xe]
        %v3716 = vld [vmem:[%s2939 + $0x58] sm:$0xf]
        %v3717 = vld [vmem:[%s2939 + $0x5c] sm:$0x1]
        %v3718 = vld [vmem:[%s2939 + $0x60] sm:$0xe]
        %v3719 = vld [vmem:[%s2939 + $0x64] sm:$0xf]
        %v3720 = vld [vmem:[%s2939 + $0x68] sm:$0x1]
        %v3721 = vld [vmem:[%s2939 + $0x6c] sm:$0xe]
        %v3722 = vld [vmem:[%s2939 + $0x70] sm:$0xf]
        %v3723 = vld [vmem:[%s2939 + $0x74] sm:$0x1]
        %v3724 = vld [vmem:[%s2939 + $0x78] sm:$0xe]
        %v3725 = vld [vmem:[%s2939 + $0x7c] sm:$0xf]
        %v3726 = vld [vmem:[%s2939 + $0x80] sm:$0x1]
        %v3727 = vld [vmem:[%s2939 + $0x84] sm:$0xe]
        %v3728 = vld [vmem:[%s2939 + $0x88] sm:$0xf]
        %v3729 = vld [vmem:[%s2939 + $0x8c] sm:$0x1]
        %v3730 = vld [vmem:[%s2939 + $0x90] sm:$0xe]
        %v3731 = vld [vmem:[%s2939 + $0x94] sm:$0xf]
        %v3732 = vld [vmem:[%s2939 + $0x98] sm:$0x1]
        %v3733 = vld [vmem:[%s2939 + $0x9c] sm:$0xe]
        %v3734 = vld [vmem:[%s2939 + $0xa0] sm:$0xf]
        %v3735 = vld [vmem:[%s2939 + $0xa4] sm:$0x1]
        %v3736 = vld [vmem:[%s2939 + $0xa8] sm:$0xe]
        %v3737 = vld [vmem:[%s2939 + $0xac] sm:$0xf]
        %v3738 = vld [vmem:[%s2939 + $0xb0] sm:$0x1]
        %v3739 = vld [vmem:[%s2939 + $0xb4] sm:$0xe]
        %v3740 = vld [vmem:[%s2939 + $0xb8] sm:$0xf]
        %v3741 = vld [vmem:[%s2939 + $0xbc] sm:$0x1]
        %v3790 = vrot.slane %v3694, 5
        %v3791 = vrot.slane %v3790, 4
        %v3792 = vrot.slane %v3695, 5
        %v3793 = vsel %vm1606, %v3791, %v3792
        %v3794 = vrot.slane %v3792, 4
        %v3795 = vrot.slane %v3696, 5
        %v3796 = vsel %vm1606, %v3794, %v3795
        %v3797 = vrot.slane %v3697, 5
        %v3798 = vrot.slane %v3797, 4
        %v3799 = vrot.slane %v3698, 5
        %v3800 = vsel %vm1606, %v3798, %v3799
        %v3801 = vrot.slane %v3799, 4
        %v3802 = vrot.slane %v3699, 5
        %v3803 = vsel %vm1606, %v3801, %v3802
        %v3804 = vrot.slane %v3700, 5
        %v3805 = vrot.slane %v3804, 4
        %v3806 = vrot.slane %v3701, 5
        %v3807 = vsel %vm1606, %v3805, %v3806
        %v3808 = vrot.slane %v3806, 4
        %v3809 = vrot.slane %v3702, 5
        %v3810 = vsel %vm1606, %v3808, %v3809
        %v3811 = vrot.slane %v3703, 5
        %v3812 = vrot.slane %v3811, 4
        %v3813 = vrot.slane %v3704, 5
        %v3814 = vsel %vm1606, %v3812, %v3813
        %v3815 = vrot.slane %v3813, 4
        %v3816 = vrot.slane %v3705, 5
        %v3817 = vsel %vm1606, %v3815, %v3816
        %v3818 = vrot.slane %v3706, 5
        %v3819 = vrot.slane %v3818, 4
        %v3820 = vrot.slane %v3707, 5
        %v3821 = vsel %vm1606, %v3819, %v3820
        %v3822 = vrot.slane %v3820, 4
        %v3823 = vrot.slane %v3708, 5
        %v3824 = vsel %vm1606, %v3822, %v3823
        %v3825 = vrot.slane %v3709, 5
        %v3826 = vrot.slane %v3825, 4
        %v3827 = vrot.slane %v3710, 5
        %v3828 = vsel %vm1606, %v3826, %v3827
        %v3829 = vrot.slane %v3827, 4
        %v3830 = vrot.slane %v3711, 5
        %v3831 = vsel %vm1606, %v3829, %v3830
        %v3832 = vrot.slane %v3712, 5
        %v3833 = vrot.slane %v3832, 4
        %v3834 = vrot.slane %v3713, 5
        %v3835 = vsel %vm1606, %v3833, %v3834
        %v3836 = vrot.slane %v3834, 4
        %v3837 = vrot.slane %v3714, 5
        %v3838 = vsel %vm1606, %v3836, %v3837
        %v3839 = vrot.slane %v3715, 5
        %v3840 = vrot.slane %v3839, 4
        %v3841 = vrot.slane %v3716, 5
        %v3842 = vsel %vm1606, %v3840, %v3841
        %v3843 = vrot.slane %v3841, 4
        %v3844 = vrot.slane %v3717, 5
        %v3845 = vsel %vm1606, %v3843, %v3844
        %v3846 = vrot.slane %v3718, 5
        %v3847 = vrot.slane %v3846, 4
        %v3848 = vrot.slane %v3719, 5
        %v3849 = vsel %vm1606, %v3847, %v3848
        %v3850 = vrot.slane %v3848, 4
        %v3851 = vrot.slane %v3720, 5
        %v3852 = vsel %vm1606, %v3850, %v3851
        %v3853 = vrot.slane %v3721, 5
        %v3854 = vrot.slane %v3853, 4
        %v3855 = vrot.slane %v3722, 5
        %v3856 = vsel %vm1606, %v3854, %v3855
        %v3857 = vrot.slane %v3855, 4
        %v3858 = vrot.slane %v3723, 5
        %v3859 = vsel %vm1606, %v3857, %v3858
        %v3860 = vrot.slane %v3724, 5
        %v3861 = vrot.slane %v3860, 4
        %v3862 = vrot.slane %v3725, 5
        %v3863 = vsel %vm1606, %v3861, %v3862
        %v3864 = vrot.slane %v3862, 4
        %v3865 = vrot.slane %v3726, 5
        %v3866 = vsel %vm1606, %v3864, %v3865
        %v3867 = vrot.slane %v3727, 5
        %v3868 = vrot.slane %v3867, 4
        %v3869 = vrot.slane %v3728, 5
        %v3870 = vsel %vm1606, %v3868, %v3869
        %v3871 = vrot.slane %v3869, 4
        %v3872 = vrot.slane %v3729, 5
        %v3873 = vsel %vm1606, %v3871, %v3872
        %v3874 = vrot.slane %v3730, 5
        %v3875 = vrot.slane %v3874, 4
        %v3876 = vrot.slane %v3731, 5
        %v3877 = vsel %vm1606, %v3875, %v3876
        %v3878 = vrot.slane %v3876, 4
        %v3879 = vrot.slane %v3732, 5
        %v3880 = vsel %vm1606, %v3878, %v3879
        %v3881 = vrot.slane %v3733, 5
        %v3882 = vrot.slane %v3881, 4
        %v3883 = vrot.slane %v3734, 5
        %v3884 = vsel %vm1606, %v3882, %v3883
        %v3885 = vrot.slane %v3883, 4
        %v3886 = vrot.slane %v3735, 5
        %v3887 = vsel %vm1606, %v3885, %v3886
        %v3888 = vrot.slane %v3736, 5
        %v3889 = vrot.slane %v3888, 4
        %v3890 = vrot.slane %v3737, 5
        %v3891 = vsel %vm1606, %v3889, %v3890
        %v3892 = vrot.slane %v3890, 4
        %v3893 = vrot.slane %v3738, 5
        %v3894 = vsel %vm1606, %v3892, %v3893
        %v3895 = vrot.slane %v3739, 5
        %v3896 = vrot.slane %v3895, 4
        %v3897 = vrot.slane %v3740, 5
        %v3898 = vsel %vm1606, %v3896, %v3897
        %v3899 = vrot.slane %v3897, 4
        %v3900 = vrot.slane %v3741, 5
        %v3901 = vsel %vm1606, %v3899, %v3900
        %3902 = vrot.lane.b32.xlu0 %v3793, 64
        %v3903 = vpop.permute.xlu0 %3902
        %3904 = vrot.lane.b32.xlu0 %v3796, 64
        %v3905 = vpop.permute.xlu0 %3904
        %3906 = vrot.lane.b32.xlu0 %v3800, 64
        %v3907 = vpop.permute.xlu0 %3906
        %3908 = vrot.lane.b32.xlu0 %v3803, 64
        %v3909 = vpop.permute.xlu0 %3908
        %3910 = vrot.lane.b32.xlu0 %v3807, 64
        %v3911 = vpop.permute.xlu0 %3910
        %3912 = vrot.lane.b32.xlu0 %v3810, 64
        %v3913 = vpop.permute.xlu0 %3912
        %3914 = vrot.lane.b32.xlu0 %v3814, 64
        %v3915 = vpop.permute.xlu0 %3914
        %3916 = vrot.lane.b32.xlu0 %v3817, 64
        %v3917 = vpop.permute.xlu0 %3916
        %3918 = vrot.lane.b32.xlu0 %v3821, 64
        %v3919 = vpop.permute.xlu0 %3918
        %3920 = vrot.lane.b32.xlu0 %v3824, 64
        %v3921 = vpop.permute.xlu0 %3920
        %3922 = vrot.lane.b32.xlu0 %v3828, 64
        %v3923 = vpop.permute.xlu0 %3922
        %3924 = vrot.lane.b32.xlu0 %v3831, 64
        %v3925 = vpop.permute.xlu0 %3924
        %3926 = vrot.lane.b32.xlu0 %v3835, 64
        %v3927 = vpop.permute.xlu0 %3926
        %3928 = vrot.lane.b32.xlu0 %v3838, 64
        %v3929 = vpop.permute.xlu0 %3928
        %3930 = vrot.lane.b32.xlu0 %v3842, 64
        %v3931 = vpop.permute.xlu0 %3930
        %3932 = vrot.lane.b32.xlu0 %v3845, 64
        %v3933 = vpop.permute.xlu0 %3932
        %3934 = vrot.lane.b32.xlu0 %v3849, 64
        %v3935 = vpop.permute.xlu0 %3934
        %3936 = vrot.lane.b32.xlu0 %v3852, 64
        %v3937 = vpop.permute.xlu0 %3936
        %3938 = vrot.lane.b32.xlu0 %v3856, 64
        %v3939 = vpop.permute.xlu0 %3938
        %3940 = vrot.lane.b32.xlu0 %v3859, 64
        %v3941 = vpop.permute.xlu0 %3940
        %3942 = vrot.lane.b32.xlu0 %v3863, 64
        %v3943 = vpop.permute.xlu0 %3942
        %3944 = vrot.lane.b32.xlu0 %v3866, 64
        %v3945 = vpop.permute.xlu0 %3944
        %3946 = vrot.lane.b32.xlu0 %v3870, 64
        %v3947 = vpop.permute.xlu0 %3946
        %3948 = vrot.lane.b32.xlu0 %v3873, 64
        %v3949 = vpop.permute.xlu0 %3948
        %3950 = vrot.lane.b32.xlu0 %v3877, 64
        %v3951 = vpop.permute.xlu0 %3950
        %3952 = vrot.lane.b32.xlu0 %v3880, 64
        %v3953 = vpop.permute.xlu0 %3952
        %3954 = vrot.lane.b32.xlu0 %v3884, 64
        %v3955 = vpop.permute.xlu0 %3954
        %3956 = vrot.lane.b32.xlu0 %v3887, 64
        %v3957 = vpop.permute.xlu0 %3956
        %3958 = vrot.lane.b32.xlu0 %v3891, 64
        %v3959 = vpop.permute.xlu0 %3958
        %3960 = vrot.lane.b32.xlu0 %v3894, 64
        %v3961 = vpop.permute.xlu0 %3960
        %3962 = vrot.lane.b32.xlu0 %v3898, 64
        %v3963 = vpop.permute.xlu0 %3962
        %3964 = vrot.lane.b32.xlu0 %v3901, 64
        %v3965 = vpop.permute.xlu0 %3964
        %vm3998 = vcmask 585216
        %3999 = vst.msk [vmem:[#allocation3] sm:$0xf] %vm3998, %v3903
        %4000 = vst.msk [vmem:[#allocation3 + $0x4] sm:$0xf] %vm3998, %v3905
        %4001 = vst.msk [vmem:[#allocation3 + $0x8] sm:$0xf] %vm3998, %v3907
        %4002 = vst.msk [vmem:[#allocation3 + $0xc] sm:$0xf] %vm3998, %v3909
        %4003 = vst.msk [vmem:[#allocation3 + $0x10] sm:$0xf] %vm3998, %v3911
        %4004 = vst.msk [vmem:[#allocation3 + $0x14] sm:$0xf] %vm3998, %v3913
        %4005 = vst.msk [vmem:[#allocation3 + $0x18] sm:$0xf] %vm3998, %v3915
        %4006 = vst.msk [vmem:[#allocation3 + $0x1c] sm:$0xf] %vm3998, %v3917
        %4007 = vst.msk [vmem:[#allocation3 + $0x20] sm:$0xf] %vm3998, %v3919
        %4008 = vst.msk [vmem:[#allocation3 + $0x24] sm:$0xf] %vm3998, %v3921
        %4009 = vst.msk [vmem:[#allocation3 + $0x28] sm:$0xf] %vm3998, %v3923
        %4010 = vst.msk [vmem:[#allocation3 + $0x2c] sm:$0xf] %vm3998, %v3925
        %4011 = vst.msk [vmem:[#allocation3 + $0x30] sm:$0xf] %vm3998, %v3927
        %4012 = vst.msk [vmem:[#allocation3 + $0x34] sm:$0xf] %vm3998, %v3929
        %4013 = vst.msk [vmem:[#allocation3 + $0x38] sm:$0xf] %vm3998, %v3931
        %4014 = vst.msk [vmem:[#allocation3 + $0x3c] sm:$0xf] %vm3998, %v3933
        %4015 = vst.msk [vmem:[#allocation3 + $0x40] sm:$0xf] %vm3998, %v3935
        %4016 = vst.msk [vmem:[#allocation3 + $0x44] sm:$0xf] %vm3998, %v3937
        %4017 = vst.msk [vmem:[#allocation3 + $0x48] sm:$0xf] %vm3998, %v3939
        %4018 = vst.msk [vmem:[#allocation3 + $0x4c] sm:$0xf] %vm3998, %v3941
        %4019 = vst.msk [vmem:[#allocation3 + $0x50] sm:$0xf] %vm3998, %v3943
        %4020 = vst.msk [vmem:[#allocation3 + $0x54] sm:$0xf] %vm3998, %v3945
        %4021 = vst.msk [vmem:[#allocation3 + $0x58] sm:$0xf] %vm3998, %v3947
        %4022 = vst.msk [vmem:[#allocation3 + $0x5c] sm:$0xf] %vm3998, %v3949
        %4023 = vst.msk [vmem:[#allocation3 + $0x60] sm:$0xf] %vm3998, %v3951
        %4024 = vst.msk [vmem:[#allocation3 + $0x64] sm:$0xf] %vm3998, %v3953
        %4025 = vst.msk [vmem:[#allocation3 + $0x68] sm:$0xf] %vm3998, %v3955
        %4026 = vst.msk [vmem:[#allocation3 + $0x6c] sm:$0xf] %vm3998, %v3957
        %4027 = vst.msk [vmem:[#allocation3 + $0x70] sm:$0xf] %vm3998, %v3959
        %4028 = vst.msk [vmem:[#allocation3 + $0x74] sm:$0xf] %vm3998, %v3961
        %4029 = vst.msk [vmem:[#allocation3 + $0x78] sm:$0xf] %vm3998, %v3963
        %4030 = vst.msk [vmem:[#allocation3 + $0x7c] sm:$0xf] %vm3998, %v3965
        %vm4031 = vcmask 1044032
        %4032 = vst.msk [vmem:[#allocation3] sm:$0xf] %vm4031, 0
        %4033 = vst.msk [vmem:[#allocation3 + $0x4] sm:$0xf] %vm4031, 0
        %4034 = vst.msk [vmem:[#allocation3 + $0x8] sm:$0xf] %vm4031, 0
        %4035 = vst.msk [vmem:[#allocation3 + $0xc] sm:$0xf] %vm4031, 0
        %4036 = vst.msk [vmem:[#allocation3 + $0x10] sm:$0xf] %vm4031, 0
        %4037 = vst.msk [vmem:[#allocation3 + $0x14] sm:$0xf] %vm4031, 0
        %4038 = vst.msk [vmem:[#allocation3 + $0x18] sm:$0xf] %vm4031, 0
        %4039 = vst.msk [vmem:[#allocation3 + $0x1c] sm:$0xf] %vm4031, 0
        %4040 = vst.msk [vmem:[#allocation3 + $0x20] sm:$0xf] %vm4031, 0
        %4041 = vst.msk [vmem:[#allocation3 + $0x24] sm:$0xf] %vm4031, 0
        %4042 = vst.msk [vmem:[#allocation3 + $0x28] sm:$0xf] %vm4031, 0
        %4043 = vst.msk [vmem:[#allocation3 + $0x2c] sm:$0xf] %vm4031, 0
        %4044 = vst.msk [vmem:[#allocation3 + $0x30] sm:$0xf] %vm4031, 0
        %4045 = vst.msk [vmem:[#allocation3 + $0x34] sm:$0xf] %vm4031, 0
        %4046 = vst.msk [vmem:[#allocation3 + $0x38] sm:$0xf] %vm4031, 0
        %4047 = vst.msk [vmem:[#allocation3 + $0x3c] sm:$0xf] %vm4031, 0
        %4048 = vst.msk [vmem:[#allocation3 + $0x40] sm:$0xf] %vm4031, 0
        %4049 = vst.msk [vmem:[#allocation3 + $0x44] sm:$0xf] %vm4031, 0
        %4050 = vst.msk [vmem:[#allocation3 + $0x48] sm:$0xf] %vm4031, 0
        %4051 = vst.msk [vmem:[#allocation3 + $0x4c] sm:$0xf] %vm4031, 0
        %4052 = vst.msk [vmem:[#allocation3 + $0x50] sm:$0xf] %vm4031, 0
        %4053 = vst.msk [vmem:[#allocation3 + $0x54] sm:$0xf] %vm4031, 0
        %4054 = vst.msk [vmem:[#allocation3 + $0x58] sm:$0xf] %vm4031, 0
        %4055 = vst.msk [vmem:[#allocation3 + $0x5c] sm:$0xf] %vm4031, 0
        %4056 = vst.msk [vmem:[#allocation3 + $0x60] sm:$0xf] %vm4031, 0
        %4057 = vst.msk [vmem:[#allocation3 + $0x64] sm:$0xf] %vm4031, 0
        %4058 = vst.msk [vmem:[#allocation3 + $0x68] sm:$0xf] %vm4031, 0
        %4059 = vst.msk [vmem:[#allocation3 + $0x6c] sm:$0xf] %vm4031, 0
        %4060 = vst.msk [vmem:[#allocation3 + $0x70] sm:$0xf] %vm4031, 0
        %4061 = vst.msk [vmem:[#allocation3 + $0x74] sm:$0xf] %vm4031, 0
        %4062 = vst.msk [vmem:[#allocation3 + $0x78] sm:$0xf] %vm4031, 0
        %4063 = vst.msk [vmem:[#allocation3 + $0x7c] sm:$0xf] %vm4031, 0
        %v4064 = vld [vmem:[#allocation3] sm:$0xf]
        %v4065 = vld [vmem:[#allocation3 + $0x4] sm:$0xf]
        %v4066 = vld [vmem:[#allocation3 + $0x8] sm:$0xf]
        %v4067 = vld [vmem:[#allocation3 + $0xc] sm:$0xf]
        %v4068 = vld [vmem:[#allocation3 + $0x10] sm:$0xf]
        %v4069 = vld [vmem:[#allocation3 + $0x14] sm:$0xf]
        %v4070 = vld [vmem:[#allocation3 + $0x18] sm:$0xf]
        %v4071 = vld [vmem:[#allocation3 + $0x1c] sm:$0xf]
        %v4072 = vld [vmem:[#allocation3 + $0x20] sm:$0xf]
        %v4073 = vld [vmem:[#allocation3 + $0x24] sm:$0xf]
        %v4074 = vld [vmem:[#allocation3 + $0x28] sm:$0xf]
        %v4075 = vld [vmem:[#allocation3 + $0x2c] sm:$0xf]
        %v4076 = vld [vmem:[#allocation3 + $0x30] sm:$0xf]
        %v4077 = vld [vmem:[#allocation3 + $0x34] sm:$0xf]
        %v4078 = vld [vmem:[#allocation3 + $0x38] sm:$0xf]
        %v4079 = vld [vmem:[#allocation3 + $0x3c] sm:$0xf]
        %v4080 = vld [vmem:[#allocation3 + $0x40] sm:$0xf]
        %v4081 = vld [vmem:[#allocation3 + $0x44] sm:$0xf]
        %v4082 = vld [vmem:[#allocation3 + $0x48] sm:$0xf]
        %v4083 = vld [vmem:[#allocation3 + $0x4c] sm:$0xf]
        %v4084 = vld [vmem:[#allocation3 + $0x50] sm:$0xf]
        %v4085 = vld [vmem:[#allocation3 + $0x54] sm:$0xf]
        %v4086 = vld [vmem:[#allocation3 + $0x58] sm:$0xf]
        %v4087 = vld [vmem:[#allocation3 + $0x5c] sm:$0xf]
        %v4088 = vld [vmem:[#allocation3 + $0x60] sm:$0xf]
        %v4089 = vld [vmem:[#allocation3 + $0x64] sm:$0xf]
        %v4090 = vld [vmem:[#allocation3 + $0x68] sm:$0xf]
        %v4091 = vld [vmem:[#allocation3 + $0x6c] sm:$0xf]
        %v4092 = vld [vmem:[#allocation3 + $0x70] sm:$0xf]
        %v4093 = vld [vmem:[#allocation3 + $0x74] sm:$0xf]
        %v4094 = vld [vmem:[#allocation3 + $0x78] sm:$0xf]
        %v4095 = vld [vmem:[#allocation3 + $0x7c] sm:$0xf]
        %v4096 = vld [vmem:[%s1] sm:$0xf]
        %v4097 = vld [vmem:[%s1 + $0x4] sm:$0xf]
        %v4098 = vld [vmem:[%s1 + $0x8] sm:$0xf]
        %v4099 = vld [vmem:[%s1 + $0xc] sm:$0xf]
        %v4100 = vld [vmem:[%s1 + $0x10] sm:$0xf]
        %v4101 = vld [vmem:[%s1 + $0x14] sm:$0xf]
        %v4102 = vld [vmem:[%s1 + $0x18] sm:$0xf]
        %v4103 = vld [vmem:[%s1 + $0x1c] sm:$0xf]
        %v4104 = vld [vmem:[%s1 + $0x20] sm:$0xf]
        %v4105 = vld [vmem:[%s1 + $0x24] sm:$0xf]
        %v4106 = vld [vmem:[%s1 + $0x28] sm:$0xf]
        %v4107 = vld [vmem:[%s1 + $0x2c] sm:$0xf]
        %v4108 = vld [vmem:[%s1 + $0x30] sm:$0xf]
        %v4109 = vld [vmem:[%s1 + $0x34] sm:$0xf]
        %v4110 = vld [vmem:[%s1 + $0x38] sm:$0xf]
        %v4111 = vld [vmem:[%s1 + $0x3c] sm:$0xf]
        %v4144 = vunpack.c.l.b16 %v4064
        %v4145 = vunpack.c.l.b16 %v4065
        %v4146 = vunpack.c.l.b16 %v4066
        %v4147 = vunpack.c.l.b16 %v4067
        %v4148 = vunpack.c.l.b16 %v4068
        %v4149 = vunpack.c.l.b16 %v4069
        %v4150 = vunpack.c.l.b16 %v4070
        %v4151 = vunpack.c.l.b16 %v4071
        %v4152 = vunpack.c.l.b16 %v4072
        %v4153 = vunpack.c.l.b16 %v4073
        %v4154 = vunpack.c.l.b16 %v4074
        %v4155 = vunpack.c.l.b16 %v4075
        %v4156 = vunpack.c.l.b16 %v4076
        %v4157 = vunpack.c.l.b16 %v4077
        %v4158 = vunpack.c.l.b16 %v4078
        %v4159 = vunpack.c.l.b16 %v4079
        %v4160 = vunpack.c.l.b16 %v4080
        %v4161 = vunpack.c.l.b16 %v4081
        %v4162 = vunpack.c.l.b16 %v4082
        %v4163 = vunpack.c.l.b16 %v4083
        %v4164 = vunpack.c.l.b16 %v4084
        %v4165 = vunpack.c.l.b16 %v4085
        %v4166 = vunpack.c.l.b16 %v4086
        %v4167 = vunpack.c.l.b16 %v4087
        %v4168 = vunpack.c.l.b16 %v4088
        %v4169 = vunpack.c.l.b16 %v4089
        %v4170 = vunpack.c.l.b16 %v4090
        %v4171 = vunpack.c.l.b16 %v4091
        %v4172 = vunpack.c.l.b16 %v4092
        %v4173 = vunpack.c.l.b16 %v4093
        %v4174 = vunpack.c.l.b16 %v4094
        %v4175 = vunpack.c.l.b16 %v4095
        %v4176 = vpack.c.b16 %v4145, %v4144
        %v4177 = vpack.c.b16 %v4147, %v4146
        %v4178 = vpack.c.b16 %v4149, %v4148
        %v4179 = vpack.c.b16 %v4151, %v4150
        %v4180 = vpack.c.b16 %v4153, %v4152
        %v4181 = vpack.c.b16 %v4155, %v4154
        %v4182 = vpack.c.b16 %v4157, %v4156
        %v4183 = vpack.c.b16 %v4159, %v4158
        %v4184 = vpack.c.b16 %v4161, %v4160
        %v4185 = vpack.c.b16 %v4163, %v4162
        %v4186 = vpack.c.b16 %v4165, %v4164
        %v4187 = vpack.c.b16 %v4167, %v4166
        %v4188 = vpack.c.b16 %v4169, %v4168
        %v4189 = vpack.c.b16 %v4171, %v4170
        %v4190 = vpack.c.b16 %v4173, %v4172
        %v4191 = vpack.c.b16 %v4175, %v4174
        %v4224 = vunpack.c.l.b16 %v4096
        %v4225 = vunpack.c.l.b16 %v4097
        %v4226 = vunpack.c.l.b16 %v4098
        %v4227 = vunpack.c.l.b16 %v4099
        %v4228 = vunpack.c.l.b16 %v4100
        %v4229 = vunpack.c.l.b16 %v4101
        %v4230 = vunpack.c.l.b16 %v4102
        %v4231 = vunpack.c.l.b16 %v4103
        %v4232 = vunpack.c.l.b16 %v4104
        %v4233 = vunpack.c.l.b16 %v4105
        %v4234 = vunpack.c.l.b16 %v4106
        %v4235 = vunpack.c.l.b16 %v4107
        %v4236 = vunpack.c.l.b16 %v4108
        %v4237 = vunpack.c.l.b16 %v4109
        %v4238 = vunpack.c.l.b16 %v4110
        %v4239 = vunpack.c.l.b16 %v4111
        %v4240 = vpack.c.b16 %v4225, %v4224
        %v4241 = vpack.c.b16 %v4227, %v4226
        %v4242 = vpack.c.b16 %v4229, %v4228
        %v4243 = vpack.c.b16 %v4231, %v4230
        %v4244 = vpack.c.b16 %v4233, %v4232
        %v4245 = vpack.c.b16 %v4235, %v4234
        %v4246 = vpack.c.b16 %v4237, %v4236
        %v4247 = vpack.c.b16 %v4239, %v4238
        %4256 = vmatprep.subr.bf16.mxu0 0
        %4257 = vmatpush1.bf16.msra.mxu0 %v4247
        %4258 = vmatprep.subr.bf16.mxu0 0
        %4259 = vmatpush1.bf16.msra.mxu0 %v4246
        %4260 = vmatprep.subr.bf16.mxu0 0
        %4261 = vmatpush1.bf16.msra.mxu0 %v4245
        %4262 = vmatprep.subr.bf16.mxu0 0
        %4263 = vmatpush1.bf16.msra.mxu0 %v4244
        %4264 = vmatprep.subr.bf16.mxu0 0
        %4265 = vmatpush1.bf16.msra.mxu0 %v4243
        %4266 = vmatprep.subr.bf16.mxu0 0
        %4267 = vmatpush1.bf16.msra.mxu0 %v4242
        %4268 = vmatprep.subr.bf16.mxu0 0
        %4269 = vmatpush1.bf16.msra.mxu0 %v4241
        %4270 = vmatprep.subr.bf16.mxu0 0
        %4271 = vmatpush1.bf16.msra.mxu0 %v4240
        %4272 = vmatprep.subr.bf16.mxu0 0
        %4273 = vmatpush2.bf16.msra.mxu0 0
        %4274 = vmatprep.subr.bf16.mxu0 0
        %4275 = vmatpush2.bf16.msra.mxu0 0
        %4276 = vmatprep.subr.bf16.mxu0 0
        %4277 = vmatpush2.bf16.msra.mxu0 0
        %4278 = vmatprep.subr.bf16.mxu0 0
        %4279 = vmatpush2.bf16.msra.mxu0 0
        %4280 = vmatprep.subr.bf16.mxu0 0
        %4281 = vmatpush2.bf16.msra.mxu0 0
        %4282 = vmatprep.subr.bf16.mxu0 0
        %4283 = vmatpush2.bf16.msra.mxu0 0
        %4284 = vmatprep.subr.bf16.mxu0 0
        %4285 = vmatpush2.bf16.msra.mxu0 0
        %4286 = vmatprep.subr.bf16.mxu0 0
        %4287 = vmatpush2.bf16.msra.mxu0 0
        %4288 = vmatprep.mubr.bf16.mxu0 0
        %4289 = vmatmul.mubr.bf16.gmra.mxu0 %v4176
        %v4290 = vpop.f32.mrf.mxu0
        %v4291 = vadd.f32 0.0, %v4290
        %v4292 = vpop.f32.mrf.mxu0
        %v4293 = vpop.f32.mrf.mxu0
        %v4294 = vadd.f32 0.0, %v4293
        %v4295 = vpop.f32.mrf.mxu0
        %4296 = vmatprep.mubr.bf16.mxu0 0
        %4297 = vmatmul.mubr.bf16.gmra.mxu0 %v4177
        %v4298 = vpop.f32.mrf.mxu0
        %v4299 = vadd.f32 0.0, %v4298
        %v4300 = vpop.f32.mrf.mxu0
        %v4301 = vpop.f32.mrf.mxu0
        %v4302 = vadd.f32 0.0, %v4301
        %v4303 = vpop.f32.mrf.mxu0
        %4304 = vmatprep.mubr.bf16.mxu0 0
        %4305 = vmatmul.mubr.bf16.gmra.mxu0 %v4178
        %v4306 = vpop.f32.mrf.mxu0
        %v4307 = vadd.f32 0.0, %v4306
        %v4308 = vpop.f32.mrf.mxu0
        %v4309 = vpop.f32.mrf.mxu0
        %v4310 = vadd.f32 0.0, %v4309
        %v4311 = vpop.f32.mrf.mxu0
        %4312 = vmatprep.mubr.bf16.mxu0 0
        %4313 = vmatmul.mubr.bf16.gmra.mxu0 %v4179
        %v4314 = vpop.f32.mrf.mxu0
        %v4315 = vadd.f32 0.0, %v4314
        %v4316 = vpop.f32.mrf.mxu0
        %v4317 = vpop.f32.mrf.mxu0
        %v4318 = vadd.f32 0.0, %v4317
        %v4319 = vpop.f32.mrf.mxu0
        %4320 = vmatprep.mubr.bf16.mxu0 0
        %4321 = vmatmul.mubr.bf16.gmra.mxu0 %v4180
        %v4322 = vpop.f32.mrf.mxu0
        %v4323 = vadd.f32 0.0, %v4322
        %v4324 = vpop.f32.mrf.mxu0
        %v4325 = vpop.f32.mrf.mxu0
        %v4326 = vadd.f32 0.0, %v4325
        %v4327 = vpop.f32.mrf.mxu0
        %4328 = vmatprep.mubr.bf16.mxu0 0
        %4329 = vmatmul.mubr.bf16.gmra.mxu0 %v4181
        %v4330 = vpop.f32.mrf.mxu0
        %v4331 = vadd.f32 0.0, %v4330
        %v4332 = vpop.f32.mrf.mxu0
        %v4333 = vpop.f32.mrf.mxu0
        %v4334 = vadd.f32 0.0, %v4333
        %v4335 = vpop.f32.mrf.mxu0
        %4336 = vmatprep.mubr.bf16.mxu0 0
        %4337 = vmatmul.mubr.bf16.gmra.mxu0 %v4182
        %v4338 = vpop.f32.mrf.mxu0
        %v4339 = vadd.f32 0.0, %v4338
        %v4340 = vpop.f32.mrf.mxu0
        %v4341 = vpop.f32.mrf.mxu0
        %v4342 = vadd.f32 0.0, %v4341
        %v4343 = vpop.f32.mrf.mxu0
        %4344 = vmatprep.mubr.bf16.mxu0 0
        %4345 = vmatmul.mubr.bf16.gmra.mxu0 %v4183
        %v4346 = vpop.f32.mrf.mxu0
        %v4347 = vadd.f32 0.0, %v4346
        %v4348 = vpop.f32.mrf.mxu0
        %v4349 = vpop.f32.mrf.mxu0
        %v4350 = vadd.f32 0.0, %v4349
        %v4351 = vpop.f32.mrf.mxu0
        %4352 = vmatprep.mubr.bf16.mxu0 0
        %4353 = vmatmul.mubr.bf16.gmra.mxu0 %v4184
        %v4354 = vpop.f32.mrf.mxu0
        %v4355 = vadd.f32 0.0, %v4354
        %v4356 = vpop.f32.mrf.mxu0
        %v4357 = vpop.f32.mrf.mxu0
        %v4358 = vadd.f32 0.0, %v4357
        %v4359 = vpop.f32.mrf.mxu0
        %4360 = vmatprep.mubr.bf16.mxu0 0
        %4361 = vmatmul.mubr.bf16.gmra.mxu0 %v4185
        %v4362 = vpop.f32.mrf.mxu0
        %v4363 = vadd.f32 0.0, %v4362
        %v4364 = vpop.f32.mrf.mxu0
        %v4365 = vpop.f32.mrf.mxu0
        %v4366 = vadd.f32 0.0, %v4365
        %v4367 = vpop.f32.mrf.mxu0
        %4368 = vmatprep.mubr.bf16.mxu0 0
        %4369 = vmatmul.mubr.bf16.gmra.mxu0 %v4186
        %v4370 = vpop.f32.mrf.mxu0
        %v4371 = vadd.f32 0.0, %v4370
        %v4372 = vpop.f32.mrf.mxu0
        %v4373 = vpop.f32.mrf.mxu0
        %v4374 = vadd.f32 0.0, %v4373
        %v4375 = vpop.f32.mrf.mxu0
        %4376 = vmatprep.mubr.bf16.mxu0 0
        %4377 = vmatmul.mubr.bf16.gmra.mxu0 %v4187
        %v4378 = vpop.f32.mrf.mxu0
        %v4379 = vadd.f32 0.0, %v4378
        %v4380 = vpop.f32.mrf.mxu0
        %v4381 = vpop.f32.mrf.mxu0
        %v4382 = vadd.f32 0.0, %v4381
        %v4383 = vpop.f32.mrf.mxu0
        %4384 = vmatprep.mubr.bf16.mxu0 0
        %4385 = vmatmul.mubr.bf16.gmra.mxu0 %v4188
        %v4386 = vpop.f32.mrf.mxu0
        %v4387 = vadd.f32 0.0, %v4386
        %v4388 = vpop.f32.mrf.mxu0
        %v4389 = vpop.f32.mrf.mxu0
        %v4390 = vadd.f32 0.0, %v4389
        %v4391 = vpop.f32.mrf.mxu0
        %4392 = vmatprep.mubr.bf16.mxu0 0
        %4393 = vmatmul.mubr.bf16.gmra.mxu0 %v4189
        %v4394 = vpop.f32.mrf.mxu0
        %v4395 = vadd.f32 0.0, %v4394
        %v4396 = vpop.f32.mrf.mxu0
        %v4397 = vpop.f32.mrf.mxu0
        %v4398 = vadd.f32 0.0, %v4397
        %v4399 = vpop.f32.mrf.mxu0
        %4400 = vmatprep.mubr.bf16.mxu0 0
        %4401 = vmatmul.mubr.bf16.gmra.mxu0 %v4190
        %v4402 = vpop.f32.mrf.mxu0
        %v4403 = vadd.f32 0.0, %v4402
        %v4404 = vpop.f32.mrf.mxu0
        %v4405 = vpop.f32.mrf.mxu0
        %v4406 = vadd.f32 0.0, %v4405
        %v4407 = vpop.f32.mrf.mxu0
        %4408 = vmatprep.mubr.bf16.mxu0 0
        %4409 = vmatmul.mubr.bf16.gmra.mxu0 %v4191
        %v4410 = vpop.f32.mrf.mxu0
        %v4411 = vadd.f32 0.0, %v4410
        %v4412 = vpop.f32.mrf.mxu0
        %v4413 = vpop.f32.mrf.mxu0
        %v4414 = vadd.f32 0.0, %v4413
        %v4415 = vpop.f32.mrf.mxu0
        %4416 = vdwg.mxu0
        %v4417 = vadd.f32 %v4291, %v4294
        %v4418 = vadd.f32 %v4417, %v4299
        %v4419 = vadd.f32 %v4418, %v4302
        %v4420 = vadd.f32 %v4419, %v4307
        %v4421 = vadd.f32 %v4420, %v4310
        %v4422 = vadd.f32 %v4421, %v4315
        %v4423 = vadd.f32 %v4422, %v4318
        %v4424 = vadd.f32 %v4423, %v4323
        %v4425 = vadd.f32 %v4424, %v4326
        %v4426 = vadd.f32 %v4425, %v4331
        %v4427 = vadd.f32 %v4426, %v4334
        %v4428 = vadd.f32 %v4427, %v4339
        %v4429 = vadd.f32 %v4428, %v4342
        %v4430 = vadd.f32 %v4429, %v4347
        %v4431 = vadd.f32 %v4430, %v4350
        %v4432 = vadd.f32 %v4431, %v4355
        %v4433 = vadd.f32 %v4432, %v4358
        %v4434 = vadd.f32 %v4433, %v4363
        %v4435 = vadd.f32 %v4434, %v4366
        %v4436 = vadd.f32 %v4435, %v4371
        %v4437 = vadd.f32 %v4436, %v4374
        %v4438 = vadd.f32 %v4437, %v4379
        %v4439 = vadd.f32 %v4438, %v4382
        %v4440 = vadd.f32 %v4439, %v4387
        %v4441 = vadd.f32 %v4440, %v4390
        %v4442 = vadd.f32 %v4441, %v4395
        %v4443 = vadd.f32 %v4442, %v4398
        %v4444 = vadd.f32 %v4443, %v4403
        %v4445 = vadd.f32 %v4444, %v4406
        %v4446 = vadd.f32 %v4445, %v4411
        %v4447 = vadd.f32 %v4446, %v4414
        %v4448 = vrot.slane %v4447, 4
        %v4449 = vadd.f32 %v4447, %v4448
        %v4450 = vrot.slane %v4449, 2
        %v4451 = vadd.f32 %v4449, %v4450
        %v4452 = vrot.slane %v4451, 1
        %v4453 = vadd.f32 %v4451, %v4452
        %4454 = vst [vmem:[%s174] sm:$0x1] %v4453
        %v4455 = vmul.f32 %v4291, %v4291
        %v4456 = vmul.f32 %v4294, %v4294
        %v4457 = vmul.f32 %v4299, %v4299
        %v4458 = vmul.f32 %v4302, %v4302
        %v4459 = vmul.f32 %v4307, %v4307
        %v4460 = vmul.f32 %v4310, %v4310
        %v4461 = vmul.f32 %v4315, %v4315
        %v4462 = vmul.f32 %v4318, %v4318
        %v4463 = vmul.f32 %v4323, %v4323
        %v4464 = vmul.f32 %v4326, %v4326
        %v4465 = vmul.f32 %v4331, %v4331
        %v4466 = vmul.f32 %v4334, %v4334
        %v4467 = vmul.f32 %v4339, %v4339
        %v4468 = vmul.f32 %v4342, %v4342
        %v4469 = vmul.f32 %v4347, %v4347
        %v4470 = vmul.f32 %v4350, %v4350
        %v4471 = vmul.f32 %v4355, %v4355
        %v4472 = vmul.f32 %v4358, %v4358
        %v4473 = vmul.f32 %v4363, %v4363
        %v4474 = vmul.f32 %v4366, %v4366
        %v4475 = vmul.f32 %v4371, %v4371
        %v4476 = vmul.f32 %v4374, %v4374
        %v4477 = vmul.f32 %v4379, %v4379
        %v4478 = vmul.f32 %v4382, %v4382
        %v4479 = vmul.f32 %v4387, %v4387
        %v4480 = vmul.f32 %v4390, %v4390
        %v4481 = vmul.f32 %v4395, %v4395
        %v4482 = vmul.f32 %v4398, %v4398
        %v4483 = vmul.f32 %v4403, %v4403
        %v4484 = vmul.f32 %v4406, %v4406
        %v4485 = vmul.f32 %v4411, %v4411
        %v4486 = vmul.f32 %v4414, %v4414
        %v4487 = vadd.f32 %v4455, %v4456
        %v4488 = vadd.f32 %v4487, %v4457
        %v4489 = vadd.f32 %v4488, %v4458
        %v4490 = vadd.f32 %v4489, %v4459
        %v4491 = vadd.f32 %v4490, %v4460
        %v4492 = vadd.f32 %v4491, %v4461
        %v4493 = vadd.f32 %v4492, %v4462
        %v4494 = vadd.f32 %v4493, %v4463
        %v4495 = vadd.f32 %v4494, %v4464
        %v4496 = vadd.f32 %v4495, %v4465
        %v4497 = vadd.f32 %v4496, %v4466
        %v4498 = vadd.f32 %v4497, %v4467
        %v4499 = vadd.f32 %v4498, %v4468
        %v4500 = vadd.f32 %v4499, %v4469
        %v4501 = vadd.f32 %v4500, %v4470
        %v4502 = vadd.f32 %v4501, %v4471
        %v4503 = vadd.f32 %v4502, %v4472
        %v4504 = vadd.f32 %v4503, %v4473
        %v4505 = vadd.f32 %v4504, %v4474
        %v4506 = vadd.f32 %v4505, %v4475
        %v4507 = vadd.f32 %v4506, %v4476
        %v4508 = vadd.f32 %v4507, %v4477
        %v4509 = vadd.f32 %v4508, %v4478
        %v4510 = vadd.f32 %v4509, %v4479
        %v4511 = vadd.f32 %v4510, %v4480
        %v4512 = vadd.f32 %v4511, %v4481
        %v4513 = vadd.f32 %v4512, %v4482
        %v4514 = vadd.f32 %v4513, %v4483
        %v4515 = vadd.f32 %v4514, %v4484
        %v4516 = vadd.f32 %v4515, %v4485
        %v4517 = vadd.f32 %v4516, %v4486
        %v4518 = vrot.slane %v4517, 4
        %v4519 = vadd.f32 %v4517, %v4518
        %v4520 = vrot.slane %v4519, 2
        %v4521 = vadd.f32 %v4519, %v4520
        %v4522 = vrot.slane %v4521, 1
        %v4523 = vadd.f32 %v4521, %v4522
        %4524 = vst [vmem:[%s174 + $0x1] sm:$0x1] %v4523
        %4525 = vxpose.xlu0.b32.start [1/16] %v4291, 128
        %4526 = vxpose.xlu0.b32.cont [2/16] %v4294, 128
        %4527 = vxpose.xlu0.b32.cont [3/16] %v4299, 128
        %4528 = vxpose.xlu0.b32.cont [4/16] %v4302, 128
        %4529 = vxpose.xlu0.b32.cont [5/16] %v4307, 128
        %4530 = vxpose.xlu0.b32.cont [6/16] %v4310, 128
        %4531 = vxpose.xlu0.b32.cont [7/16] %v4315, 128
        %4532 = vxpose.xlu0.b32.cont [8/16] %v4318, 128
        %4533 = vxpose.xlu0.b32.cont [9/16] %v4323, 128
        %4534 = vxpose.xlu0.b32.cont [10/16] %v4326, 128
        %4535 = vxpose.xlu0.b32.cont [11/16] %v4331, 128
        %4536 = vxpose.xlu0.b32.cont [12/16] %v4334, 128
        %4537 = vxpose.xlu0.b32.cont [13/16] %v4339, 128
        %4538 = vxpose.xlu0.b32.cont [14/16] %v4342, 128
        %4539 = vxpose.xlu0.b32.cont [15/16] %v4347, 128
        %4540 = vxpose.xlu0.b32.end [16/16] %v4350, 128
        %v4541 = vpop.trf.xlu0
        %v4542 = vpop.trf.xlu0
        %v4543 = vpop.trf.xlu0
        %v4544 = vpop.trf.xlu0
        %v4545 = vpop.trf.xlu0
        %v4546 = vpop.trf.xlu0
        %v4547 = vpop.trf.xlu0
        %v4548 = vpop.trf.xlu0
        %v4549 = vpop.trf.xlu0
        %v4550 = vpop.trf.xlu0
        %v4551 = vpop.trf.xlu0
        %v4552 = vpop.trf.xlu0
        %v4553 = vpop.trf.xlu0
        %v4554 = vpop.trf.xlu0
        %v4555 = vpop.trf.xlu0
        %v4556 = vpop.trf.xlu0
        %4557 = vxpose.xlu0.b32.start [1/16] %v4355, 128
        %4558 = vxpose.xlu0.b32.cont [2/16] %v4358, 128
        %4559 = vxpose.xlu0.b32.cont [3/16] %v4363, 128
        %4560 = vxpose.xlu0.b32.cont [4/16] %v4366, 128
        %4561 = vxpose.xlu0.b32.cont [5/16] %v4371, 128
        %4562 = vxpose.xlu0.b32.cont [6/16] %v4374, 128
        %4563 = vxpose.xlu0.b32.cont [7/16] %v4379, 128
        %4564 = vxpose.xlu0.b32.cont [8/16] %v4382, 128
        %4565 = vxpose.xlu0.b32.cont [9/16] %v4387, 128
        %4566 = vxpose.xlu0.b32.cont [10/16] %v4390, 128
        %4567 = vxpose.xlu0.b32.cont [11/16] %v4395, 128
        %4568 = vxpose.xlu0.b32.cont [12/16] %v4398, 128
        %4569 = vxpose.xlu0.b32.cont [13/16] %v4403, 128
        %4570 = vxpose.xlu0.b32.cont [14/16] %v4406, 128
        %4571 = vxpose.xlu0.b32.cont [15/16] %v4411, 128
        %4572 = vxpose.xlu0.b32.end [16/16] %v4414, 128
        %v4573 = vpop.trf.xlu0
        %v4574 = vpop.trf.xlu0
        %v4575 = vpop.trf.xlu0
        %v4576 = vpop.trf.xlu0
        %v4577 = vpop.trf.xlu0
        %v4578 = vpop.trf.xlu0
        %v4579 = vpop.trf.xlu0
        %v4580 = vpop.trf.xlu0
        %v4581 = vpop.trf.xlu0
        %v4582 = vpop.trf.xlu0
        %v4583 = vpop.trf.xlu0
        %v4584 = vpop.trf.xlu0
        %v4585 = vpop.trf.xlu0
        %v4586 = vpop.trf.xlu0
        %v4587 = vpop.trf.xlu0
        %v4588 = vpop.trf.xlu0
        %v4589 = vpack.c.bf16 %v4541, %v4541
        %v4590 = vpack.c.bf16 %v4573, %v4573
        %v4593 = vunpack.c.l.b16 %v4589
        %v4594 = vunpack.c.l.b16 %v4590
        %v4595 = vpack.c.b16 %v4594, %v4593
        %4597 = vst [vmem:[%s167] sm:$0xff] %v4595
        %s4598 = sand.u32 %s76, 1
        %s4599 = scalar_lea.sflag [#allocation5], %s4598
        %s4600 = sand.u32 %s76, 1
        %s4601 = smul.addr %s4600, 8
        %s4602 = scalar_lea.vmem [#allocation4], %s4601
        %s4603 = sand.u32 %s102, 1
        %s4604 = scalar_lea.sflag [#allocation7], %s4603
        %s4605 = sand.u32 %s102, 1
        %s4606 = smul.addr %s4605, 2
        %s4607 = scalar_lea.vmem [#allocation6], %s4606
        // Predicated region
        $region29: #{tpu_custom_call.1} parent=27 // pred_check
          %p4608 = pneg %p86
        $region30: #{tpu_custom_call.1} parent=27 // pred_check_branch
          %4610 = sbr.rel (%p4608) target = $region32
        $region31: #{tpu_custom_call.1} parent=27 // pred_region
          %s4612 = ssub.s32 128, 128
          %4613 = vsyncadd %s4599, %s4612
          %s4614 = smul.addr %s21, 2
          %s4615 = smul.addr %s4614, 64
          %s4616 = scalar_lea.hbm %s2, %s4615
          %s4618 = sshll.u32 %s4602, 4
          %s4619 = int_to_ptr.vmem [resolvable:$true] %s4618
          %4621 = dma.vmem_to_hbm [thread:$0]  %s4619, 128, %s4616, %s4599
        $region32: #{tpu_custom_call.1} parent=27 // pred_fallthru
          _
        // Predicated region
        $region33: #{tpu_custom_call.1} parent=27 // pred_check
          %p4622 = pneg %p112
        $region34: #{tpu_custom_call.1} parent=27 // pred_check_branch
          %4624 = sbr.rel (%p4622) target = $region36
        $region35: #{tpu_custom_call.1} parent=27 // pred_region
          %s4626 = ssub.s32 32, 32
          %4627 = vsyncadd %s4604, %s4626
          %s4628 = smul.addr %s21, 32
          %s4629 = scalar_lea.hbm %s3, %s4628
          %s4631 = sshll.u32 %s4607, 4
          %s4632 = int_to_ptr.vmem [resolvable:$true] %s4631
          %4634 = dma.vmem_to_hbm [thread:$0]  %s4632, 32, %s4629, %s4604
        $region36: #{tpu_custom_call.1} parent=27 // pred_fallthru
          _
      $region28: #{tpu_custom_call.1} parent=5 // pred_fallthru
        _
      %p4635 = scmp.le.s32.totalorder 2, %s16
      // Predicated region
      $region37: #{tpu_custom_call.1} parent=5 // pred_check
        %p4636 = pneg %p4635
      $region38: #{tpu_custom_call.1} parent=5 // pred_check_branch
        %4638 = sbr.rel (%p4636) target = $region40
      $region39: #{tpu_custom_call.1} parent=5 // pred_region
        %s4639 = ssub.s32 %s16, 2
        // Predicated region
        $region41: #{tpu_custom_call.1} parent=39 // pred_check
          %p4640 = pneg %p92
        $region42: #{tpu_custom_call.1} parent=39 // pred_check_branch
          %4642 = sbr.rel (%p4640) target = $region44
        $region43: #{tpu_custom_call.1} parent=39 // pred_region
          %s4643 = sand.u32 %s77, 1
          %s4644 = scalar_lea.sflag [#allocation5], %s4643
          %s4645 = sand.u32 %s77, 1
          %s4646 = smul.addr %s4645, 8
          %s4647 = scalar_lea.vmem [#allocation4], %s4646
          %4648 = dma.done %s4644, 128
        $region44: #{tpu_custom_call.1} parent=39 // pred_fallthru
          _
        // Predicated region
        $region45: #{tpu_custom_call.1} parent=39 // pred_check
          %p4649 = pneg %p118
        $region46: #{tpu_custom_call.1} parent=39 // pred_check_branch
          %4651 = sbr.rel (%p4649) target = $region48
        $region47: #{tpu_custom_call.1} parent=39 // pred_region
          %s4652 = sand.u32 %s103, 1
          %s4653 = scalar_lea.sflag [#allocation7], %s4652
          %s4654 = sand.u32 %s103, 1
          %s4655 = smul.addr %s4654, 2
          %s4656 = scalar_lea.vmem [#allocation6], %s4655
          %4657 = dma.done %s4653, 32
        $region48: #{tpu_custom_call.1} parent=39 // pred_fallthru
          _
      $region40: #{tpu_custom_call.1} parent=5 // pred_fallthru
        _
    $region6: #{tpu_custom_call.1} parent=1 // loop_footer
      %s20 = sadd.s32 1, %s16
    $region7: #{tpu_custom_call.1} parent=1 // loop_footer_branch
      %15 = sbr.rel target = $region3
    $region8: #{tpu_custom_call.1} parent=1 // loop_exit
      _
    %4658 = vsyncpa [#allocation5], 1
    %s4659 = scalar_lea.sflag [#allocation5], 1
    %4660 = vsyncpa %s4659, 1
    %4661 = vsyncpa [#allocation7], 1
    %s4662 = scalar_lea.sflag [#allocation7], 1
    %4663 = vsyncpa %s4662, 1

</llo_original>
